<compile_context>
chip_gen: v6e
topology: v6e:2x2x1
jax: 0.10.0
libtpu: 0.0.40
codegen_flags: <defaults>
</compile_context>

<pallas_src>
import functools

import numpy as np

import jax
import jax.numpy as jnp
from jax import lax
from jax.experimental import pallas as pl
from jax.experimental.pallas import tpu as pltpu


TILE_B = 8  # images per grid step; batch is zero-padded to a multiple of this.


# ------------------------------ fused kernel --------------------------------

def _net_kernel(x_ref, t1_ref, b1_ref, s1e_ref, s1o_ref,
                t2_ref, b2_ref, s2e_ref, s2o_ref,
                wf1_ref, bf1_ref, wf2_ref, bf2_ref, wf3_ref, bf3_ref,
                o_ref, *, tb):
    f32 = jnp.float32
    x = x_ref[...]                                     # (tb, 28, 28)

    # ---- conv1 + ReLU: 5 banded matmuls. rows=(b,oh), lanes = oc*24 + ow ----
    y1 = jnp.dot(x[:, 0:24, :].reshape(tb * 24, 28), t1_ref[0],
                 preferred_element_type=f32)
    for i in range(1, 5):
        xi = x[:, i:i + 24, :].reshape(tb * 24, 28)
        y1 = y1 + jnp.dot(xi, t1_ref[i], preferred_element_type=f32)
    y1 = jnp.maximum(y1 + b1_ref[...], 0.0)            # (tb*24, 144)

    # ---- pool1 (2x2): lane-pair max via selection matmuls, then row-pair max ----
    zw = jnp.maximum(jnp.dot(y1, s1e_ref[...], preferred_element_type=f32),
                     jnp.dot(y1, s1o_ref[...], preferred_element_type=f32))
    zw = zw.reshape(tb, 12, 2, 72)
    p1 = jnp.maximum(zw[:, :, 0, :], zw[:, :, 1, :])   # (tb, 12, 72) lanes=ic*12+w

    # ---- conv2 + ReLU: 5 banded matmuls, sum over input channels folded in K ----
    y2 = jnp.dot(p1[:, 0:8, :].reshape(tb * 8, 72), t2_ref[0],
                 preferred_element_type=f32)
    for i in range(1, 5):
        qi = p1[:, i:i + 8, :].reshape(tb * 8, 72)
        y2 = y2 + jnp.dot(qi, t2_ref[i], preferred_element_type=f32)
    y2 = jnp.maximum(y2 + b2_ref[...], 0.0)            # (tb*8, 128) lanes=oc*8+ow

    # ---- pool2 (2x2) ----
    zw2 = jnp.maximum(jnp.dot(y2, s2e_ref[...], preferred_element_type=f32),
                      jnp.dot(y2, s2o_ref[...], preferred_element_type=f32))
    zw2 = zw2.reshape(tb, 4, 2, 64)
    p2 = jnp.maximum(zw2[:, :, 0, :], zw2[:, :, 1, :])  # (tb, 4, 64) lanes=oc*4+w

    # ---- fc1 + ReLU: sum of 4 matmuls over the pooled height; N padded to 128 ----
    a1 = jnp.dot(p2[:, 0, :], wf1_ref[0], preferred_element_type=f32)
    for h in range(1, 4):
        a1 = a1 + jnp.dot(p2[:, h, :], wf1_ref[h], preferred_element_type=f32)
    a1 = jnp.maximum(a1 + bf1_ref[...], 0.0)           # (tb, 128), cols 120+ are 0

    # ---- fc2 + ReLU ----
    a2 = jnp.maximum(jnp.dot(a1, wf2_ref[...], preferred_element_type=f32)
                     + bf2_ref[...], 0.0)              # (tb, 128), cols 84+ are 0

    # ---- fc3 (no activation) ----
    a3 = jnp.dot(a2, wf3_ref[...], preferred_element_type=f32) + bf3_ref[...]
    o_ref[...] = a3.astype(o_ref.dtype)                # (tb, 128), cols 62+ are 0


# --------------------------- host-side weight packing -----------------------

def pack_params(p):
    """Pre-transpose / pre-pad / band-pack all weights once (outside jit)."""
    w1 = np.asarray(p["conv1_w"], np.float32)   # (6, 1, 5, 5)
    b1 = np.asarray(p["conv1_b"], np.float32)   # (6,)
    w2 = np.asarray(p["conv2_w"], np.float32)   # (16, 6, 5, 5)
    b2 = np.asarray(p["conv2_b"], np.float32)   # (16,)
    f1 = np.asarray(p["fc1_w"], np.float32)     # (120, 256)
    g1 = np.asarray(p["fc1_b"], np.float32)
    f2 = np.asarray(p["fc2_w"], np.float32)     # (84, 120)
    g2 = np.asarray(p["fc2_b"], np.float32)
    f3 = np.asarray(p["fc3_w"], np.float32)     # (62, 84)
    g3 = np.asarray(p["fc3_b"], np.float32)

    # conv1 band matrices: T1[i][w_in, oc*24 + ow] = w1[oc, 0, i, w_in - ow]
    T1 = np.zeros((5, 28, 6 * 24), np.float32)
    for i in range(5):
        for oc in range(6):
            for ow in range(24):
                for j in range(5):
                    T1[i, ow + j, oc * 24 + ow] = w1[oc, 0, i, j]
    B1 = np.repeat(b1, 24)[None, :]                     # (1, 144)

    # pool1 even/odd lane-selection matrices (144 -> 72)
    S1e = np.zeros((144, 72), np.float32)
    S1o = np.zeros((144, 72), np.float32)
    for oc in range(6):
        for k in range(12):
            S1e[oc * 24 + 2 * k, oc * 12 + k] = 1.0
            S1o[oc * 24 + 2 * k + 1, oc * 12 + k] = 1.0

    # conv2 band matrices: T2[i][ic*12 + w_in, oc*8 + ow] = w2[oc, ic, i, w_in - ow]
    T2 = np.zeros((5, 6 * 12, 16 * 8), np.float32)
    for i in range(5):
        for ic in range(6):
            for oc in range(16):
                for ow in range(8):
                    for j in range(5):
                        T2[i, ic * 12 + ow + j, oc * 8 + ow] = w2[oc, ic, i, j]
    B2 = np.repeat(b2, 8)[None, :]                      # (1, 128)

    # pool2 even/odd lane-selection matrices (128 -> 64)
    S2e = np.zeros((128, 64), np.float32)
    S2o = np.zeros((128, 64), np.float32)
    for oc in range(16):
        for k in range(4):
            S2e[oc * 8 + 2 * k, oc * 4 + k] = 1.0
            S2o[oc * 8 + 2 * k + 1, oc * 4 + k] = 1.0

    # fc1: Wf1[h, oc*4 + w, n] = fc1_w[n, oc*16 + h*4 + w]; N padded 120 -> 128
    Wf1 = np.zeros((4, 64, 128), np.float32)
    Wf1[:, :, :120] = (f1.T.reshape(16, 4, 4, 120)
                           .transpose(1, 0, 2, 3)
                           .reshape(4, 64, 120))
    Bf1 = np.zeros((1, 128), np.float32); Bf1[0, :120] = g1

    Wf2 = np.zeros((128, 128), np.float32); Wf2[:120, :84] = f2.T
    Bf2 = np.zeros((1, 128), np.float32); Bf2[0, :84] = g2

    Wf3 = np.zeros((128, 128), np.float32); Wf3[:84, :62] = f3.T
    Bf3 = np.zeros((1, 128), np.float32); Bf3[0, :62] = g3

    names = ["t1", "b1", "s1e", "s1o", "t2", "b2", "s2e", "s2o",
             "wf1", "bf1", "wf2", "bf2", "wf3", "bf3"]
    arrs = [T1, B1, S1e, S1o, T2, B2, S2e, S2o, Wf1, Bf1, Wf2, Bf2, Wf3, Bf3]
    return {n: jnp.asarray(a) for n, a in zip(names, arrs)}


# ------------------------------- forward pass --------------------------------

def net_forward(packed, x, *, tile_b=TILE_B):
    """x: (B, 1, 28, 28) f32 -> (B, 62) f32.  Single fused Pallas kernel."""
    B = x.shape[0]
    x = x.reshape(B, 28, 28).astype(jnp.float32)
    bp = ((B + tile_b - 1) // tile_b) * tile_b
    if bp != B:
        x = jnp.pad(x, ((0, bp - B), (0, 0), (0, 0)))

    kernel = functools.partial(_net_kernel, tb=tile_b)
    c3 = lambda shape: pl.BlockSpec(shape, lambda i: (0, 0, 0))
    c2 = lambda shape: pl.BlockSpec(shape, lambda i: (0, 0))

    out = pl.pallas_call(
        kernel,
        out_shape=jax.ShapeDtypeStruct((bp, 128), jnp.float32),
        grid=(bp // tile_b,),
        in_specs=[
            pl.BlockSpec((tile_b, 28, 28), lambda i: (i, 0, 0)),   # images
            c3((5, 28, 144)), c2((1, 144)),                        # conv1
            c2((144, 72)), c2((144, 72)),                          # pool1
            c3((5, 72, 128)), c2((1, 128)),                        # conv2
            c2((128, 64)), c2((128, 64)),                          # pool2
            c3((4, 64, 128)), c2((1, 128)),                        # fc1
            c2((128, 128)), c2((1, 128)),                          # fc2
            c2((128, 128)), c2((1, 128)),                          # fc3
        ],
        out_specs=pl.BlockSpec((tile_b, 128), lambda i: (i, 0)),
        compiler_params=pltpu.CompilerParams(
            dimension_semantics=("parallel",)),
    )(x, packed["t1"], packed["b1"], packed["s1e"], packed["s1o"],
      packed["t2"], packed["b2"], packed["s2e"], packed["s2o"],
      packed["wf1"], packed["bf1"], packed["wf2"], packed["bf2"],
      packed["wf3"], packed["bf3"])
    return out[:B, :62]


# ------------------------- plain-JAX reference (check) -----------------------

def reference_forward(params, x):
    """Pure-XLA reference of the PyTorch Net.forward (no Pallas)."""
    hp = lax.Precision.HIGHEST

    def conv2d(x, w, b):
        dn = lax.conv_dimension_numbers(x.shape, w.shape, ("NCHW", "OIHW", "NCHW"))
        y = lax.conv_general_dilated(x, w, (1, 1), "VALID",
                                     dimension_numbers=dn, precision=hp)
        return y + b[None, :, None, None]

    def pool(x):
        return lax.reduce_window(x, -jnp.inf, lax.max,
                                 (1, 1, 2, 2), (1, 1, 2, 2), "VALID")

    x = pool(jnp.maximum(conv2d(x, params["conv1_w"], params["conv1_b"]), 0.0))
    x = pool(jnp.maximum(conv2d(x, params["conv2_w"], params["conv2_b"]), 0.0))
    x = x.reshape(x.shape[0], 16 * 4 * 4)
    x = jnp.maximum(jnp.dot(x, params["fc1_w"].T, precision=hp) + params["fc1_b"], 0.0)
    x = jnp.maximum(jnp.dot(x, params["fc2_w"].T, precision=hp) + params["fc2_b"], 0.0)
    return jnp.dot(x, params["fc3_w"].T, precision=hp) + params["fc3_b"]


# --------------------------------- params ------------------------------------

def init_params(key):
    ks = jax.random.split(key, 10)
    p = {}
    p["conv1_w"] = 0.1 * jax.random.normal(ks[0], (6, 1, 5, 5), jnp.float32)
    p["conv1_b"] = 0.1 * jax.random.normal(ks[1], (6,), jnp.float32)
    p["conv2_w"] = 0.1 * jax.random.normal(ks[2], (16, 6, 5, 5), jnp.float32)
    p["conv2_b"] = 0.1 * jax.random.normal(ks[3], (16,), jnp.float32)
    p["fc1_w"] = 0.05 * jax.random.normal(ks[4], (120, 16 * 4 * 4), jnp.float32)
    p["fc1_b"] = 0.05 * jax.random.normal(ks[5], (120,), jnp.float32)
    p["fc2_w"] = 0.05 * jax.random.normal(ks[6], (84, 120), jnp.float32)
    p["fc2_b"] = 0.05 * jax.random.normal(ks[7], (84,), jnp.float32)
    p["fc3_w"] = 0.05 * jax.random.normal(ks[8], (62, 84), jnp.float32)
    p["fc3_b"] = 0.05 * jax.random.normal(ks[9], (62,), jnp.float32)
    return p


if __name__ == "__main__":
    key = jax.random.PRNGKey(0)
    pkey, xkey = jax.random.split(key)
    params = init_params(pkey)
    packed = pack_params(params)          # one-time host packing of all weights

    # batch=2, single-channel 28x28 (the 16*4*4 flatten implies 28x28 inputs)
    x = jax.random.normal(xkey, (2, 1, 28, 28), jnp.float32)

    out = jax.jit(net_forward)(packed, x)
    out = jax.block_until_ready(out)
    assert out.shape == (2, 62) and out.dtype == jnp.float32

    ref = reference_forward(params, x)
    err = float(jnp.max(jnp.abs(out - ref)))
    assert jnp.allclose(out, ref, atol=2e-2, rtol=2e-2), f"max abs err {err}"

    print("KERNEL_OK")
</pallas_src>

<mosaic_0001>
module attributes {stable_mosaic.version = 11 : i64} {
  func.func @_net_kernel(%arg0: i32, %arg1: memref<8x28x28xf32, #tpu.memory_space<vmem>>, %arg2: memref<5x28x144xf32, #tpu.memory_space<vmem>>, %arg3: memref<1x144xf32, #tpu.memory_space<vmem>>, %arg4: memref<144x72xf32, #tpu.memory_space<vmem>>, %arg5: memref<144x72xf32, #tpu.memory_space<vmem>>, %arg6: memref<5x72x128xf32, #tpu.memory_space<vmem>>, %arg7: memref<1x128xf32, #tpu.memory_space<vmem>>, %arg8: memref<128x64xf32, #tpu.memory_space<vmem>>, %arg9: memref<128x64xf32, #tpu.memory_space<vmem>>, %arg10: memref<4x64x128xf32, #tpu.memory_space<vmem>>, %arg11: memref<1x128xf32, #tpu.memory_space<vmem>>, %arg12: memref<128x128xf32, #tpu.memory_space<vmem>>, %arg13: memref<1x128xf32, #tpu.memory_space<vmem>>, %arg14: memref<128x128xf32, #tpu.memory_space<vmem>>, %arg15: memref<1x128xf32, #tpu.memory_space<vmem>>, %arg16: memref<8x128xf32, #tpu.memory_space<vmem>>) attributes {dimension_semantics = [#tpu.dimension_semantics<parallel>], iteration_bounds = array<i64: 1>, scalar_prefetch = 0 : i64, scratch_operands = 0 : i64, tpu.core_type = #tpu.core_type<tc>, window_params = [{transform_indices = @transform_0, window_bounds = array<i64: 8, 28, 28>}, {pipeline_mode = #tpu.pipeline_mode<synchronous>, transform_indices = @transform_1, window_bounds = array<i64: 5, 28, 144>}, {pipeline_mode = #tpu.pipeline_mode<synchronous>, transform_indices = @transform_2, window_bounds = array<i64: 1, 144>}, {pipeline_mode = #tpu.pipeline_mode<synchronous>, transform_indices = @transform_3, window_bounds = array<i64: 144, 72>}, {pipeline_mode = #tpu.pipeline_mode<synchronous>, transform_indices = @transform_4, window_bounds = array<i64: 144, 72>}, {pipeline_mode = #tpu.pipeline_mode<synchronous>, transform_indices = @transform_5, window_bounds = array<i64: 5, 72, 128>}, {pipeline_mode = #tpu.pipeline_mode<synchronous>, transform_indices = @transform_6, window_bounds = array<i64: 1, 128>}, {pipeline_mode = #tpu.pipeline_mode<synchronous>, transform_indices = @transform_7, window_bounds = array<i64: 128, 64>}, {pipeline_mode = #tpu.pipeline_mode<synchronous>, transform_indices = @transform_8, window_bounds = array<i64: 128, 64>}, {pipeline_mode = #tpu.pipeline_mode<synchronous>, transform_indices = @transform_9, window_bounds = array<i64: 4, 64, 128>}, {pipeline_mode = #tpu.pipeline_mode<synchronous>, transform_indices = @transform_10, window_bounds = array<i64: 1, 128>}, {pipeline_mode = #tpu.pipeline_mode<synchronous>, transform_indices = @transform_11, window_bounds = array<i64: 128, 128>}, {pipeline_mode = #tpu.pipeline_mode<synchronous>, transform_indices = @transform_12, window_bounds = array<i64: 1, 128>}, {pipeline_mode = #tpu.pipeline_mode<synchronous>, transform_indices = @transform_13, window_bounds = array<i64: 128, 128>}, {pipeline_mode = #tpu.pipeline_mode<synchronous>, transform_indices = @transform_14, window_bounds = array<i64: 1, 128>}, {transform_indices = @transform_15, window_bounds = array<i64: 8, 128>}]} {
    %c0 = arith.constant 0 : index
    %c0_0 = arith.constant 0 : index
    %c0_1 = arith.constant 0 : index
    %0 = vector.load %arg1[%c0, %c0_0, %c0_1] : memref<8x28x28xf32, #tpu.memory_space<vmem>>, vector<8x28x28xf32>
    %1 = vector.extract_strided_slice %0 {offsets = [0, 0, 0], sizes = [8, 24, 28], strides = [1, 1, 1]} : vector<8x28x28xf32> to vector<8x24x28xf32>
    %2 = vector.shape_cast %1 : vector<8x24x28xf32> to vector<192x28xf32>
    %c0_2 = arith.constant 0 : index
    %c0_3 = arith.constant 0 : index
    %c0_4 = arith.constant 0 : index
    %3 = vector.load %arg2[%c0_2, %c0_3, %c0_4] : memref<5x28x144xf32, #tpu.memory_space<vmem>>, vector<1x28x144xf32>
    %4 = vector.shape_cast %3 : vector<1x28x144xf32> to vector<28x144xf32>
    %cst = arith.constant dense<0.000000e+00> : vector<192x144xf32>
    %5 = tpu.matmul %2, %4, %cst {dimension_numbers = #tpu.dot_dimension_numbers<[1], [0], [0], [1], [0, 0, 1, 1], [], []>} : vector<192x28xf32>, vector<28x144xf32>, vector<192x144xf32> -> vector<192x144xf32>
    %6 = vector.extract_strided_slice %0 {offsets = [0, 1, 0], sizes = [8, 24, 28], strides = [1, 1, 1]} : vector<8x28x28xf32> to vector<8x24x28xf32>
    %7 = vector.shape_cast %6 : vector<8x24x28xf32> to vector<192x28xf32>
    %c1 = arith.constant 1 : index
    %c0_5 = arith.constant 0 : index
    %c0_6 = arith.constant 0 : index
    %8 = vector.load %arg2[%c1, %c0_5, %c0_6] : memref<5x28x144xf32, #tpu.memory_space<vmem>>, vector<1x28x144xf32>
    %9 = vector.shape_cast %8 : vector<1x28x144xf32> to vector<28x144xf32>
    %cst_7 = arith.constant dense<0.000000e+00> : vector<192x144xf32>
    %10 = tpu.matmul %7, %9, %cst_7 {dimension_numbers = #tpu.dot_dimension_numbers<[1], [0], [0], [1], [0, 0, 1, 1], [], []>} : vector<192x28xf32>, vector<28x144xf32>, vector<192x144xf32> -> vector<192x144xf32>
    %11 = arith.addf %5, %10 : vector<192x144xf32>
    %12 = vector.extract_strided_slice %0 {offsets = [0, 2, 0], sizes = [8, 24, 28], strides = [1, 1, 1]} : vector<8x28x28xf32> to vector<8x24x28xf32>
    %13 = vector.shape_cast %12 : vector<8x24x28xf32> to vector<192x28xf32>
    %c2 = arith.constant 2 : index
    %c0_8 = arith.constant 0 : index
    %c0_9 = arith.constant 0 : index
    %14 = vector.load %arg2[%c2, %c0_8, %c0_9] : memref<5x28x144xf32, #tpu.memory_space<vmem>>, vector<1x28x144xf32>
    %15 = vector.shape_cast %14 : vector<1x28x144xf32> to vector<28x144xf32>
    %cst_10 = arith.constant dense<0.000000e+00> : vector<192x144xf32>
    %16 = tpu.matmul %13, %15, %cst_10 {dimension_numbers = #tpu.dot_dimension_numbers<[1], [0], [0], [1], [0, 0, 1, 1], [], []>} : vector<192x28xf32>, vector<28x144xf32>, vector<192x144xf32> -> vector<192x144xf32>
    %17 = arith.addf %11, %16 : vector<192x144xf32>
    %18 = vector.extract_strided_slice %0 {offsets = [0, 3, 0], sizes = [8, 24, 28], strides = [1, 1, 1]} : vector<8x28x28xf32> to vector<8x24x28xf32>
    %19 = vector.shape_cast %18 : vector<8x24x28xf32> to vector<192x28xf32>
    %c3 = arith.constant 3 : index
    %c0_11 = arith.constant 0 : index
    %c0_12 = arith.constant 0 : index
    %20 = vector.load %arg2[%c3, %c0_11, %c0_12] : memref<5x28x144xf32, #tpu.memory_space<vmem>>, vector<1x28x144xf32>
    %21 = vector.shape_cast %20 : vector<1x28x144xf32> to vector<28x144xf32>
    %cst_13 = arith.constant dense<0.000000e+00> : vector<192x144xf32>
    %22 = tpu.matmul %19, %21, %cst_13 {dimension_numbers = #tpu.dot_dimension_numbers<[1], [0], [0], [1], [0, 0, 1, 1], [], []>} : vector<192x28xf32>, vector<28x144xf32>, vector<192x144xf32> -> vector<192x144xf32>
    %23 = arith.addf %17, %22 : vector<192x144xf32>
    %24 = vector.extract_strided_slice %0 {offsets = [0, 4, 0], sizes = [8, 24, 28], strides = [1, 1, 1]} : vector<8x28x28xf32> to vector<8x24x28xf32>
    %25 = vector.shape_cast %24 : vector<8x24x28xf32> to vector<192x28xf32>
    %c4 = arith.constant 4 : index
    %c0_14 = arith.constant 0 : index
    %c0_15 = arith.constant 0 : index
    %26 = vector.load %arg2[%c4, %c0_14, %c0_15] : memref<5x28x144xf32, #tpu.memory_space<vmem>>, vector<1x28x144xf32>
    %27 = vector.shape_cast %26 : vector<1x28x144xf32> to vector<28x144xf32>
    %cst_16 = arith.constant dense<0.000000e+00> : vector<192x144xf32>
    %28 = tpu.matmul %25, %27, %cst_16 {dimension_numbers = #tpu.dot_dimension_numbers<[1], [0], [0], [1], [0, 0, 1, 1], [], []>} : vector<192x28xf32>, vector<28x144xf32>, vector<192x144xf32> -> vector<192x144xf32>
    %29 = arith.addf %23, %28 : vector<192x144xf32>
    %c0_17 = arith.constant 0 : index
    %c0_18 = arith.constant 0 : index
    %30 = vector.load %arg3[%c0_17, %c0_18] : memref<1x144xf32, #tpu.memory_space<vmem>>, vector<1x144xf32>
    %31 = vector.broadcast %30 : vector<1x144xf32> to vector<192x144xf32>
    %32 = arith.addf %29, %31 : vector<192x144xf32>
    %cst_19 = arith.constant 0.000000e+00 : f32
    %33 = vector.broadcast %cst_19 : f32 to vector<192x144xf32>
    %34 = arith.maximumf %32, %33 : vector<192x144xf32>
    %c0_20 = arith.constant 0 : index
    %c0_21 = arith.constant 0 : index
    %35 = vector.load %arg4[%c0_20, %c0_21] : memref<144x72xf32, #tpu.memory_space<vmem>>, vector<144x72xf32>
    %cst_22 = arith.constant dense<0.000000e+00> : vector<192x72xf32>
    %36 = tpu.matmul %34, %35, %cst_22 {dimension_numbers = #tpu.dot_dimension_numbers<[1], [0], [0], [1], [0, 0, 1, 1], [], []>} : vector<192x144xf32>, vector<144x72xf32>, vector<192x72xf32> -> vector<192x72xf32>
    %c0_23 = arith.constant 0 : index
    %c0_24 = arith.constant 0 : index
    %37 = vector.load %arg5[%c0_23, %c0_24] : memref<144x72xf32, #tpu.memory_space<vmem>>, vector<144x72xf32>
    %cst_25 = arith.constant dense<0.000000e+00> : vector<192x72xf32>
    %38 = tpu.matmul %34, %37, %cst_25 {dimension_numbers = #tpu.dot_dimension_numbers<[1], [0], [0], [1], [0, 0, 1, 1], [], []>} : vector<192x144xf32>, vector<144x72xf32>, vector<192x72xf32> -> vector<192x72xf32>
    %39 = arith.maximumf %36, %38 : vector<192x72xf32>
    %40 = vector.shape_cast %39 : vector<192x72xf32> to vector<8x12x2x72xf32>
    %41 = vector.extract_strided_slice %40 {offsets = [0, 0, 0, 0], sizes = [8, 12, 1, 72], strides = [1, 1, 1, 1]} : vector<8x12x2x72xf32> to vector<8x12x1x72xf32>
    %42 = vector.shape_cast %41 : vector<8x12x1x72xf32> to vector<8x12x72xf32>
    %43 = vector.extract_strided_slice %40 {offsets = [0, 0, 1, 0], sizes = [8, 12, 1, 72], strides = [1, 1, 1, 1]} : vector<8x12x2x72xf32> to vector<8x12x1x72xf32>
    %44 = vector.shape_cast %43 : vector<8x12x1x72xf32> to vector<8x12x72xf32>
    %45 = arith.maximumf %42, %44 : vector<8x12x72xf32>
    %46 = vector.extract_strided_slice %45 {offsets = [0, 0, 0], sizes = [8, 8, 72], strides = [1, 1, 1]} : vector<8x12x72xf32> to vector<8x8x72xf32>
    %47 = vector.shape_cast %46 : vector<8x8x72xf32> to vector<64x72xf32>
    %c0_26 = arith.constant 0 : index
    %c0_27 = arith.constant 0 : index
    %c0_28 = arith.constant 0 : index
    %48 = vector.load %arg6[%c0_26, %c0_27, %c0_28] : memref<5x72x128xf32, #tpu.memory_space<vmem>>, vector<1x72x128xf32>
    %49 = vector.shape_cast %48 : vector<1x72x128xf32> to vector<72x128xf32>
    %cst_29 = arith.constant dense<0.000000e+00> : vector<64x128xf32>
    %50 = tpu.matmul %47, %49, %cst_29 {dimension_numbers = #tpu.dot_dimension_numbers<[1], [0], [0], [1], [0, 0, 1, 1], [], []>} : vector<64x72xf32>, vector<72x128xf32>, vector<64x128xf32> -> vector<64x128xf32>
    %51 = vector.extract_strided_slice %45 {offsets = [0, 1, 0], sizes = [8, 8, 72], strides = [1, 1, 1]} : vector<8x12x72xf32> to vector<8x8x72xf32>
    %52 = vector.shape_cast %51 : vector<8x8x72xf32> to vector<64x72xf32>
    %c1_30 = arith.constant 1 : index
    %c0_31 = arith.constant 0 : index
    %c0_32 = arith.constant 0 : index
    %53 = vector.load %arg6[%c1_30, %c0_31, %c0_32] : memref<5x72x128xf32, #tpu.memory_space<vmem>>, vector<1x72x128xf32>
    %54 = vector.shape_cast %53 : vector<1x72x128xf32> to vector<72x128xf32>
    %cst_33 = arith.constant dense<0.000000e+00> : vector<64x128xf32>
    %55 = tpu.matmul %52, %54, %cst_33 {dimension_numbers = #tpu.dot_dimension_numbers<[1], [0], [0], [1], [0, 0, 1, 1], [], []>} : vector<64x72xf32>, vector<72x128xf32>, vector<64x128xf32> -> vector<64x128xf32>
    %56 = arith.addf %50, %55 : vector<64x128xf32>
    %57 = vector.extract_strided_slice %45 {offsets = [0, 2, 0], sizes = [8, 8, 72], strides = [1, 1, 1]} : vector<8x12x72xf32> to vector<8x8x72xf32>
    %58 = vector.shape_cast %57 : vector<8x8x72xf32> to vector<64x72xf32>
    %c2_34 = arith.constant 2 : index
    %c0_35 = arith.constant 0 : index
    %c0_36 = arith.constant 0 : index
    %59 = vector.load %arg6[%c2_34, %c0_35, %c0_36] : memref<5x72x128xf32, #tpu.memory_space<vmem>>, vector<1x72x128xf32>
    %60 = vector.shape_cast %59 : vector<1x72x128xf32> to vector<72x128xf32>
    %cst_37 = arith.constant dense<0.000000e+00> : vector<64x128xf32>
    %61 = tpu.matmul %58, %60, %cst_37 {dimension_numbers = #tpu.dot_dimension_numbers<[1], [0], [0], [1], [0, 0, 1, 1], [], []>} : vector<64x72xf32>, vector<72x128xf32>, vector<64x128xf32> -> vector<64x128xf32>
    %62 = arith.addf %56, %61 : vector<64x128xf32>
    %63 = vector.extract_strided_slice %45 {offsets = [0, 3, 0], sizes = [8, 8, 72], strides = [1, 1, 1]} : vector<8x12x72xf32> to vector<8x8x72xf32>
    %64 = vector.shape_cast %63 : vector<8x8x72xf32> to vector<64x72xf32>
    %c3_38 = arith.constant 3 : index
    %c0_39 = arith.constant 0 : index
    %c0_40 = arith.constant 0 : index
    %65 = vector.load %arg6[%c3_38, %c0_39, %c0_40] : memref<5x72x128xf32, #tpu.memory_space<vmem>>, vector<1x72x128xf32>
    %66 = vector.shape_cast %65 : vector<1x72x128xf32> to vector<72x128xf32>
    %cst_41 = arith.constant dense<0.000000e+00> : vector<64x128xf32>
    %67 = tpu.matmul %64, %66, %cst_41 {dimension_numbers = #tpu.dot_dimension_numbers<[1], [0], [0], [1], [0, 0, 1, 1], [], []>} : vector<64x72xf32>, vector<72x128xf32>, vector<64x128xf32> -> vector<64x128xf32>
    %68 = arith.addf %62, %67 : vector<64x128xf32>
    %69 = vector.extract_strided_slice %45 {offsets = [0, 4, 0], sizes = [8, 8, 72], strides = [1, 1, 1]} : vector<8x12x72xf32> to vector<8x8x72xf32>
    %70 = vector.shape_cast %69 : vector<8x8x72xf32> to vector<64x72xf32>
    %c4_42 = arith.constant 4 : index
    %c0_43 = arith.constant 0 : index
    %c0_44 = arith.constant 0 : index
    %71 = vector.load %arg6[%c4_42, %c0_43, %c0_44] : memref<5x72x128xf32, #tpu.memory_space<vmem>>, vector<1x72x128xf32>
    %72 = vector.shape_cast %71 : vector<1x72x128xf32> to vector<72x128xf32>
    %cst_45 = arith.constant dense<0.000000e+00> : vector<64x128xf32>
    %73 = tpu.matmul %70, %72, %cst_45 {dimension_numbers = #tpu.dot_dimension_numbers<[1], [0], [0], [1], [0, 0, 1, 1], [], []>} : vector<64x72xf32>, vector<72x128xf32>, vector<64x128xf32> -> vector<64x128xf32>
    %74 = arith.addf %68, %73 : vector<64x128xf32>
    %c0_46 = arith.constant 0 : index
    %c0_47 = arith.constant 0 : index
    %75 = vector.load %arg7[%c0_46, %c0_47] : memref<1x128xf32, #tpu.memory_space<vmem>>, vector<1x128xf32>
    %76 = vector.broadcast %75 : vector<1x128xf32> to vector<64x128xf32>
    %77 = arith.addf %74, %76 : vector<64x128xf32>
    %cst_48 = arith.constant 0.000000e+00 : f32
    %78 = vector.broadcast %cst_48 : f32 to vector<64x128xf32>
    %79 = arith.maximumf %77, %78 : vector<64x128xf32>
    %c0_49 = arith.constant 0 : index
    %c0_50 = arith.constant 0 : index
    %80 = vector.load %arg8[%c0_49, %c0_50] : memref<128x64xf32, #tpu.memory_space<vmem>>, vector<128x64xf32>
    %cst_51 = arith.constant dense<0.000000e+00> : vector<64x64xf32>
    %81 = tpu.matmul %79, %80, %cst_51 {dimension_numbers = #tpu.dot_dimension_numbers<[1], [0], [0], [1], [0, 0, 1, 1], [], []>} : vector<64x128xf32>, vector<128x64xf32>, vector<64x64xf32> -> vector<64x64xf32>
    %c0_52 = arith.constant 0 : index
    %c0_53 = arith.constant 0 : index
    %82 = vector.load %arg9[%c0_52, %c0_53] : memref<128x64xf32, #tpu.memory_space<vmem>>, vector<128x64xf32>
    %cst_54 = arith.constant dense<0.000000e+00> : vector<64x64xf32>
    %83 = tpu.matmul %79, %82, %cst_54 {dimension_numbers = #tpu.dot_dimension_numbers<[1], [0], [0], [1], [0, 0, 1, 1], [], []>} : vector<64x128xf32>, vector<128x64xf32>, vector<64x64xf32> -> vector<64x64xf32>
    %84 = arith.maximumf %81, %83 : vector<64x64xf32>
    %85 = vector.shape_cast %84 : vector<64x64xf32> to vector<8x4x2x64xf32>
    %86 = vector.extract_strided_slice %85 {offsets = [0, 0, 0, 0], sizes = [8, 4, 1, 64], strides = [1, 1, 1, 1]} : vector<8x4x2x64xf32> to vector<8x4x1x64xf32>
    %87 = vector.shape_cast %86 : vector<8x4x1x64xf32> to vector<8x4x64xf32>
    %88 = vector.extract_strided_slice %85 {offsets = [0, 0, 1, 0], sizes = [8, 4, 1, 64], strides = [1, 1, 1, 1]} : vector<8x4x2x64xf32> to vector<8x4x1x64xf32>
    %89 = vector.shape_cast %88 : vector<8x4x1x64xf32> to vector<8x4x64xf32>
    %90 = arith.maximumf %87, %89 : vector<8x4x64xf32>
    %91 = vector.extract_strided_slice %90 {offsets = [0, 0, 0], sizes = [8, 1, 64], strides = [1, 1, 1]} : vector<8x4x64xf32> to vector<8x1x64xf32>
    %92 = vector.shape_cast %91 : vector<8x1x64xf32> to vector<8x64xf32>
    %c0_55 = arith.constant 0 : index
    %c0_56 = arith.constant 0 : index
    %c0_57 = arith.constant 0 : index
    %93 = vector.load %arg10[%c0_55, %c0_56, %c0_57] : memref<4x64x128xf32, #tpu.memory_space<vmem>>, vector<1x64x128xf32>
    %94 = vector.shape_cast %93 : vector<1x64x128xf32> to vector<64x128xf32>
    %cst_58 = arith.constant dense<0.000000e+00> : vector<8x128xf32>
    %95 = tpu.matmul %92, %94, %cst_58 {dimension_numbers = #tpu.dot_dimension_numbers<[1], [0], [0], [1], [0, 0, 1, 1], [], []>} : vector<8x64xf32>, vector<64x128xf32>, vector<8x128xf32> -> vector<8x128xf32>
    %96 = vector.extract_strided_slice %90 {offsets = [0, 1, 0], sizes = [8, 1, 64], strides = [1, 1, 1]} : vector<8x4x64xf32> to vector<8x1x64xf32>
    %97 = vector.shape_cast %96 : vector<8x1x64xf32> to vector<8x64xf32>
    %c1_59 = arith.constant 1 : index
    %c0_60 = arith.constant 0 : index
    %c0_61 = arith.constant 0 : index
    %98 = vector.load %arg10[%c1_59, %c0_60, %c0_61] : memref<4x64x128xf32, #tpu.memory_space<vmem>>, vector<1x64x128xf32>
    %99 = vector.shape_cast %98 : vector<1x64x128xf32> to vector<64x128xf32>
    %cst_62 = arith.constant dense<0.000000e+00> : vector<8x128xf32>
    %100 = tpu.matmul %97, %99, %cst_62 {dimension_numbers = #tpu.dot_dimension_numbers<[1], [0], [0], [1], [0, 0, 1, 1], [], []>} : vector<8x64xf32>, vector<64x128xf32>, vector<8x128xf32> -> vector<8x128xf32>
    %101 = arith.addf %95, %100 : vector<8x128xf32>
    %102 = vector.extract_strided_slice %90 {offsets = [0, 2, 0], sizes = [8, 1, 64], strides = [1, 1, 1]} : vector<8x4x64xf32> to vector<8x1x64xf32>
    %103 = vector.shape_cast %102 : vector<8x1x64xf32> to vector<8x64xf32>
    %c2_63 = arith.constant 2 : index
    %c0_64 = arith.constant 0 : index
    %c0_65 = arith.constant 0 : index
    %104 = vector.load %arg10[%c2_63, %c0_64, %c0_65] : memref<4x64x128xf32, #tpu.memory_space<vmem>>, vector<1x64x128xf32>
    %105 = vector.shape_cast %104 : vector<1x64x128xf32> to vector<64x128xf32>
    %cst_66 = arith.constant dense<0.000000e+00> : vector<8x128xf32>
    %106 = tpu.matmul %103, %105, %cst_66 {dimension_numbers = #tpu.dot_dimension_numbers<[1], [0], [0], [1], [0, 0, 1, 1], [], []>} : vector<8x64xf32>, vector<64x128xf32>, vector<8x128xf32> -> vector<8x128xf32>
    %107 = arith.addf %101, %106 : vector<8x128xf32>
    %108 = vector.extract_strided_slice %90 {offsets = [0, 3, 0], sizes = [8, 1, 64], strides = [1, 1, 1]} : vector<8x4x64xf32> to vector<8x1x64xf32>
    %109 = vector.shape_cast %108 : vector<8x1x64xf32> to vector<8x64xf32>
    %c3_67 = arith.constant 3 : index
    %c0_68 = arith.constant 0 : index
    %c0_69 = arith.constant 0 : index
    %110 = vector.load %arg10[%c3_67, %c0_68, %c0_69] : memref<4x64x128xf32, #tpu.memory_space<vmem>>, vector<1x64x128xf32>
    %111 = vector.shape_cast %110 : vector<1x64x128xf32> to vector<64x128xf32>
    %cst_70 = arith.constant dense<0.000000e+00> : vector<8x128xf32>
    %112 = tpu.matmul %109, %111, %cst_70 {dimension_numbers = #tpu.dot_dimension_numbers<[1], [0], [0], [1], [0, 0, 1, 1], [], []>} : vector<8x64xf32>, vector<64x128xf32>, vector<8x128xf32> -> vector<8x128xf32>
    %113 = arith.addf %107, %112 : vector<8x128xf32>
    %c0_71 = arith.constant 0 : index
    %c0_72 = arith.constant 0 : index
    %114 = vector.load %arg11[%c0_71, %c0_72] : memref<1x128xf32, #tpu.memory_space<vmem>>, vector<1x128xf32>
    %115 = vector.broadcast %114 : vector<1x128xf32> to vector<8x128xf32>
    %116 = arith.addf %113, %115 : vector<8x128xf32>
    %cst_73 = arith.constant 0.000000e+00 : f32
    %117 = vector.broadcast %cst_73 : f32 to vector<8x128xf32>
    %118 = arith.maximumf %116, %117 : vector<8x128xf32>
    %c0_74 = arith.constant 0 : index
    %c0_75 = arith.constant 0 : index
    %119 = vector.load %arg12[%c0_74, %c0_75] : memref<128x128xf32, #tpu.memory_space<vmem>>, vector<128x128xf32>
    %cst_76 = arith.constant dense<0.000000e+00> : vector<8x128xf32>
    %120 = tpu.matmul %118, %119, %cst_76 {dimension_numbers = #tpu.dot_dimension_numbers<[1], [0], [0], [1], [0, 0, 1, 1], [], []>} : vector<8x128xf32>, vector<128x128xf32>, vector<8x128xf32> -> vector<8x128xf32>
    %c0_77 = arith.constant 0 : index
    %c0_78 = arith.constant 0 : index
    %121 = vector.load %arg13[%c0_77, %c0_78] : memref<1x128xf32, #tpu.memory_space<vmem>>, vector<1x128xf32>
    %122 = vector.broadcast %121 : vector<1x128xf32> to vector<8x128xf32>
    %123 = arith.addf %120, %122 : vector<8x128xf32>
    %cst_79 = arith.constant 0.000000e+00 : f32
    %124 = vector.broadcast %cst_79 : f32 to vector<8x128xf32>
    %125 = arith.maximumf %123, %124 : vector<8x128xf32>
    %c0_80 = arith.constant 0 : index
    %c0_81 = arith.constant 0 : index
    %126 = vector.load %arg14[%c0_80, %c0_81] : memref<128x128xf32, #tpu.memory_space<vmem>>, vector<128x128xf32>
    %cst_82 = arith.constant dense<0.000000e+00> : vector<8x128xf32>
    %127 = tpu.matmul %125, %126, %cst_82 {dimension_numbers = #tpu.dot_dimension_numbers<[1], [0], [0], [1], [0, 0, 1, 1], [], []>} : vector<8x128xf32>, vector<128x128xf32>, vector<8x128xf32> -> vector<8x128xf32>
    %c0_83 = arith.constant 0 : index
    %c0_84 = arith.constant 0 : index
    %128 = vector.load %arg15[%c0_83, %c0_84] : memref<1x128xf32, #tpu.memory_space<vmem>>, vector<1x128xf32>
    %129 = vector.broadcast %128 : vector<1x128xf32> to vector<8x128xf32>
    %130 = arith.addf %127, %129 : vector<8x128xf32>
    %c0_85 = arith.constant 0 : index
    %c0_86 = arith.constant 0 : index
    %131 = vector.load %arg16[%c0_85, %c0_86] : memref<8x128xf32, #tpu.memory_space<vmem>>, vector<8x128xf32>
    tpu.vector_store %arg16[%c0_85, %c0_86], %130 {strides = array<i32>} : memref<8x128xf32, #tpu.memory_space<vmem>>, vector<8x128xf32>,
    return
  }
  func.func @transform_0(%arg0: i32) -> (i32, i32, i32) {
    %c0_i32 = arith.constant 0 : i32
    %c0_i32_0 = arith.constant 0 : i32
    %c0_i32_1 = arith.constant 0 : i32
    return %arg0, %c0_i32, %c0_i32_0 : i32, i32, i32
  }
  func.func @transform_1(%arg0: i32) -> (i32, i32, i32) {
    %c0_i32 = arith.constant 0 : i32
    %c0_i32_0 = arith.constant 0 : i32
    %c0_i32_1 = arith.constant 0 : i32
    %c0_i32_2 = arith.constant 0 : i32
    return %c0_i32, %c0_i32_0, %c0_i32_1 : i32, i32, i32
  }
  func.func @transform_2(%arg0: i32) -> (i32, i32) {
    %c0_i32 = arith.constant 0 : i32
    %c0_i32_0 = arith.constant 0 : i32
    %c0_i32_1 = arith.constant 0 : i32
    return %c0_i32, %c0_i32_0 : i32, i32
  }
  func.func @transform_3(%arg0: i32) -> (i32, i32) {
    %c0_i32 = arith.constant 0 : i32
    %c0_i32_0 = arith.constant 0 : i32
    %c0_i32_1 = arith.constant 0 : i32
    return %c0_i32, %c0_i32_0 : i32, i32
  }
  func.func @transform_4(%arg0: i32) -> (i32, i32) {
    %c0_i32 = arith.constant 0 : i32
    %c0_i32_0 = arith.constant 0 : i32
    %c0_i32_1 = arith.constant 0 : i32
    return %c0_i32, %c0_i32_0 : i32, i32
  }
  func.func @transform_5(%arg0: i32) -> (i32, i32, i32) {
    %c0_i32 = arith.constant 0 : i32
    %c0_i32_0 = arith.constant 0 : i32
    %c0_i32_1 = arith.constant 0 : i32
    %c0_i32_2 = arith.constant 0 : i32
    return %c0_i32, %c0_i32_0, %c0_i32_1 : i32, i32, i32
  }
  func.func @transform_6(%arg0: i32) -> (i32, i32) {
    %c0_i32 = arith.constant 0 : i32
    %c0_i32_0 = arith.constant 0 : i32
    %c0_i32_1 = arith.constant 0 : i32
    return %c0_i32, %c0_i32_0 : i32, i32
  }
  func.func @transform_7(%arg0: i32) -> (i32, i32) {
    %c0_i32 = arith.constant 0 : i32
    %c0_i32_0 = arith.constant 0 : i32
    %c0_i32_1 = arith.constant 0 : i32
    return %c0_i32, %c0_i32_0 : i32, i32
  }
  func.func @transform_8(%arg0: i32) -> (i32, i32) {
    %c0_i32 = arith.constant 0 : i32
    %c0_i32_0 = arith.constant 0 : i32
    %c0_i32_1 = arith.constant 0 : i32
    return %c0_i32, %c0_i32_0 : i32, i32
  }
  func.func @transform_9(%arg0: i32) -> (i32, i32, i32) {
    %c0_i32 = arith.constant 0 : i32
    %c0_i32_0 = arith.constant 0 : i32
    %c0_i32_1 = arith.constant 0 : i32
    %c0_i32_2 = arith.constant 0 : i32
    return %c0_i32, %c0_i32_0, %c0_i32_1 : i32, i32, i32
  }
  func.func @transform_10(%arg0: i32) -> (i32, i32) {
    %c0_i32 = arith.constant 0 : i32
    %c0_i32_0 = arith.constant 0 : i32
    %c0_i32_1 = arith.constant 0 : i32
    return %c0_i32, %c0_i32_0 : i32, i32
  }
  func.func @transform_11(%arg0: i32) -> (i32, i32) {
    %c0_i32 = arith.constant 0 : i32
    %c0_i32_0 = arith.constant 0 : i32
    %c0_i32_1 = arith.constant 0 : i32
    return %c0_i32, %c0_i32_0 : i32, i32
  }
  func.func @transform_12(%arg0: i32) -> (i32, i32) {
    %c0_i32 = arith.constant 0 : i32
    %c0_i32_0 = arith.constant 0 : i32
    %c0_i32_1 = arith.constant 0 : i32
    return %c0_i32, %c0_i32_0 : i32, i32
  }
  func.func @transform_13(%arg0: i32) -> (i32, i32) {
    %c0_i32 = arith.constant 0 : i32
    %c0_i32_0 = arith.constant 0 : i32
    %c0_i32_1 = arith.constant 0 : i32
    return %c0_i32, %c0_i32_0 : i32, i32
  }
  func.func @transform_14(%arg0: i32) -> (i32, i32) {
    %c0_i32 = arith.constant 0 : i32
    %c0_i32_0 = arith.constant 0 : i32
    %c0_i32_1 = arith.constant 0 : i32
    return %c0_i32, %c0_i32_0 : i32, i32
  }
  func.func @transform_15(%arg0: i32) -> (i32, i32) {
    %c0_i32 = arith.constant 0 : i32
    %c0_i32_0 = arith.constant 0 : i32
    return %arg0, %c0_i32 : i32, i32
  }
}

</mosaic_0001>

<llo_original>
// kernel: net_forward.1
$region0: #{net_forward.1}
  #allocation0 [shape = 'u32[]', space=smem, size = 0x4, offset = 0x4, fixed_abs, tag = 'smem constant byte address 0x4 - core index']
  #allocation1 [shape = 'u32[144,128]{1,0:T(1,128)}', space=vmem, size = 0x12000, scoped, tag = 'internal scratch']
  %s0 = inlined_call_operand.vmem [shape: f32[8,28,28], index: 0, kind: input, shape index: {}]
  %s1 = inlined_call_operand.vmem [shape: f32[5,28,144], index: 1, kind: input, shape index: {}]
  %s2 = inlined_call_operand.vmem [shape: f32[1,144], index: 2, kind: input, shape index: {}]
  %s3 = inlined_call_operand.hbm [shape: f32[144,72], index: 3, kind: input, shape index: {}]
  %s4 = inlined_call_operand.hbm [shape: f32[144,72], index: 4, kind: input, shape index: {}]
  %s5 = inlined_call_operand.vmem [shape: f32[5,72,128], index: 5, kind: input, shape index: {}]
  %s6 = inlined_call_operand.vmem [shape: f32[1,128], index: 6, kind: input, shape index: {}]
  %s7 = inlined_call_operand.vmem [shape: f32[128,64], index: 7, kind: input, shape index: {}]
  %s8 = inlined_call_operand.vmem [shape: f32[128,64], index: 8, kind: input, shape index: {}]
  %s9 = inlined_call_operand.vmem [shape: f32[4,64,128], index: 9, kind: input, shape index: {}]
  %s10 = inlined_call_operand.vmem [shape: f32[1,128], index: 10, kind: input, shape index: {}]
  %s11 = inlined_call_operand.hbm [shape: f32[128,128], index: 11, kind: input, shape index: {}]
  %s12 = inlined_call_operand.vmem [shape: f32[1,128], index: 12, kind: input, shape index: {}]
  %s13 = inlined_call_operand.hbm [shape: f32[128,128], index: 13, kind: input, shape index: {}]
  %s14 = inlined_call_operand.vmem [shape: f32[1,128], index: 14, kind: input, shape index: {}]
  %s15 = inlined_call_operand.vmem [shape: f32[8,128], index: 15, kind: output, shape index: {}]
  %s16 = sld [smem:[#allocation0]]
  $region86: #{net_forward.1} parent=0
    _
  %s18 = ssub.s32 1, %s16
  %s19 = scalar_select 0, %s18, %s16
  $region1: #{net_forward.1} parent=0
    #allocation2 [shape = 'u8[73728]{0}', space=vmem, size = 0x12000, scoped, tag = 'input window, operand 3, single buffered']
    #allocation3 [shape = 's32[1]{0}', space=sflag, size = 0x4, scoped, tag = 'scoped memory for net_forward.1']
    #allocation4 [shape = 'u8[73728]{0}', space=vmem, size = 0x12000, scoped, tag = 'input window, operand 4, single buffered']
    #allocation5 [shape = 's32[1]{0}', space=sflag, size = 0x4, scoped, tag = 'scoped memory for net_forward.1']
    #allocation6 [shape = 'u8[65536]{0}', space=vmem, size = 0x10000, scoped, tag = 'input window, operand 11, single buffered']
    #allocation7 [shape = 'u8[65536]{0}', space=vmem, size = 0x10000, scoped, tag = 'input window, operand 13, single buffered']
    #allocation8 [shape = 's32[1]{0}', space=sflag, size = 0x4, scoped, tag = 'scoped memory for net_forward.1']
    %20 = vsyncpa [#allocation3], 0
    %21 = vsyncpa [#allocation5], 0
    %22 = vsyncpa [#allocation8], 0
    // Predicated region
    $region2: #{net_forward.1} parent=1 // pred_check
      _
    $region3: #{net_forward.1} parent=1 // pred_check_branch
      %24 = sbr.rel (0) target = $region5
    $region4: #{net_forward.1} parent=1 // pred_region
      _
    $region5: #{net_forward.1} parent=1 // pred_fallthru
      _
    // Predicated region
    $region6: #{net_forward.1} parent=1 // pred_check
      _
    $region7: #{net_forward.1} parent=1 // pred_check_branch
      %26 = sbr.rel (0) target = $region9
    $region8: #{net_forward.1} parent=1 // pred_region
      _
    $region9: #{net_forward.1} parent=1 // pred_fallthru
      _
    // Predicated region
    $region10: #{net_forward.1} parent=1 // pred_check
      _
    $region11: #{net_forward.1} parent=1 // pred_check_branch
      %28 = sbr.rel (0) target = $region13
    $region12: #{net_forward.1} parent=1 // pred_region
      _
    $region13: #{net_forward.1} parent=1 // pred_fallthru
      _
    // Predicated region
    $region14: #{net_forward.1} parent=1 // pred_check
      _
    $region15: #{net_forward.1} parent=1 // pred_check_branch
      %30 = sbr.rel (0) target = $region17
    $region16: #{net_forward.1} parent=1 // pred_region
      %s32 = ssub.s32 2304, 2304
      %33 = vsyncadd [#allocation3], %s32
      %s34 = sshll.u32 [#allocation2], 4
      %s35 = int_to_ptr.vmem [resolvable:$true] %s34
      %40 = dma.hbm_to_vmem [thread:$0]  %s3, 2304, %s35, [#allocation3], 128, 128, 8
    $region17: #{net_forward.1} parent=1 // pred_fallthru
      _
    // Predicated region
    $region18: #{net_forward.1} parent=1 // pred_check
      _
    $region19: #{net_forward.1} parent=1 // pred_check_branch
      %42 = sbr.rel (0) target = $region21
    $region20: #{net_forward.1} parent=1 // pred_region
      %s44 = ssub.s32 2304, 2304
      %45 = vsyncadd [#allocation5], %s44
      %s46 = sshll.u32 [#allocation4], 4
      %s47 = int_to_ptr.vmem [resolvable:$true] %s46
      %52 = dma.hbm_to_vmem [thread:$0]  %s4, 2304, %s47, [#allocation5], 128, 128, 8
    $region21: #{net_forward.1} parent=1 // pred_fallthru
      _
    // Predicated region
    $region22: #{net_forward.1} parent=1 // pred_check
      _
    $region23: #{net_forward.1} parent=1 // pred_check_branch
      %54 = sbr.rel (0) target = $region25
    $region24: #{net_forward.1} parent=1 // pred_region
      _
    $region25: #{net_forward.1} parent=1 // pred_fallthru
      _
    // Predicated region
    $region26: #{net_forward.1} parent=1 // pred_check
      _
    $region27: #{net_forward.1} parent=1 // pred_check_branch
      %56 = sbr.rel (0) target = $region29
    $region28: #{net_forward.1} parent=1 // pred_region
      _
    $region29: #{net_forward.1} parent=1 // pred_fallthru
      _
    // Predicated region
    $region30: #{net_forward.1} parent=1 // pred_check
      _
    $region31: #{net_forward.1} parent=1 // pred_check_branch
      %58 = sbr.rel (0) target = $region33
    $region32: #{net_forward.1} parent=1 // pred_region
      _
    $region33: #{net_forward.1} parent=1 // pred_fallthru
      _
    // Predicated region
    $region34: #{net_forward.1} parent=1 // pred_check
      _
    $region35: #{net_forward.1} parent=1 // pred_check_branch
      %60 = sbr.rel (0) target = $region37
    $region36: #{net_forward.1} parent=1 // pred_region
      _
    $region37: #{net_forward.1} parent=1 // pred_fallthru
      _
    // Predicated region
    $region38: #{net_forward.1} parent=1 // pred_check
      _
    $region39: #{net_forward.1} parent=1 // pred_check_branch
      %62 = sbr.rel (0) target = $region41
    $region40: #{net_forward.1} parent=1 // pred_region
      _
    $region41: #{net_forward.1} parent=1 // pred_fallthru
      _
    // Predicated region
    $region42: #{net_forward.1} parent=1 // pred_check
      _
    $region43: #{net_forward.1} parent=1 // pred_check_branch
      %64 = sbr.rel (0) target = $region45
    $region44: #{net_forward.1} parent=1 // pred_region
      _
    $region45: #{net_forward.1} parent=1 // pred_fallthru
      _
    // Predicated region
    $region46: #{net_forward.1} parent=1 // pred_check
      _
    $region47: #{net_forward.1} parent=1 // pred_check_branch
      %66 = sbr.rel (0) target = $region49
    $region48: #{net_forward.1} parent=1 // pred_region
      %s68 = ssub.s32 2048, 2048
      %69 = vsyncadd [#allocation5], %s68
      %s70 = sshll.u32 [#allocation6], 4
      %s71 = int_to_ptr.vmem [resolvable:$true] %s70
      %76 = dma.hbm_to_vmem [thread:$0]  %s11, 2048, %s71, [#allocation5], 128, 128, 8
    $region49: #{net_forward.1} parent=1 // pred_fallthru
      _
    // Predicated region
    $region50: #{net_forward.1} parent=1 // pred_check
      _
    $region51: #{net_forward.1} parent=1 // pred_check_branch
      %78 = sbr.rel (0) target = $region53
    $region52: #{net_forward.1} parent=1 // pred_region
      _
    $region53: #{net_forward.1} parent=1 // pred_fallthru
      _
    // Predicated region
    $region54: #{net_forward.1} parent=1 // pred_check
      _
    $region55: #{net_forward.1} parent=1 // pred_check_branch
      %80 = sbr.rel (0) target = $region57
    $region56: #{net_forward.1} parent=1 // pred_region
      %s82 = ssub.s32 2048, 2048
      %83 = vsyncadd [#allocation8], %s82
      %s84 = sshll.u32 [#allocation7], 4
      %s85 = int_to_ptr.vmem [resolvable:$true] %s84
      %90 = dma.hbm_to_vmem [thread:$0]  %s13, 2048, %s85, [#allocation8], 128, 128, 8
    $region57: #{net_forward.1} parent=1 // pred_fallthru
      _
    // Predicated region
    $region58: #{net_forward.1} parent=1 // pred_check
      _
    $region59: #{net_forward.1} parent=1 // pred_check_branch
      %92 = sbr.rel (0) target = $region61
    $region60: #{net_forward.1} parent=1 // pred_region
      _
    $region61: #{net_forward.1} parent=1 // pred_fallthru
      _
    // Predicated region
    $region62: #{net_forward.1} parent=1 // pred_check
      _
    $region63: #{net_forward.1} parent=1 // pred_check_branch
      %94 = sbr.rel (0) target = $region65
    $region64: #{net_forward.1} parent=1 // pred_region
      %95 = dma.done [#allocation3], 2304
    $region65: #{net_forward.1} parent=1 // pred_fallthru
      _
    // Predicated region
    $region66: #{net_forward.1} parent=1 // pred_check
      _
    $region67: #{net_forward.1} parent=1 // pred_check_branch
      %97 = sbr.rel (0) target = $region69
    $region68: #{net_forward.1} parent=1 // pred_region
      %98 = dma.done [#allocation5], 2304
    $region69: #{net_forward.1} parent=1 // pred_fallthru
      _
    // Predicated region
    $region70: #{net_forward.1} parent=1 // pred_check
      _
    $region71: #{net_forward.1} parent=1 // pred_check_branch
      %100 = sbr.rel (0) target = $region73
    $region72: #{net_forward.1} parent=1 // pred_region
      %101 = dma.done [#allocation5], 2048
    $region73: #{net_forward.1} parent=1 // pred_fallthru
      _
    // Predicated region
    $region74: #{net_forward.1} parent=1 // pred_check
      _
    $region75: #{net_forward.1} parent=1 // pred_check_branch
      %103 = sbr.rel (0) target = $region77
    $region76: #{net_forward.1} parent=1 // pred_region
      %104 = dma.done [#allocation8], 2048
    $region77: #{net_forward.1} parent=1 // pred_fallthru
      _
    %v105 = vld [vmem:[%s0] sm:$0xff]
    %v106 = vld [vmem:[%s0 + $0x8] sm:$0xff]
    %v107 = vld [vmem:[%s0 + $0x10] sm:$0xff]
    %v108 = vld [vmem:[%s0 + $0x18] sm:$0xf]
    %v109 = vld [vmem:[%s0 + $0x20] sm:$0xff]
    %v110 = vld [vmem:[%s0 + $0x28] sm:$0xff]
    %v111 = vld [vmem:[%s0 + $0x30] sm:$0xff]
    %v112 = vld [vmem:[%s0 + $0x38] sm:$0xf]
    %v113 = vld [vmem:[%s0 + $0x40] sm:$0xff]
    %v114 = vld [vmem:[%s0 + $0x48] sm:$0xff]
    %v115 = vld [vmem:[%s0 + $0x50] sm:$0xff]
    %v116 = vld [vmem:[%s0 + $0x58] sm:$0xf]
    %v117 = vld [vmem:[%s0 + $0x60] sm:$0xff]
    %v118 = vld [vmem:[%s0 + $0x68] sm:$0xff]
    %v119 = vld [vmem:[%s0 + $0x70] sm:$0xff]
    %v120 = vld [vmem:[%s0 + $0x78] sm:$0xf]
    %v121 = vld [vmem:[%s0 + $0x80] sm:$0xff]
    %v122 = vld [vmem:[%s0 + $0x88] sm:$0xff]
    %v123 = vld [vmem:[%s0 + $0x90] sm:$0xff]
    %v124 = vld [vmem:[%s0 + $0x98] sm:$0xf]
    %v125 = vld [vmem:[%s0 + $0xa0] sm:$0xff]
    %v126 = vld [vmem:[%s0 + $0xa8] sm:$0xff]
    %v127 = vld [vmem:[%s0 + $0xb0] sm:$0xff]
    %v128 = vld [vmem:[%s0 + $0xb8] sm:$0xf]
    %v129 = vld [vmem:[%s0 + $0xc0] sm:$0xff]
    %v130 = vld [vmem:[%s0 + $0xc8] sm:$0xff]
    %v131 = vld [vmem:[%s0 + $0xd0] sm:$0xff]
    %v132 = vld [vmem:[%s0 + $0xd8] sm:$0xf]
    %v133 = vld [vmem:[%s0 + $0xe0] sm:$0xff]
    %v134 = vld [vmem:[%s0 + $0xe8] sm:$0xff]
    %v135 = vld [vmem:[%s0 + $0xf0] sm:$0xff]
    %v136 = vld [vmem:[%s0 + $0xf8] sm:$0xf]
    %v137 = vld [vmem:[%s1] sm:$0xff]
    %v138 = vld [vmem:[%s1 + $0x8] sm:$0xff]
    %v139 = vld [vmem:[%s1 + $0x10] sm:$0xff]
    %v140 = vld [vmem:[%s1 + $0x18] sm:$0xff]
    %v141 = vld [vmem:[%s1 + $0x20] sm:$0xff]
    %v142 = vld [vmem:[%s1 + $0x28] sm:$0xff]
    %v143 = vld [vmem:[%s1 + $0x30] sm:$0xf]
    %v144 = vld [vmem:[%s1 + $0x38] sm:$0xf]
    %vm177 = vcmask 1046528
    %v178 = vrot.slane %v105, 1
    %v179 = vrot.slane %v106, 1
    %v180 = vsel %vm177, %v178, %v179
    %v181 = vrot.slane %v107, 1
    %v182 = vsel %vm177, %v179, %v181
    %v183 = vrot.slane %v108, 1
    %v184 = vsel %vm177, %v181, %v183
    %v185 = vrot.slane %v109, 1
    %v186 = vrot.slane %v110, 1
    %v187 = vsel %vm177, %v185, %v186
    %v188 = vrot.slane %v111, 1
    %v189 = vsel %vm177, %v186, %v188
    %v190 = vrot.slane %v112, 1
    %v191 = vsel %vm177, %v188, %v190
    %v192 = vrot.slane %v113, 1
    %v193 = vrot.slane %v114, 1
    %v194 = vsel %vm177, %v192, %v193
    %v195 = vrot.slane %v115, 1
    %v196 = vsel %vm177, %v193, %v195
    %v197 = vrot.slane %v116, 1
    %v198 = vsel %vm177, %v195, %v197
    %v199 = vrot.slane %v117, 1
    %v200 = vrot.slane %v118, 1
    %v201 = vsel %vm177, %v199, %v200
    %v202 = vrot.slane %v119, 1
    %v203 = vsel %vm177, %v200, %v202
    %v204 = vrot.slane %v120, 1
    %v205 = vsel %vm177, %v202, %v204
    %v206 = vrot.slane %v121, 1
    %v207 = vrot.slane %v122, 1
    %v208 = vsel %vm177, %v206, %v207
    %v209 = vrot.slane %v123, 1
    %v210 = vsel %vm177, %v207, %v209
    %v211 = vrot.slane %v124, 1
    %v212 = vsel %vm177, %v209, %v211
    %v213 = vrot.slane %v125, 1
    %v214 = vrot.slane %v126, 1
    %v215 = vsel %vm177, %v213, %v214
    %v216 = vrot.slane %v127, 1
    %v217 = vsel %vm177, %v214, %v216
    %v218 = vrot.slane %v128, 1
    %v219 = vsel %vm177, %v216, %v218
    %v220 = vrot.slane %v129, 1
    %v221 = vrot.slane %v130, 1
    %v222 = vsel %vm177, %v220, %v221
    %v223 = vrot.slane %v131, 1
    %v224 = vsel %vm177, %v221, %v223
    %v225 = vrot.slane %v132, 1
    %v226 = vsel %vm177, %v223, %v225
    %v227 = vrot.slane %v133, 1
    %v228 = vrot.slane %v134, 1
    %v229 = vsel %vm177, %v227, %v228
    %v230 = vrot.slane %v135, 1
    %v231 = vsel %vm177, %v228, %v230
    %v232 = vrot.slane %v136, 1
    %v233 = vsel %vm177, %v230, %v232
    %s234 = scalar_lea.vmem %s1, 64
    %v235 = vld [vmem:[%s234] sm:$0xff]
    %v236 = vld [vmem:[%s234 + $0x8] sm:$0xff]
    %v237 = vld [vmem:[%s234 + $0x10] sm:$0xff]
    %v238 = vld [vmem:[%s234 + $0x18] sm:$0xff]
    %v239 = vld [vmem:[%s234 + $0x20] sm:$0xff]
    %v240 = vld [vmem:[%s234 + $0x28] sm:$0xff]
    %v241 = vld [vmem:[%s234 + $0x30] sm:$0xf]
    %v242 = vld [vmem:[%s234 + $0x38] sm:$0xf]
    %vm243 = vcmask 228352
    %v244 = vsel %vm243, %v180, 0
    %v246 = vsel %vm243, %v182, 0
    %v248 = vsel %vm243, %v184, 0
    %v250 = vsel %vm243, %v187, 0
    %v252 = vsel %vm243, %v189, 0
    %v254 = vsel %vm243, %v191, 0
    %v256 = vsel %vm243, %v194, 0
    %v258 = vsel %vm243, %v196, 0
    %v260 = vsel %vm243, %v198, 0
    %v262 = vsel %vm243, %v201, 0
    %v264 = vsel %vm243, %v203, 0
    %v266 = vsel %vm243, %v205, 0
    %v268 = vsel %vm243, %v208, 0
    %v270 = vsel %vm243, %v210, 0
    %v272 = vsel %vm243, %v212, 0
    %v274 = vsel %vm243, %v215, 0
    %v276 = vsel %vm243, %v217, 0
    %v278 = vsel %vm243, %v219, 0
    %v280 = vsel %vm243, %v222, 0
    %v282 = vsel %vm243, %v224, 0
    %v284 = vsel %vm243, %v226, 0
    %v286 = vsel %vm243, %v229, 0
    %v288 = vsel %vm243, %v231, 0
    %v290 = vsel %vm243, %v233, 0
    %vm292 = vcmask 1043456
    %v294 = vsel %vm292, %v241, 0
    %v297 = vsel %vm292, %v242, 0
    %299 = vmatprep.subr.mxu0 0.0
    %300 = vmatpush1.msra.mxu0 0.0
    %301 = vmatprep.subr.mxu0 0.0
    %302 = vmatpush1.msra.mxu0 0.0
    %303 = vmatprep.subr.mxu0 0.0
    %304 = vmatpush1.msra.mxu0 0.0
    %305 = vmatprep.subr.mxu0 0.0
    %306 = vmatpush1.msra.mxu0 0.0
    %307 = vmatprep.subr.mxu0 0.0
    %308 = vmatpush1.msra.mxu0 0.0
    %309 = vmatprep.subr.mxu0 0.0
    %310 = vmatpush1.msra.mxu0 0.0
    %311 = vmatprep.subr.mxu0 0.0
    %312 = vmatpush1.msra.mxu0 0.0
    %313 = vmatprep.subr.mxu0 0.0
    %314 = vmatpush1.msra.mxu0 0.0
    %315 = vmatprep.subr.mxu0 0.0
    %316 = vmatpush1.msra.mxu0 0.0
    %317 = vmatprep.subr.mxu0 0.0
    %318 = vmatpush1.msra.mxu0 0.0
    %319 = vmatprep.subr.mxu0 0.0
    %320 = vmatpush1.msra.mxu0 0.0
    %321 = vmatprep.subr.mxu0 0.0
    %322 = vmatpush1.msra.mxu0 0.0
    %323 = vmatprep.subr.mxu0 %v297
    %324 = vmatpush1.msra.mxu0 %v294
    %325 = vmatprep.subr.mxu0 %v240
    %326 = vmatpush1.msra.mxu0 %v239
    %327 = vmatprep.subr.mxu0 %v238
    %328 = vmatpush1.msra.mxu0 %v237
    %329 = vmatprep.subr.mxu0 %v236
    %330 = vmatpush1.msra.mxu0 %v235
    %331 = vmatprep.subr.mxu0 0.0
    %332 = vmatpush2.msra.mxu0 0.0
    %333 = vmatprep.subr.mxu0 0.0
    %334 = vmatpush2.msra.mxu0 0.0
    %335 = vmatprep.subr.mxu0 0.0
    %336 = vmatpush2.msra.mxu0 0.0
    %337 = vmatprep.subr.mxu0 0.0
    %338 = vmatpush2.msra.mxu0 0.0
    %339 = vmatprep.subr.mxu0 0.0
    %340 = vmatpush2.msra.mxu0 0.0
    %341 = vmatprep.subr.mxu0 0.0
    %342 = vmatpush2.msra.mxu0 0.0
    %343 = vmatprep.subr.mxu0 0.0
    %344 = vmatpush2.msra.mxu0 0.0
    %345 = vmatprep.subr.mxu0 0.0
    %346 = vmatpush2.msra.mxu0 0.0
    %347 = vmatprep.subr.mxu0 0.0
    %348 = vmatpush2.msra.mxu0 0.0
    %349 = vmatprep.subr.mxu0 0.0
    %350 = vmatpush2.msra.mxu0 0.0
    %351 = vmatprep.subr.mxu0 0.0
    %352 = vmatpush2.msra.mxu0 0.0
    %353 = vmatprep.subr.mxu0 0.0
    %354 = vmatpush2.msra.mxu0 0.0
    %355 = vmatprep.subr.mxu0 0.0
    %356 = vmatpush2.msra.mxu0 0.0
    %357 = vmatprep.subr.mxu0 0.0
    %358 = vmatpush2.msra.mxu0 0.0
    %359 = vmatprep.subr.mxu0 0.0
    %360 = vmatpush2.msra.mxu0 0.0
    %361 = vmatprep.subr.mxu0 0.0
    %362 = vmatpush2.msra.mxu0 0.0
    %363 = vmatprep.mubr.f32.mxu0 0.0
    %364 = vmatmul.mubr.f32.gmra.mxu0 %v244
    %v365 = vpop.f32.mrf.mxu0
    %v366 = vadd.f32 0.0, %v365
    %v367 = vpop.f32.mrf.mxu0
    %v368 = vadd.f32 0.0, %v367
    %369 = vmatprep.mubr.f32.mxu0 0.0
    %370 = vmatmul.mubr.f32.gmra.mxu0 %v246
    %v371 = vpop.f32.mrf.mxu0
    %v372 = vadd.f32 0.0, %v371
    %v373 = vpop.f32.mrf.mxu0
    %v374 = vadd.f32 0.0, %v373
    %375 = vmatprep.mubr.f32.mxu0 0.0
    %376 = vmatmul.mubr.f32.gmra.mxu0 %v248
    %v377 = vpop.f32.mrf.mxu0
    %v378 = vadd.f32 0.0, %v377
    %v379 = vpop.f32.mrf.mxu0
    %v380 = vadd.f32 0.0, %v379
    %381 = vmatprep.mubr.f32.mxu0 0.0
    %382 = vmatmul.mubr.f32.gmra.mxu0 %v250
    %v383 = vpop.f32.mrf.mxu0
    %v384 = vadd.f32 0.0, %v383
    %v385 = vpop.f32.mrf.mxu0
    %v386 = vadd.f32 0.0, %v385
    %387 = vmatprep.mubr.f32.mxu0 0.0
    %388 = vmatmul.mubr.f32.gmra.mxu0 %v252
    %v389 = vpop.f32.mrf.mxu0
    %v390 = vadd.f32 0.0, %v389
    %v391 = vpop.f32.mrf.mxu0
    %v392 = vadd.f32 0.0, %v391
    %393 = vmatprep.mubr.f32.mxu0 0.0
    %394 = vmatmul.mubr.f32.gmra.mxu0 %v254
    %v395 = vpop.f32.mrf.mxu0
    %v396 = vadd.f32 0.0, %v395
    %v397 = vpop.f32.mrf.mxu0
    %v398 = vadd.f32 0.0, %v397
    %399 = vmatprep.mubr.f32.mxu0 0.0
    %400 = vmatmul.mubr.f32.gmra.mxu0 %v256
    %v401 = vpop.f32.mrf.mxu0
    %v402 = vadd.f32 0.0, %v401
    %v403 = vpop.f32.mrf.mxu0
    %v404 = vadd.f32 0.0, %v403
    %405 = vmatprep.mubr.f32.mxu0 0.0
    %406 = vmatmul.mubr.f32.gmra.mxu0 %v258
    %v407 = vpop.f32.mrf.mxu0
    %v408 = vadd.f32 0.0, %v407
    %v409 = vpop.f32.mrf.mxu0
    %v410 = vadd.f32 0.0, %v409
    %411 = vmatprep.mubr.f32.mxu0 0.0
    %412 = vmatmul.mubr.f32.gmra.mxu0 %v260
    %v413 = vpop.f32.mrf.mxu0
    %v414 = vadd.f32 0.0, %v413
    %v415 = vpop.f32.mrf.mxu0
    %v416 = vadd.f32 0.0, %v415
    %417 = vmatprep.mubr.f32.mxu0 0.0
    %418 = vmatmul.mubr.f32.gmra.mxu0 %v262
    %v419 = vpop.f32.mrf.mxu0
    %v420 = vadd.f32 0.0, %v419
    %v421 = vpop.f32.mrf.mxu0
    %v422 = vadd.f32 0.0, %v421
    %423 = vmatprep.mubr.f32.mxu0 0.0
    %424 = vmatmul.mubr.f32.gmra.mxu0 %v264
    %v425 = vpop.f32.mrf.mxu0
    %v426 = vadd.f32 0.0, %v425
    %v427 = vpop.f32.mrf.mxu0
    %v428 = vadd.f32 0.0, %v427
    %429 = vmatprep.mubr.f32.mxu0 0.0
    %430 = vmatmul.mubr.f32.gmra.mxu0 %v266
    %v431 = vpop.f32.mrf.mxu0
    %v432 = vadd.f32 0.0, %v431
    %v433 = vpop.f32.mrf.mxu0
    %v434 = vadd.f32 0.0, %v433
    %435 = vmatprep.mubr.f32.mxu0 0.0
    %436 = vmatmul.mubr.f32.gmra.mxu0 %v268
    %v437 = vpop.f32.mrf.mxu0
    %v438 = vadd.f32 0.0, %v437
    %v439 = vpop.f32.mrf.mxu0
    %v440 = vadd.f32 0.0, %v439
    %441 = vmatprep.mubr.f32.mxu0 0.0
    %442 = vmatmul.mubr.f32.gmra.mxu0 %v270
    %v443 = vpop.f32.mrf.mxu0
    %v444 = vadd.f32 0.0, %v443
    %v445 = vpop.f32.mrf.mxu0
    %v446 = vadd.f32 0.0, %v445
    %447 = vmatprep.mubr.f32.mxu0 0.0
    %448 = vmatmul.mubr.f32.gmra.mxu0 %v272
    %v449 = vpop.f32.mrf.mxu0
    %v450 = vadd.f32 0.0, %v449
    %v451 = vpop.f32.mrf.mxu0
    %v452 = vadd.f32 0.0, %v451
    %453 = vmatprep.mubr.f32.mxu0 0.0
    %454 = vmatmul.mubr.f32.gmra.mxu0 %v274
    %v455 = vpop.f32.mrf.mxu0
    %v456 = vadd.f32 0.0, %v455
    %v457 = vpop.f32.mrf.mxu0
    %v458 = vadd.f32 0.0, %v457
    %459 = vmatprep.mubr.f32.mxu0 0.0
    %460 = vmatmul.mubr.f32.gmra.mxu0 %v276
    %v461 = vpop.f32.mrf.mxu0
    %v462 = vadd.f32 0.0, %v461
    %v463 = vpop.f32.mrf.mxu0
    %v464 = vadd.f32 0.0, %v463
    %465 = vmatprep.mubr.f32.mxu0 0.0
    %466 = vmatmul.mubr.f32.gmra.mxu0 %v278
    %v467 = vpop.f32.mrf.mxu0
    %v468 = vadd.f32 0.0, %v467
    %v469 = vpop.f32.mrf.mxu0
    %v470 = vadd.f32 0.0, %v469
    %471 = vmatprep.mubr.f32.mxu0 0.0
    %472 = vmatmul.mubr.f32.gmra.mxu0 %v280
    %v473 = vpop.f32.mrf.mxu0
    %v474 = vadd.f32 0.0, %v473
    %v475 = vpop.f32.mrf.mxu0
    %v476 = vadd.f32 0.0, %v475
    %477 = vmatprep.mubr.f32.mxu0 0.0
    %478 = vmatmul.mubr.f32.gmra.mxu0 %v282
    %v479 = vpop.f32.mrf.mxu0
    %v480 = vadd.f32 0.0, %v479
    %v481 = vpop.f32.mrf.mxu0
    %v482 = vadd.f32 0.0, %v481
    %483 = vmatprep.mubr.f32.mxu0 0.0
    %484 = vmatmul.mubr.f32.gmra.mxu0 %v284
    %v485 = vpop.f32.mrf.mxu0
    %v486 = vadd.f32 0.0, %v485
    %v487 = vpop.f32.mrf.mxu0
    %v488 = vadd.f32 0.0, %v487
    %489 = vmatprep.mubr.f32.mxu0 0.0
    %490 = vmatmul.mubr.f32.gmra.mxu0 %v286
    %v491 = vpop.f32.mrf.mxu0
    %v492 = vadd.f32 0.0, %v491
    %v493 = vpop.f32.mrf.mxu0
    %v494 = vadd.f32 0.0, %v493
    %495 = vmatprep.mubr.f32.mxu0 0.0
    %496 = vmatmul.mubr.f32.gmra.mxu0 %v288
    %v497 = vpop.f32.mrf.mxu0
    %v498 = vadd.f32 0.0, %v497
    %v499 = vpop.f32.mrf.mxu0
    %v500 = vadd.f32 0.0, %v499
    %501 = vmatprep.mubr.f32.mxu0 0.0
    %502 = vmatmul.mubr.f32.gmra.mxu0 %v290
    %v503 = vpop.f32.mrf.mxu0
    %v504 = vadd.f32 0.0, %v503
    %v505 = vpop.f32.mrf.mxu0
    %v506 = vadd.f32 0.0, %v505
    %507 = vdwg.mxu0
    %v508 = vsel %vm243, %v105, 0
    %v510 = vsel %vm243, %v106, 0
    %v512 = vsel %vm243, %v107, 0
    %v514 = vsel %vm243, %v109, 0
    %v516 = vsel %vm243, %v110, 0
    %v518 = vsel %vm243, %v111, 0
    %v520 = vsel %vm243, %v113, 0
    %v522 = vsel %vm243, %v114, 0
    %v524 = vsel %vm243, %v115, 0
    %v526 = vsel %vm243, %v117, 0
    %v528 = vsel %vm243, %v118, 0
    %v530 = vsel %vm243, %v119, 0
    %v532 = vsel %vm243, %v121, 0
    %v534 = vsel %vm243, %v122, 0
    %v536 = vsel %vm243, %v123, 0
    %v538 = vsel %vm243, %v125, 0
    %v540 = vsel %vm243, %v126, 0
    %v542 = vsel %vm243, %v127, 0
    %v544 = vsel %vm243, %v129, 0
    %v546 = vsel %vm243, %v130, 0
    %v548 = vsel %vm243, %v131, 0
    %v550 = vsel %vm243, %v133, 0
    %v552 = vsel %vm243, %v134, 0
    %v554 = vsel %vm243, %v135, 0
    %v557 = vsel %vm292, %v143, 0
    %v560 = vsel %vm292, %v144, 0
    %562 = vmatprep.subr.mxu0 0.0
    %563 = vmatpush1.msra.mxu0 0.0
    %564 = vmatprep.subr.mxu0 0.0
    %565 = vmatpush1.msra.mxu0 0.0
    %566 = vmatprep.subr.mxu0 0.0
    %567 = vmatpush1.msra.mxu0 0.0
    %568 = vmatprep.subr.mxu0 0.0
    %569 = vmatpush1.msra.mxu0 0.0
    %570 = vmatprep.subr.mxu0 0.0
    %571 = vmatpush1.msra.mxu0 0.0
    %572 = vmatprep.subr.mxu0 0.0
    %573 = vmatpush1.msra.mxu0 0.0
    %574 = vmatprep.subr.mxu0 0.0
    %575 = vmatpush1.msra.mxu0 0.0
    %576 = vmatprep.subr.mxu0 0.0
    %577 = vmatpush1.msra.mxu0 0.0
    %578 = vmatprep.subr.mxu0 0.0
    %579 = vmatpush1.msra.mxu0 0.0
    %580 = vmatprep.subr.mxu0 0.0
    %581 = vmatpush1.msra.mxu0 0.0
    %582 = vmatprep.subr.mxu0 0.0
    %583 = vmatpush1.msra.mxu0 0.0
    %584 = vmatprep.subr.mxu0 0.0
    %585 = vmatpush1.msra.mxu0 0.0
    %586 = vmatprep.subr.mxu0 %v560
    %587 = vmatpush1.msra.mxu0 %v557
    %588 = vmatprep.subr.mxu0 %v142
    %589 = vmatpush1.msra.mxu0 %v141
    %590 = vmatprep.subr.mxu0 %v140
    %591 = vmatpush1.msra.mxu0 %v139
    %592 = vmatprep.subr.mxu0 %v138
    %593 = vmatpush1.msra.mxu0 %v137
    %594 = vmatprep.subr.mxu0 0.0
    %595 = vmatpush2.msra.mxu0 0.0
    %596 = vmatprep.subr.mxu0 0.0
    %597 = vmatpush2.msra.mxu0 0.0
    %598 = vmatprep.subr.mxu0 0.0
    %599 = vmatpush2.msra.mxu0 0.0
    %600 = vmatprep.subr.mxu0 0.0
    %601 = vmatpush2.msra.mxu0 0.0
    %602 = vmatprep.subr.mxu0 0.0
    %603 = vmatpush2.msra.mxu0 0.0
    %604 = vmatprep.subr.mxu0 0.0
    %605 = vmatpush2.msra.mxu0 0.0
    %606 = vmatprep.subr.mxu0 0.0
    %607 = vmatpush2.msra.mxu0 0.0
    %608 = vmatprep.subr.mxu0 0.0
    %609 = vmatpush2.msra.mxu0 0.0
    %610 = vmatprep.subr.mxu0 0.0
    %611 = vmatpush2.msra.mxu0 0.0
    %612 = vmatprep.subr.mxu0 0.0
    %613 = vmatpush2.msra.mxu0 0.0
    %614 = vmatprep.subr.mxu0 0.0
    %615 = vmatpush2.msra.mxu0 0.0
    %616 = vmatprep.subr.mxu0 0.0
    %617 = vmatpush2.msra.mxu0 0.0
    %618 = vmatprep.subr.mxu0 0.0
    %619 = vmatpush2.msra.mxu0 0.0
    %620 = vmatprep.subr.mxu0 0.0
    %621 = vmatpush2.msra.mxu0 0.0
    %622 = vmatprep.subr.mxu0 0.0
    %623 = vmatpush2.msra.mxu0 0.0
    %624 = vmatprep.subr.mxu0 0.0
    %625 = vmatpush2.msra.mxu0 0.0
    %626 = vmatprep.mubr.f32.mxu0 0.0
    %627 = vmatmul.mubr.f32.gmra.mxu0 %v508
    %v628 = vpop.f32.mrf.mxu0
    %v629 = vadd.f32 %v366, %v628
    %v630 = vpop.f32.mrf.mxu0
    %v631 = vadd.f32 %v368, %v630
    %632 = vmatprep.mubr.f32.mxu0 0.0
    %633 = vmatmul.mubr.f32.gmra.mxu0 %v510
    %v634 = vpop.f32.mrf.mxu0
    %v635 = vadd.f32 %v372, %v634
    %v636 = vpop.f32.mrf.mxu0
    %v637 = vadd.f32 %v374, %v636
    %638 = vmatprep.mubr.f32.mxu0 0.0
    %639 = vmatmul.mubr.f32.gmra.mxu0 %v512
    %v640 = vpop.f32.mrf.mxu0
    %v641 = vadd.f32 %v378, %v640
    %v642 = vpop.f32.mrf.mxu0
    %v643 = vadd.f32 %v380, %v642
    %644 = vmatprep.mubr.f32.mxu0 0.0
    %645 = vmatmul.mubr.f32.gmra.mxu0 %v514
    %v646 = vpop.f32.mrf.mxu0
    %v647 = vadd.f32 %v384, %v646
    %v648 = vpop.f32.mrf.mxu0
    %v649 = vadd.f32 %v386, %v648
    %650 = vmatprep.mubr.f32.mxu0 0.0
    %651 = vmatmul.mubr.f32.gmra.mxu0 %v516
    %v652 = vpop.f32.mrf.mxu0
    %v653 = vadd.f32 %v390, %v652
    %v654 = vpop.f32.mrf.mxu0
    %v655 = vadd.f32 %v392, %v654
    %656 = vmatprep.mubr.f32.mxu0 0.0
    %657 = vmatmul.mubr.f32.gmra.mxu0 %v518
    %v658 = vpop.f32.mrf.mxu0
    %v659 = vadd.f32 %v396, %v658
    %v660 = vpop.f32.mrf.mxu0
    %v661 = vadd.f32 %v398, %v660
    %662 = vmatprep.mubr.f32.mxu0 0.0
    %663 = vmatmul.mubr.f32.gmra.mxu0 %v520
    %v664 = vpop.f32.mrf.mxu0
    %v665 = vadd.f32 %v402, %v664
    %v666 = vpop.f32.mrf.mxu0
    %v667 = vadd.f32 %v404, %v666
    %668 = vmatprep.mubr.f32.mxu0 0.0
    %669 = vmatmul.mubr.f32.gmra.mxu0 %v522
    %v670 = vpop.f32.mrf.mxu0
    %v671 = vadd.f32 %v408, %v670
    %v672 = vpop.f32.mrf.mxu0
    %v673 = vadd.f32 %v410, %v672
    %674 = vmatprep.mubr.f32.mxu0 0.0
    %675 = vmatmul.mubr.f32.gmra.mxu0 %v524
    %v676 = vpop.f32.mrf.mxu0
    %v677 = vadd.f32 %v414, %v676
    %v678 = vpop.f32.mrf.mxu0
    %v679 = vadd.f32 %v416, %v678
    %680 = vmatprep.mubr.f32.mxu0 0.0
    %681 = vmatmul.mubr.f32.gmra.mxu0 %v526
    %v682 = vpop.f32.mrf.mxu0
    %v683 = vadd.f32 %v420, %v682
    %v684 = vpop.f32.mrf.mxu0
    %v685 = vadd.f32 %v422, %v684
    %686 = vmatprep.mubr.f32.mxu0 0.0
    %687 = vmatmul.mubr.f32.gmra.mxu0 %v528
    %v688 = vpop.f32.mrf.mxu0
    %v689 = vadd.f32 %v426, %v688
    %v690 = vpop.f32.mrf.mxu0
    %v691 = vadd.f32 %v428, %v690
    %692 = vmatprep.mubr.f32.mxu0 0.0
    %693 = vmatmul.mubr.f32.gmra.mxu0 %v530
    %v694 = vpop.f32.mrf.mxu0
    %v695 = vadd.f32 %v432, %v694
    %v696 = vpop.f32.mrf.mxu0
    %v697 = vadd.f32 %v434, %v696
    %698 = vmatprep.mubr.f32.mxu0 0.0
    %699 = vmatmul.mubr.f32.gmra.mxu0 %v532
    %v700 = vpop.f32.mrf.mxu0
    %v701 = vadd.f32 %v438, %v700
    %v702 = vpop.f32.mrf.mxu0
    %v703 = vadd.f32 %v440, %v702
    %704 = vmatprep.mubr.f32.mxu0 0.0
    %705 = vmatmul.mubr.f32.gmra.mxu0 %v534
    %v706 = vpop.f32.mrf.mxu0
    %v707 = vadd.f32 %v444, %v706
    %v708 = vpop.f32.mrf.mxu0
    %v709 = vadd.f32 %v446, %v708
    %710 = vmatprep.mubr.f32.mxu0 0.0
    %711 = vmatmul.mubr.f32.gmra.mxu0 %v536
    %v712 = vpop.f32.mrf.mxu0
    %v713 = vadd.f32 %v450, %v712
    %v714 = vpop.f32.mrf.mxu0
    %v715 = vadd.f32 %v452, %v714
    %716 = vmatprep.mubr.f32.mxu0 0.0
    %717 = vmatmul.mubr.f32.gmra.mxu0 %v538
    %v718 = vpop.f32.mrf.mxu0
    %v719 = vadd.f32 %v456, %v718
    %v720 = vpop.f32.mrf.mxu0
    %v721 = vadd.f32 %v458, %v720
    %722 = vmatprep.mubr.f32.mxu0 0.0
    %723 = vmatmul.mubr.f32.gmra.mxu0 %v540
    %v724 = vpop.f32.mrf.mxu0
    %v725 = vadd.f32 %v462, %v724
    %v726 = vpop.f32.mrf.mxu0
    %v727 = vadd.f32 %v464, %v726
    %728 = vmatprep.mubr.f32.mxu0 0.0
    %729 = vmatmul.mubr.f32.gmra.mxu0 %v542
    %v730 = vpop.f32.mrf.mxu0
    %v731 = vadd.f32 %v468, %v730
    %v732 = vpop.f32.mrf.mxu0
    %v733 = vadd.f32 %v470, %v732
    %734 = vmatprep.mubr.f32.mxu0 0.0
    %735 = vmatmul.mubr.f32.gmra.mxu0 %v544
    %v736 = vpop.f32.mrf.mxu0
    %v737 = vadd.f32 %v474, %v736
    %v738 = vpop.f32.mrf.mxu0
    %v739 = vadd.f32 %v476, %v738
    %740 = vmatprep.mubr.f32.mxu0 0.0
    %741 = vmatmul.mubr.f32.gmra.mxu0 %v546
    %v742 = vpop.f32.mrf.mxu0
    %v743 = vadd.f32 %v480, %v742
    %v744 = vpop.f32.mrf.mxu0
    %v745 = vadd.f32 %v482, %v744
    %746 = vmatprep.mubr.f32.mxu0 0.0
    %747 = vmatmul.mubr.f32.gmra.mxu0 %v548
    %v748 = vpop.f32.mrf.mxu0
    %v749 = vadd.f32 %v486, %v748
    %v750 = vpop.f32.mrf.mxu0
    %v751 = vadd.f32 %v488, %v750
    %752 = vmatprep.mubr.f32.mxu0 0.0
    %753 = vmatmul.mubr.f32.gmra.mxu0 %v550
    %v754 = vpop.f32.mrf.mxu0
    %v755 = vadd.f32 %v492, %v754
    %v756 = vpop.f32.mrf.mxu0
    %v757 = vadd.f32 %v494, %v756
    %758 = vmatprep.mubr.f32.mxu0 0.0
    %759 = vmatmul.mubr.f32.gmra.mxu0 %v552
    %v760 = vpop.f32.mrf.mxu0
    %v761 = vadd.f32 %v498, %v760
    %v762 = vpop.f32.mrf.mxu0
    %v763 = vadd.f32 %v500, %v762
    %764 = vmatprep.mubr.f32.mxu0 0.0
    %765 = vmatmul.mubr.f32.gmra.mxu0 %v554
    %v766 = vpop.f32.mrf.mxu0
    %v767 = vadd.f32 %v504, %v766
    %v768 = vpop.f32.mrf.mxu0
    %v769 = vadd.f32 %v506, %v768
    %770 = vdwg.mxu0
    %vm771 = vcmask 1045504
    %v772 = vrot.slane %v105, 2
    %v773 = vrot.slane %v106, 2
    %v774 = vsel %vm771, %v772, %v773
    %v775 = vrot.slane %v107, 2
    %v776 = vsel %vm771, %v773, %v775
    %v777 = vrot.slane %v108, 2
    %v778 = vsel %vm771, %v775, %v777
    %v779 = vrot.slane %v109, 2
    %v780 = vrot.slane %v110, 2
    %v781 = vsel %vm771, %v779, %v780
    %v782 = vrot.slane %v111, 2
    %v783 = vsel %vm771, %v780, %v782
    %v784 = vrot.slane %v112, 2
    %v785 = vsel %vm771, %v782, %v784
    %v786 = vrot.slane %v113, 2
    %v787 = vrot.slane %v114, 2
    %v788 = vsel %vm771, %v786, %v787
    %v789 = vrot.slane %v115, 2
    %v790 = vsel %vm771, %v787, %v789
    %v791 = vrot.slane %v116, 2
    %v792 = vsel %vm771, %v789, %v791
    %v793 = vrot.slane %v117, 2
    %v794 = vrot.slane %v118, 2
    %v795 = vsel %vm771, %v793, %v794
    %v796 = vrot.slane %v119, 2
    %v797 = vsel %vm771, %v794, %v796
    %v798 = vrot.slane %v120, 2
    %v799 = vsel %vm771, %v796, %v798
    %v800 = vrot.slane %v121, 2
    %v801 = vrot.slane %v122, 2
    %v802 = vsel %vm771, %v800, %v801
    %v803 = vrot.slane %v123, 2
    %v804 = vsel %vm771, %v801, %v803
    %v805 = vrot.slane %v124, 2
    %v806 = vsel %vm771, %v803, %v805
    %v807 = vrot.slane %v125, 2
    %v808 = vrot.slane %v126, 2
    %v809 = vsel %vm771, %v807, %v808
    %v810 = vrot.slane %v127, 2
    %v811 = vsel %vm771, %v808, %v810
    %v812 = vrot.slane %v128, 2
    %v813 = vsel %vm771, %v810, %v812
    %v814 = vrot.slane %v129, 2
    %v815 = vrot.slane %v130, 2
    %v816 = vsel %vm771, %v814, %v815
    %v817 = vrot.slane %v131, 2
    %v818 = vsel %vm771, %v815, %v817
    %v819 = vrot.slane %v132, 2
    %v820 = vsel %vm771, %v817, %v819
    %v821 = vrot.slane %v133, 2
    %v822 = vrot.slane %v134, 2
    %v823 = vsel %vm771, %v821, %v822
    %v824 = vrot.slane %v135, 2
    %v825 = vsel %vm771, %v822, %v824
    %v826 = vrot.slane %v136, 2
    %v827 = vsel %vm771, %v824, %v826
    %s828 = scalar_lea.vmem %s1, 128
    %v829 = vld [vmem:[%s828] sm:$0xff]
    %v830 = vld [vmem:[%s828 + $0x8] sm:$0xff]
    %v831 = vld [vmem:[%s828 + $0x10] sm:$0xff]
    %v832 = vld [vmem:[%s828 + $0x18] sm:$0xff]
    %v833 = vld [vmem:[%s828 + $0x20] sm:$0xff]
    %v834 = vld [vmem:[%s828 + $0x28] sm:$0xff]
    %v835 = vld [vmem:[%s828 + $0x30] sm:$0xf]
    %v836 = vld [vmem:[%s828 + $0x38] sm:$0xf]
    %v837 = vsel %vm243, %v774, 0
    %v839 = vsel %vm243, %v776, 0
    %v841 = vsel %vm243, %v778, 0
    %v843 = vsel %vm243, %v781, 0
    %v845 = vsel %vm243, %v783, 0
    %v847 = vsel %vm243, %v785, 0
    %v849 = vsel %vm243, %v788, 0
    %v851 = vsel %vm243, %v790, 0
    %v853 = vsel %vm243, %v792, 0
    %v855 = vsel %vm243, %v795, 0
    %v857 = vsel %vm243, %v797, 0
    %v859 = vsel %vm243, %v799, 0
    %v861 = vsel %vm243, %v802, 0
    %v863 = vsel %vm243, %v804, 0
    %v865 = vsel %vm243, %v806, 0
    %v867 = vsel %vm243, %v809, 0
    %v869 = vsel %vm243, %v811, 0
    %v871 = vsel %vm243, %v813, 0
    %v873 = vsel %vm243, %v816, 0
    %v875 = vsel %vm243, %v818, 0
    %v877 = vsel %vm243, %v820, 0
    %v879 = vsel %vm243, %v823, 0
    %v881 = vsel %vm243, %v825, 0
    %v883 = vsel %vm243, %v827, 0
    %v886 = vsel %vm292, %v835, 0
    %v889 = vsel %vm292, %v836, 0
    %891 = vmatprep.subr.mxu0 0.0
    %892 = vmatpush1.msra.mxu0 0.0
    %893 = vmatprep.subr.mxu0 0.0
    %894 = vmatpush1.msra.mxu0 0.0
    %895 = vmatprep.subr.mxu0 0.0
    %896 = vmatpush1.msra.mxu0 0.0
    %897 = vmatprep.subr.mxu0 0.0
    %898 = vmatpush1.msra.mxu0 0.0
    %899 = vmatprep.subr.mxu0 0.0
    %900 = vmatpush1.msra.mxu0 0.0
    %901 = vmatprep.subr.mxu0 0.0
    %902 = vmatpush1.msra.mxu0 0.0
    %903 = vmatprep.subr.mxu0 0.0
    %904 = vmatpush1.msra.mxu0 0.0
    %905 = vmatprep.subr.mxu0 0.0
    %906 = vmatpush1.msra.mxu0 0.0
    %907 = vmatprep.subr.mxu0 0.0
    %908 = vmatpush1.msra.mxu0 0.0
    %909 = vmatprep.subr.mxu0 0.0
    %910 = vmatpush1.msra.mxu0 0.0
    %911 = vmatprep.subr.mxu0 0.0
    %912 = vmatpush1.msra.mxu0 0.0
    %913 = vmatprep.subr.mxu0 0.0
    %914 = vmatpush1.msra.mxu0 0.0
    %915 = vmatprep.subr.mxu0 %v889
    %916 = vmatpush1.msra.mxu0 %v886
    %917 = vmatprep.subr.mxu0 %v834
    %918 = vmatpush1.msra.mxu0 %v833
    %919 = vmatprep.subr.mxu0 %v832
    %920 = vmatpush1.msra.mxu0 %v831
    %921 = vmatprep.subr.mxu0 %v830
    %922 = vmatpush1.msra.mxu0 %v829
    %923 = vmatprep.subr.mxu0 0.0
    %924 = vmatpush2.msra.mxu0 0.0
    %925 = vmatprep.subr.mxu0 0.0
    %926 = vmatpush2.msra.mxu0 0.0
    %927 = vmatprep.subr.mxu0 0.0
    %928 = vmatpush2.msra.mxu0 0.0
    %929 = vmatprep.subr.mxu0 0.0
    %930 = vmatpush2.msra.mxu0 0.0
    %931 = vmatprep.subr.mxu0 0.0
    %932 = vmatpush2.msra.mxu0 0.0
    %933 = vmatprep.subr.mxu0 0.0
    %934 = vmatpush2.msra.mxu0 0.0
    %935 = vmatprep.subr.mxu0 0.0
    %936 = vmatpush2.msra.mxu0 0.0
    %937 = vmatprep.subr.mxu0 0.0
    %938 = vmatpush2.msra.mxu0 0.0
    %939 = vmatprep.subr.mxu0 0.0
    %940 = vmatpush2.msra.mxu0 0.0
    %941 = vmatprep.subr.mxu0 0.0
    %942 = vmatpush2.msra.mxu0 0.0
    %943 = vmatprep.subr.mxu0 0.0
    %944 = vmatpush2.msra.mxu0 0.0
    %945 = vmatprep.subr.mxu0 0.0
    %946 = vmatpush2.msra.mxu0 0.0
    %947 = vmatprep.subr.mxu0 0.0
    %948 = vmatpush2.msra.mxu0 0.0
    %949 = vmatprep.subr.mxu0 0.0
    %950 = vmatpush2.msra.mxu0 0.0
    %951 = vmatprep.subr.mxu0 0.0
    %952 = vmatpush2.msra.mxu0 0.0
    %953 = vmatprep.subr.mxu0 0.0
    %954 = vmatpush2.msra.mxu0 0.0
    %955 = vmatprep.mubr.f32.mxu0 0.0
    %956 = vmatmul.mubr.f32.gmra.mxu0 %v837
    %v957 = vpop.f32.mrf.mxu0
    %v958 = vadd.f32 0.0, %v957
    %v959 = vpop.f32.mrf.mxu0
    %v960 = vadd.f32 0.0, %v959
    %961 = vmatprep.mubr.f32.mxu0 0.0
    %962 = vmatmul.mubr.f32.gmra.mxu0 %v839
    %v963 = vpop.f32.mrf.mxu0
    %v964 = vadd.f32 0.0, %v963
    %v965 = vpop.f32.mrf.mxu0
    %v966 = vadd.f32 0.0, %v965
    %967 = vmatprep.mubr.f32.mxu0 0.0
    %968 = vmatmul.mubr.f32.gmra.mxu0 %v841
    %v969 = vpop.f32.mrf.mxu0
    %v970 = vadd.f32 0.0, %v969
    %v971 = vpop.f32.mrf.mxu0
    %v972 = vadd.f32 0.0, %v971
    %973 = vmatprep.mubr.f32.mxu0 0.0
    %974 = vmatmul.mubr.f32.gmra.mxu0 %v843
    %v975 = vpop.f32.mrf.mxu0
    %v976 = vadd.f32 0.0, %v975
    %v977 = vpop.f32.mrf.mxu0
    %v978 = vadd.f32 0.0, %v977
    %979 = vmatprep.mubr.f32.mxu0 0.0
    %980 = vmatmul.mubr.f32.gmra.mxu0 %v845
    %v981 = vpop.f32.mrf.mxu0
    %v982 = vadd.f32 0.0, %v981
    %v983 = vpop.f32.mrf.mxu0
    %v984 = vadd.f32 0.0, %v983
    %985 = vmatprep.mubr.f32.mxu0 0.0
    %986 = vmatmul.mubr.f32.gmra.mxu0 %v847
    %v987 = vpop.f32.mrf.mxu0
    %v988 = vadd.f32 0.0, %v987
    %v989 = vpop.f32.mrf.mxu0
    %v990 = vadd.f32 0.0, %v989
    %991 = vmatprep.mubr.f32.mxu0 0.0
    %992 = vmatmul.mubr.f32.gmra.mxu0 %v849
    %v993 = vpop.f32.mrf.mxu0
    %v994 = vadd.f32 0.0, %v993
    %v995 = vpop.f32.mrf.mxu0
    %v996 = vadd.f32 0.0, %v995
    %997 = vmatprep.mubr.f32.mxu0 0.0
    %998 = vmatmul.mubr.f32.gmra.mxu0 %v851
    %v999 = vpop.f32.mrf.mxu0
    %v1000 = vadd.f32 0.0, %v999
    %v1001 = vpop.f32.mrf.mxu0
    %v1002 = vadd.f32 0.0, %v1001
    %1003 = vmatprep.mubr.f32.mxu0 0.0
    %1004 = vmatmul.mubr.f32.gmra.mxu0 %v853
    %v1005 = vpop.f32.mrf.mxu0
    %v1006 = vadd.f32 0.0, %v1005
    %v1007 = vpop.f32.mrf.mxu0
    %v1008 = vadd.f32 0.0, %v1007
    %1009 = vmatprep.mubr.f32.mxu0 0.0
    %1010 = vmatmul.mubr.f32.gmra.mxu0 %v855
    %v1011 = vpop.f32.mrf.mxu0
    %v1012 = vadd.f32 0.0, %v1011
    %v1013 = vpop.f32.mrf.mxu0
    %v1014 = vadd.f32 0.0, %v1013
    %1015 = vmatprep.mubr.f32.mxu0 0.0
    %1016 = vmatmul.mubr.f32.gmra.mxu0 %v857
    %v1017 = vpop.f32.mrf.mxu0
    %v1018 = vadd.f32 0.0, %v1017
    %v1019 = vpop.f32.mrf.mxu0
    %v1020 = vadd.f32 0.0, %v1019
    %1021 = vmatprep.mubr.f32.mxu0 0.0
    %1022 = vmatmul.mubr.f32.gmra.mxu0 %v859
    %v1023 = vpop.f32.mrf.mxu0
    %v1024 = vadd.f32 0.0, %v1023
    %v1025 = vpop.f32.mrf.mxu0
    %v1026 = vadd.f32 0.0, %v1025
    %1027 = vmatprep.mubr.f32.mxu0 0.0
    %1028 = vmatmul.mubr.f32.gmra.mxu0 %v861
    %v1029 = vpop.f32.mrf.mxu0
    %v1030 = vadd.f32 0.0, %v1029
    %v1031 = vpop.f32.mrf.mxu0
    %v1032 = vadd.f32 0.0, %v1031
    %1033 = vmatprep.mubr.f32.mxu0 0.0
    %1034 = vmatmul.mubr.f32.gmra.mxu0 %v863
    %v1035 = vpop.f32.mrf.mxu0
    %v1036 = vadd.f32 0.0, %v1035
    %v1037 = vpop.f32.mrf.mxu0
    %v1038 = vadd.f32 0.0, %v1037
    %1039 = vmatprep.mubr.f32.mxu0 0.0
    %1040 = vmatmul.mubr.f32.gmra.mxu0 %v865
    %v1041 = vpop.f32.mrf.mxu0
    %v1042 = vadd.f32 0.0, %v1041
    %v1043 = vpop.f32.mrf.mxu0
    %v1044 = vadd.f32 0.0, %v1043
    %1045 = vmatprep.mubr.f32.mxu0 0.0
    %1046 = vmatmul.mubr.f32.gmra.mxu0 %v867
    %v1047 = vpop.f32.mrf.mxu0
    %v1048 = vadd.f32 0.0, %v1047
    %v1049 = vpop.f32.mrf.mxu0
    %v1050 = vadd.f32 0.0, %v1049
    %1051 = vmatprep.mubr.f32.mxu0 0.0
    %1052 = vmatmul.mubr.f32.gmra.mxu0 %v869
    %v1053 = vpop.f32.mrf.mxu0
    %v1054 = vadd.f32 0.0, %v1053
    %v1055 = vpop.f32.mrf.mxu0
    %v1056 = vadd.f32 0.0, %v1055
    %1057 = vmatprep.mubr.f32.mxu0 0.0
    %1058 = vmatmul.mubr.f32.gmra.mxu0 %v871
    %v1059 = vpop.f32.mrf.mxu0
    %v1060 = vadd.f32 0.0, %v1059
    %v1061 = vpop.f32.mrf.mxu0
    %v1062 = vadd.f32 0.0, %v1061
    %1063 = vmatprep.mubr.f32.mxu0 0.0
    %1064 = vmatmul.mubr.f32.gmra.mxu0 %v873
    %v1065 = vpop.f32.mrf.mxu0
    %v1066 = vadd.f32 0.0, %v1065
    %v1067 = vpop.f32.mrf.mxu0
    %v1068 = vadd.f32 0.0, %v1067
    %1069 = vmatprep.mubr.f32.mxu0 0.0
    %1070 = vmatmul.mubr.f32.gmra.mxu0 %v875
    %v1071 = vpop.f32.mrf.mxu0
    %v1072 = vadd.f32 0.0, %v1071
    %v1073 = vpop.f32.mrf.mxu0
    %v1074 = vadd.f32 0.0, %v1073
    %1075 = vmatprep.mubr.f32.mxu0 0.0
    %1076 = vmatmul.mubr.f32.gmra.mxu0 %v877
    %v1077 = vpop.f32.mrf.mxu0
    %v1078 = vadd.f32 0.0, %v1077
    %v1079 = vpop.f32.mrf.mxu0
    %v1080 = vadd.f32 0.0, %v1079
    %1081 = vmatprep.mubr.f32.mxu0 0.0
    %1082 = vmatmul.mubr.f32.gmra.mxu0 %v879
    %v1083 = vpop.f32.mrf.mxu0
    %v1084 = vadd.f32 0.0, %v1083
    %v1085 = vpop.f32.mrf.mxu0
    %v1086 = vadd.f32 0.0, %v1085
    %1087 = vmatprep.mubr.f32.mxu0 0.0
    %1088 = vmatmul.mubr.f32.gmra.mxu0 %v881
    %v1089 = vpop.f32.mrf.mxu0
    %v1090 = vadd.f32 0.0, %v1089
    %v1091 = vpop.f32.mrf.mxu0
    %v1092 = vadd.f32 0.0, %v1091
    %1093 = vmatprep.mubr.f32.mxu0 0.0
    %1094 = vmatmul.mubr.f32.gmra.mxu0 %v883
    %v1095 = vpop.f32.mrf.mxu0
    %v1096 = vadd.f32 0.0, %v1095
    %v1097 = vpop.f32.mrf.mxu0
    %v1098 = vadd.f32 0.0, %v1097
    %1099 = vdwg.mxu0
    %v1100 = vadd.f32 %v629, %v958
    %v1101 = vadd.f32 %v631, %v960
    %v1102 = vadd.f32 %v635, %v964
    %v1103 = vadd.f32 %v637, %v966
    %v1104 = vadd.f32 %v641, %v970
    %v1105 = vadd.f32 %v643, %v972
    %v1106 = vadd.f32 %v647, %v976
    %v1107 = vadd.f32 %v649, %v978
    %v1108 = vadd.f32 %v653, %v982
    %v1109 = vadd.f32 %v655, %v984
    %v1110 = vadd.f32 %v659, %v988
    %v1111 = vadd.f32 %v661, %v990
    %v1112 = vadd.f32 %v665, %v994
    %v1113 = vadd.f32 %v667, %v996
    %v1114 = vadd.f32 %v671, %v1000
    %v1115 = vadd.f32 %v673, %v1002
    %v1116 = vadd.f32 %v677, %v1006
    %v1117 = vadd.f32 %v679, %v1008
    %v1118 = vadd.f32 %v683, %v1012
    %v1119 = vadd.f32 %v685, %v1014
    %v1120 = vadd.f32 %v689, %v1018
    %v1121 = vadd.f32 %v691, %v1020
    %v1122 = vadd.f32 %v695, %v1024
    %v1123 = vadd.f32 %v697, %v1026
    %v1124 = vadd.f32 %v701, %v1030
    %v1125 = vadd.f32 %v703, %v1032
    %v1126 = vadd.f32 %v707, %v1036
    %v1127 = vadd.f32 %v709, %v1038
    %v1128 = vadd.f32 %v713, %v1042
    %v1129 = vadd.f32 %v715, %v1044
    %v1130 = vadd.f32 %v719, %v1048
    %v1131 = vadd.f32 %v721, %v1050
    %v1132 = vadd.f32 %v725, %v1054
    %v1133 = vadd.f32 %v727, %v1056
    %v1134 = vadd.f32 %v731, %v1060
    %v1135 = vadd.f32 %v733, %v1062
    %v1136 = vadd.f32 %v737, %v1066
    %v1137 = vadd.f32 %v739, %v1068
    %v1138 = vadd.f32 %v743, %v1072
    %v1139 = vadd.f32 %v745, %v1074
    %v1140 = vadd.f32 %v749, %v1078
    %v1141 = vadd.f32 %v751, %v1080
    %v1142 = vadd.f32 %v755, %v1084
    %v1143 = vadd.f32 %v757, %v1086
    %v1144 = vadd.f32 %v761, %v1090
    %v1145 = vadd.f32 %v763, %v1092
    %v1146 = vadd.f32 %v767, %v1096
    %v1147 = vadd.f32 %v769, %v1098
    %vm1148 = vcmask 1044480
    %v1149 = vrot.slane %v105, 3
    %v1150 = vrot.slane %v106, 3
    %v1151 = vsel %vm1148, %v1149, %v1150
    %v1152 = vrot.slane %v107, 3
    %v1153 = vsel %vm1148, %v1150, %v1152
    %v1154 = vrot.slane %v108, 3
    %v1155 = vsel %vm1148, %v1152, %v1154
    %v1156 = vrot.slane %v109, 3
    %v1157 = vrot.slane %v110, 3
    %v1158 = vsel %vm1148, %v1156, %v1157
    %v1159 = vrot.slane %v111, 3
    %v1160 = vsel %vm1148, %v1157, %v1159
    %v1161 = vrot.slane %v112, 3
    %v1162 = vsel %vm1148, %v1159, %v1161
    %v1163 = vrot.slane %v113, 3
    %v1164 = vrot.slane %v114, 3
    %v1165 = vsel %vm1148, %v1163, %v1164
    %v1166 = vrot.slane %v115, 3
    %v1167 = vsel %vm1148, %v1164, %v1166
    %v1168 = vrot.slane %v116, 3
    %v1169 = vsel %vm1148, %v1166, %v1168
    %v1170 = vrot.slane %v117, 3
    %v1171 = vrot.slane %v118, 3
    %v1172 = vsel %vm1148, %v1170, %v1171
    %v1173 = vrot.slane %v119, 3
    %v1174 = vsel %vm1148, %v1171, %v1173
    %v1175 = vrot.slane %v120, 3
    %v1176 = vsel %vm1148, %v1173, %v1175
    %v1177 = vrot.slane %v121, 3
    %v1178 = vrot.slane %v122, 3
    %v1179 = vsel %vm1148, %v1177, %v1178
    %v1180 = vrot.slane %v123, 3
    %v1181 = vsel %vm1148, %v1178, %v1180
    %v1182 = vrot.slane %v124, 3
    %v1183 = vsel %vm1148, %v1180, %v1182
    %v1184 = vrot.slane %v125, 3
    %v1185 = vrot.slane %v126, 3
    %v1186 = vsel %vm1148, %v1184, %v1185
    %v1187 = vrot.slane %v127, 3
    %v1188 = vsel %vm1148, %v1185, %v1187
    %v1189 = vrot.slane %v128, 3
    %v1190 = vsel %vm1148, %v1187, %v1189
    %v1191 = vrot.slane %v129, 3
    %v1192 = vrot.slane %v130, 3
    %v1193 = vsel %vm1148, %v1191, %v1192
    %v1194 = vrot.slane %v131, 3
    %v1195 = vsel %vm1148, %v1192, %v1194
    %v1196 = vrot.slane %v132, 3
    %v1197 = vsel %vm1148, %v1194, %v1196
    %v1198 = vrot.slane %v133, 3
    %v1199 = vrot.slane %v134, 3
    %v1200 = vsel %vm1148, %v1198, %v1199
    %v1201 = vrot.slane %v135, 3
    %v1202 = vsel %vm1148, %v1199, %v1201
    %v1203 = vrot.slane %v136, 3
    %v1204 = vsel %vm1148, %v1201, %v1203
    %s1205 = scalar_lea.vmem %s1, 192
    %v1206 = vld [vmem:[%s1205] sm:$0xff]
    %v1207 = vld [vmem:[%s1205 + $0x8] sm:$0xff]
    %v1208 = vld [vmem:[%s1205 + $0x10] sm:$0xff]
    %v1209 = vld [vmem:[%s1205 + $0x18] sm:$0xff]
    %v1210 = vld [vmem:[%s1205 + $0x20] sm:$0xff]
    %v1211 = vld [vmem:[%s1205 + $0x28] sm:$0xff]
    %v1212 = vld [vmem:[%s1205 + $0x30] sm:$0xf]
    %v1213 = vld [vmem:[%s1205 + $0x38] sm:$0xf]
    %v1214 = vsel %vm243, %v1151, 0
    %v1216 = vsel %vm243, %v1153, 0
    %v1218 = vsel %vm243, %v1155, 0
    %v1220 = vsel %vm243, %v1158, 0
    %v1222 = vsel %vm243, %v1160, 0
    %v1224 = vsel %vm243, %v1162, 0
    %v1226 = vsel %vm243, %v1165, 0
    %v1228 = vsel %vm243, %v1167, 0
    %v1230 = vsel %vm243, %v1169, 0
    %v1232 = vsel %vm243, %v1172, 0
    %v1234 = vsel %vm243, %v1174, 0
    %v1236 = vsel %vm243, %v1176, 0
    %v1238 = vsel %vm243, %v1179, 0
    %v1240 = vsel %vm243, %v1181, 0
    %v1242 = vsel %vm243, %v1183, 0
    %v1244 = vsel %vm243, %v1186, 0
    %v1246 = vsel %vm243, %v1188, 0
    %v1248 = vsel %vm243, %v1190, 0
    %v1250 = vsel %vm243, %v1193, 0
    %v1252 = vsel %vm243, %v1195, 0
    %v1254 = vsel %vm243, %v1197, 0
    %v1256 = vsel %vm243, %v1200, 0
    %v1258 = vsel %vm243, %v1202, 0
    %v1260 = vsel %vm243, %v1204, 0
    %v1263 = vsel %vm292, %v1212, 0
    %v1266 = vsel %vm292, %v1213, 0
    %1268 = vmatprep.subr.mxu0 0.0
    %1269 = vmatpush1.msra.mxu0 0.0
    %1270 = vmatprep.subr.mxu0 0.0
    %1271 = vmatpush1.msra.mxu0 0.0
    %1272 = vmatprep.subr.mxu0 0.0
    %1273 = vmatpush1.msra.mxu0 0.0
    %1274 = vmatprep.subr.mxu0 0.0
    %1275 = vmatpush1.msra.mxu0 0.0
    %1276 = vmatprep.subr.mxu0 0.0
    %1277 = vmatpush1.msra.mxu0 0.0
    %1278 = vmatprep.subr.mxu0 0.0
    %1279 = vmatpush1.msra.mxu0 0.0
    %1280 = vmatprep.subr.mxu0 0.0
    %1281 = vmatpush1.msra.mxu0 0.0
    %1282 = vmatprep.subr.mxu0 0.0
    %1283 = vmatpush1.msra.mxu0 0.0
    %1284 = vmatprep.subr.mxu0 0.0
    %1285 = vmatpush1.msra.mxu0 0.0
    %1286 = vmatprep.subr.mxu0 0.0
    %1287 = vmatpush1.msra.mxu0 0.0
    %1288 = vmatprep.subr.mxu0 0.0
    %1289 = vmatpush1.msra.mxu0 0.0
    %1290 = vmatprep.subr.mxu0 0.0
    %1291 = vmatpush1.msra.mxu0 0.0
    %1292 = vmatprep.subr.mxu0 %v1266
    %1293 = vmatpush1.msra.mxu0 %v1263
    %1294 = vmatprep.subr.mxu0 %v1211
    %1295 = vmatpush1.msra.mxu0 %v1210
    %1296 = vmatprep.subr.mxu0 %v1209
    %1297 = vmatpush1.msra.mxu0 %v1208
    %1298 = vmatprep.subr.mxu0 %v1207
    %1299 = vmatpush1.msra.mxu0 %v1206
    %1300 = vmatprep.subr.mxu0 0.0
    %1301 = vmatpush2.msra.mxu0 0.0
    %1302 = vmatprep.subr.mxu0 0.0
    %1303 = vmatpush2.msra.mxu0 0.0
    %1304 = vmatprep.subr.mxu0 0.0
    %1305 = vmatpush2.msra.mxu0 0.0
    %1306 = vmatprep.subr.mxu0 0.0
    %1307 = vmatpush2.msra.mxu0 0.0
    %1308 = vmatprep.subr.mxu0 0.0
    %1309 = vmatpush2.msra.mxu0 0.0
    %1310 = vmatprep.subr.mxu0 0.0
    %1311 = vmatpush2.msra.mxu0 0.0
    %1312 = vmatprep.subr.mxu0 0.0
    %1313 = vmatpush2.msra.mxu0 0.0
    %1314 = vmatprep.subr.mxu0 0.0
    %1315 = vmatpush2.msra.mxu0 0.0
    %1316 = vmatprep.subr.mxu0 0.0
    %1317 = vmatpush2.msra.mxu0 0.0
    %1318 = vmatprep.subr.mxu0 0.0
    %1319 = vmatpush2.msra.mxu0 0.0
    %1320 = vmatprep.subr.mxu0 0.0
    %1321 = vmatpush2.msra.mxu0 0.0
    %1322 = vmatprep.subr.mxu0 0.0
    %1323 = vmatpush2.msra.mxu0 0.0
    %1324 = vmatprep.subr.mxu0 0.0
    %1325 = vmatpush2.msra.mxu0 0.0
    %1326 = vmatprep.subr.mxu0 0.0
    %1327 = vmatpush2.msra.mxu0 0.0
    %1328 = vmatprep.subr.mxu0 0.0
    %1329 = vmatpush2.msra.mxu0 0.0
    %1330 = vmatprep.subr.mxu0 0.0
    %1331 = vmatpush2.msra.mxu0 0.0
    %1332 = vmatprep.mubr.f32.mxu0 0.0
    %1333 = vmatmul.mubr.f32.gmra.mxu0 %v1214
    %v1334 = vpop.f32.mrf.mxu0
    %v1335 = vadd.f32 0.0, %v1334
    %v1336 = vpop.f32.mrf.mxu0
    %v1337 = vadd.f32 0.0, %v1336
    %1338 = vmatprep.mubr.f32.mxu0 0.0
    %1339 = vmatmul.mubr.f32.gmra.mxu0 %v1216
    %v1340 = vpop.f32.mrf.mxu0
    %v1341 = vadd.f32 0.0, %v1340
    %v1342 = vpop.f32.mrf.mxu0
    %v1343 = vadd.f32 0.0, %v1342
    %1344 = vmatprep.mubr.f32.mxu0 0.0
    %1345 = vmatmul.mubr.f32.gmra.mxu0 %v1218
    %v1346 = vpop.f32.mrf.mxu0
    %v1347 = vadd.f32 0.0, %v1346
    %v1348 = vpop.f32.mrf.mxu0
    %v1349 = vadd.f32 0.0, %v1348
    %1350 = vmatprep.mubr.f32.mxu0 0.0
    %1351 = vmatmul.mubr.f32.gmra.mxu0 %v1220
    %v1352 = vpop.f32.mrf.mxu0
    %v1353 = vadd.f32 0.0, %v1352
    %v1354 = vpop.f32.mrf.mxu0
    %v1355 = vadd.f32 0.0, %v1354
    %1356 = vmatprep.mubr.f32.mxu0 0.0
    %1357 = vmatmul.mubr.f32.gmra.mxu0 %v1222
    %v1358 = vpop.f32.mrf.mxu0
    %v1359 = vadd.f32 0.0, %v1358
    %v1360 = vpop.f32.mrf.mxu0
    %v1361 = vadd.f32 0.0, %v1360
    %1362 = vmatprep.mubr.f32.mxu0 0.0
    %1363 = vmatmul.mubr.f32.gmra.mxu0 %v1224
    %v1364 = vpop.f32.mrf.mxu0
    %v1365 = vadd.f32 0.0, %v1364
    %v1366 = vpop.f32.mrf.mxu0
    %v1367 = vadd.f32 0.0, %v1366
    %1368 = vmatprep.mubr.f32.mxu0 0.0
    %1369 = vmatmul.mubr.f32.gmra.mxu0 %v1226
    %v1370 = vpop.f32.mrf.mxu0
    %v1371 = vadd.f32 0.0, %v1370
    %v1372 = vpop.f32.mrf.mxu0
    %v1373 = vadd.f32 0.0, %v1372
    %1374 = vmatprep.mubr.f32.mxu0 0.0
    %1375 = vmatmul.mubr.f32.gmra.mxu0 %v1228
    %v1376 = vpop.f32.mrf.mxu0
    %v1377 = vadd.f32 0.0, %v1376
    %v1378 = vpop.f32.mrf.mxu0
    %v1379 = vadd.f32 0.0, %v1378
    %1380 = vmatprep.mubr.f32.mxu0 0.0
    %1381 = vmatmul.mubr.f32.gmra.mxu0 %v1230
    %v1382 = vpop.f32.mrf.mxu0
    %v1383 = vadd.f32 0.0, %v1382
    %v1384 = vpop.f32.mrf.mxu0
    %v1385 = vadd.f32 0.0, %v1384
    %1386 = vmatprep.mubr.f32.mxu0 0.0
    %1387 = vmatmul.mubr.f32.gmra.mxu0 %v1232
    %v1388 = vpop.f32.mrf.mxu0
    %v1389 = vadd.f32 0.0, %v1388
    %v1390 = vpop.f32.mrf.mxu0
    %v1391 = vadd.f32 0.0, %v1390
    %1392 = vmatprep.mubr.f32.mxu0 0.0
    %1393 = vmatmul.mubr.f32.gmra.mxu0 %v1234
    %v1394 = vpop.f32.mrf.mxu0
    %v1395 = vadd.f32 0.0, %v1394
    %v1396 = vpop.f32.mrf.mxu0
    %v1397 = vadd.f32 0.0, %v1396
    %1398 = vmatprep.mubr.f32.mxu0 0.0
    %1399 = vmatmul.mubr.f32.gmra.mxu0 %v1236
    %v1400 = vpop.f32.mrf.mxu0
    %v1401 = vadd.f32 0.0, %v1400
    %v1402 = vpop.f32.mrf.mxu0
    %v1403 = vadd.f32 0.0, %v1402
    %1404 = vmatprep.mubr.f32.mxu0 0.0
    %1405 = vmatmul.mubr.f32.gmra.mxu0 %v1238
    %v1406 = vpop.f32.mrf.mxu0
    %v1407 = vadd.f32 0.0, %v1406
    %v1408 = vpop.f32.mrf.mxu0
    %v1409 = vadd.f32 0.0, %v1408
    %1410 = vmatprep.mubr.f32.mxu0 0.0
    %1411 = vmatmul.mubr.f32.gmra.mxu0 %v1240
    %v1412 = vpop.f32.mrf.mxu0
    %v1413 = vadd.f32 0.0, %v1412
    %v1414 = vpop.f32.mrf.mxu0
    %v1415 = vadd.f32 0.0, %v1414
    %1416 = vmatprep.mubr.f32.mxu0 0.0
    %1417 = vmatmul.mubr.f32.gmra.mxu0 %v1242
    %v1418 = vpop.f32.mrf.mxu0
    %v1419 = vadd.f32 0.0, %v1418
    %v1420 = vpop.f32.mrf.mxu0
    %v1421 = vadd.f32 0.0, %v1420
    %1422 = vmatprep.mubr.f32.mxu0 0.0
    %1423 = vmatmul.mubr.f32.gmra.mxu0 %v1244
    %v1424 = vpop.f32.mrf.mxu0
    %v1425 = vadd.f32 0.0, %v1424
    %v1426 = vpop.f32.mrf.mxu0
    %v1427 = vadd.f32 0.0, %v1426
    %1428 = vmatprep.mubr.f32.mxu0 0.0
    %1429 = vmatmul.mubr.f32.gmra.mxu0 %v1246
    %v1430 = vpop.f32.mrf.mxu0
    %v1431 = vadd.f32 0.0, %v1430
    %v1432 = vpop.f32.mrf.mxu0
    %v1433 = vadd.f32 0.0, %v1432
    %1434 = vmatprep.mubr.f32.mxu0 0.0
    %1435 = vmatmul.mubr.f32.gmra.mxu0 %v1248
    %v1436 = vpop.f32.mrf.mxu0
    %v1437 = vadd.f32 0.0, %v1436
    %v1438 = vpop.f32.mrf.mxu0
    %v1439 = vadd.f32 0.0, %v1438
    %1440 = vmatprep.mubr.f32.mxu0 0.0
    %1441 = vmatmul.mubr.f32.gmra.mxu0 %v1250
    %v1442 = vpop.f32.mrf.mxu0
    %v1443 = vadd.f32 0.0, %v1442
    %v1444 = vpop.f32.mrf.mxu0
    %v1445 = vadd.f32 0.0, %v1444
    %1446 = vmatprep.mubr.f32.mxu0 0.0
    %1447 = vmatmul.mubr.f32.gmra.mxu0 %v1252
    %v1448 = vpop.f32.mrf.mxu0
    %v1449 = vadd.f32 0.0, %v1448
    %v1450 = vpop.f32.mrf.mxu0
    %v1451 = vadd.f32 0.0, %v1450
    %1452 = vmatprep.mubr.f32.mxu0 0.0
    %1453 = vmatmul.mubr.f32.gmra.mxu0 %v1254
    %v1454 = vpop.f32.mrf.mxu0
    %v1455 = vadd.f32 0.0, %v1454
    %v1456 = vpop.f32.mrf.mxu0
    %v1457 = vadd.f32 0.0, %v1456
    %1458 = vmatprep.mubr.f32.mxu0 0.0
    %1459 = vmatmul.mubr.f32.gmra.mxu0 %v1256
    %v1460 = vpop.f32.mrf.mxu0
    %v1461 = vadd.f32 0.0, %v1460
    %v1462 = vpop.f32.mrf.mxu0
    %v1463 = vadd.f32 0.0, %v1462
    %1464 = vmatprep.mubr.f32.mxu0 0.0
    %1465 = vmatmul.mubr.f32.gmra.mxu0 %v1258
    %v1466 = vpop.f32.mrf.mxu0
    %v1467 = vadd.f32 0.0, %v1466
    %v1468 = vpop.f32.mrf.mxu0
    %v1469 = vadd.f32 0.0, %v1468
    %1470 = vmatprep.mubr.f32.mxu0 0.0
    %1471 = vmatmul.mubr.f32.gmra.mxu0 %v1260
    %v1472 = vpop.f32.mrf.mxu0
    %v1473 = vadd.f32 0.0, %v1472
    %v1474 = vpop.f32.mrf.mxu0
    %v1475 = vadd.f32 0.0, %v1474
    %1476 = vdwg.mxu0
    %v1477 = vadd.f32 %v1100, %v1335
    %v1478 = vadd.f32 %v1101, %v1337
    %v1479 = vadd.f32 %v1102, %v1341
    %v1480 = vadd.f32 %v1103, %v1343
    %v1481 = vadd.f32 %v1104, %v1347
    %v1482 = vadd.f32 %v1105, %v1349
    %v1483 = vadd.f32 %v1106, %v1353
    %v1484 = vadd.f32 %v1107, %v1355
    %v1485 = vadd.f32 %v1108, %v1359
    %v1486 = vadd.f32 %v1109, %v1361
    %v1487 = vadd.f32 %v1110, %v1365
    %v1488 = vadd.f32 %v1111, %v1367
    %v1489 = vadd.f32 %v1112, %v1371
    %v1490 = vadd.f32 %v1113, %v1373
    %v1491 = vadd.f32 %v1114, %v1377
    %v1492 = vadd.f32 %v1115, %v1379
    %v1493 = vadd.f32 %v1116, %v1383
    %v1494 = vadd.f32 %v1117, %v1385
    %v1495 = vadd.f32 %v1118, %v1389
    %v1496 = vadd.f32 %v1119, %v1391
    %v1497 = vadd.f32 %v1120, %v1395
    %v1498 = vadd.f32 %v1121, %v1397
    %v1499 = vadd.f32 %v1122, %v1401
    %v1500 = vadd.f32 %v1123, %v1403
    %v1501 = vadd.f32 %v1124, %v1407
    %v1502 = vadd.f32 %v1125, %v1409
    %v1503 = vadd.f32 %v1126, %v1413
    %v1504 = vadd.f32 %v1127, %v1415
    %v1505 = vadd.f32 %v1128, %v1419
    %v1506 = vadd.f32 %v1129, %v1421
    %v1507 = vadd.f32 %v1130, %v1425
    %v1508 = vadd.f32 %v1131, %v1427
    %v1509 = vadd.f32 %v1132, %v1431
    %v1510 = vadd.f32 %v1133, %v1433
    %v1511 = vadd.f32 %v1134, %v1437
    %v1512 = vadd.f32 %v1135, %v1439
    %v1513 = vadd.f32 %v1136, %v1443
    %v1514 = vadd.f32 %v1137, %v1445
    %v1515 = vadd.f32 %v1138, %v1449
    %v1516 = vadd.f32 %v1139, %v1451
    %v1517 = vadd.f32 %v1140, %v1455
    %v1518 = vadd.f32 %v1141, %v1457
    %v1519 = vadd.f32 %v1142, %v1461
    %v1520 = vadd.f32 %v1143, %v1463
    %v1521 = vadd.f32 %v1144, %v1467
    %v1522 = vadd.f32 %v1145, %v1469
    %v1523 = vadd.f32 %v1146, %v1473
    %v1524 = vadd.f32 %v1147, %v1475
    %v1525 = vrot.slane %v105, 4
    %v1526 = vrot.slane %v106, 4
    %v1527 = vsel %vm292, %v1525, %v1526
    %v1528 = vrot.slane %v107, 4
    %v1529 = vsel %vm292, %v1526, %v1528
    %v1530 = vrot.slane %v108, 4
    %v1531 = vsel %vm292, %v1528, %v1530
    %v1532 = vrot.slane %v109, 4
    %v1533 = vrot.slane %v110, 4
    %v1534 = vsel %vm292, %v1532, %v1533
    %v1535 = vrot.slane %v111, 4
    %v1536 = vsel %vm292, %v1533, %v1535
    %v1537 = vrot.slane %v112, 4
    %v1538 = vsel %vm292, %v1535, %v1537
    %v1539 = vrot.slane %v113, 4
    %v1540 = vrot.slane %v114, 4
    %v1541 = vsel %vm292, %v1539, %v1540
    %v1542 = vrot.slane %v115, 4
    %v1543 = vsel %vm292, %v1540, %v1542
    %v1544 = vrot.slane %v116, 4
    %v1545 = vsel %vm292, %v1542, %v1544
    %v1546 = vrot.slane %v117, 4
    %v1547 = vrot.slane %v118, 4
    %v1548 = vsel %vm292, %v1546, %v1547
    %v1549 = vrot.slane %v119, 4
    %v1550 = vsel %vm292, %v1547, %v1549
    %v1551 = vrot.slane %v120, 4
    %v1552 = vsel %vm292, %v1549, %v1551
    %v1553 = vrot.slane %v121, 4
    %v1554 = vrot.slane %v122, 4
    %v1555 = vsel %vm292, %v1553, %v1554
    %v1556 = vrot.slane %v123, 4
    %v1557 = vsel %vm292, %v1554, %v1556
    %v1558 = vrot.slane %v124, 4
    %v1559 = vsel %vm292, %v1556, %v1558
    %v1560 = vrot.slane %v125, 4
    %v1561 = vrot.slane %v126, 4
    %v1562 = vsel %vm292, %v1560, %v1561
    %v1563 = vrot.slane %v127, 4
    %v1564 = vsel %vm292, %v1561, %v1563
    %v1565 = vrot.slane %v128, 4
    %v1566 = vsel %vm292, %v1563, %v1565
    %v1567 = vrot.slane %v129, 4
    %v1568 = vrot.slane %v130, 4
    %v1569 = vsel %vm292, %v1567, %v1568
    %v1570 = vrot.slane %v131, 4
    %v1571 = vsel %vm292, %v1568, %v1570
    %v1572 = vrot.slane %v132, 4
    %v1573 = vsel %vm292, %v1570, %v1572
    %v1574 = vrot.slane %v133, 4
    %v1575 = vrot.slane %v134, 4
    %v1576 = vsel %vm292, %v1574, %v1575
    %v1577 = vrot.slane %v135, 4
    %v1578 = vsel %vm292, %v1575, %v1577
    %v1579 = vrot.slane %v136, 4
    %v1580 = vsel %vm292, %v1577, %v1579
    %s1581 = scalar_lea.vmem %s1, 256
    %v1582 = vld [vmem:[%s1581] sm:$0xff]
    %v1583 = vld [vmem:[%s1581 + $0x8] sm:$0xff]
    %v1584 = vld [vmem:[%s1581 + $0x10] sm:$0xff]
    %v1585 = vld [vmem:[%s1581 + $0x18] sm:$0xff]
    %v1586 = vld [vmem:[%s1581 + $0x20] sm:$0xff]
    %v1587 = vld [vmem:[%s1581 + $0x28] sm:$0xff]
    %v1588 = vld [vmem:[%s1581 + $0x30] sm:$0xf]
    %v1589 = vld [vmem:[%s1581 + $0x38] sm:$0xf]
    %v1590 = vsel %vm243, %v1527, 0
    %v1592 = vsel %vm243, %v1529, 0
    %v1594 = vsel %vm243, %v1531, 0
    %v1596 = vsel %vm243, %v1534, 0
    %v1598 = vsel %vm243, %v1536, 0
    %v1600 = vsel %vm243, %v1538, 0
    %v1602 = vsel %vm243, %v1541, 0
    %v1604 = vsel %vm243, %v1543, 0
    %v1606 = vsel %vm243, %v1545, 0
    %v1608 = vsel %vm243, %v1548, 0
    %v1610 = vsel %vm243, %v1550, 0
    %v1612 = vsel %vm243, %v1552, 0
    %v1614 = vsel %vm243, %v1555, 0
    %v1616 = vsel %vm243, %v1557, 0
    %v1618 = vsel %vm243, %v1559, 0
    %v1620 = vsel %vm243, %v1562, 0
    %v1622 = vsel %vm243, %v1564, 0
    %v1624 = vsel %vm243, %v1566, 0
    %v1626 = vsel %vm243, %v1569, 0
    %v1628 = vsel %vm243, %v1571, 0
    %v1630 = vsel %vm243, %v1573, 0
    %v1632 = vsel %vm243, %v1576, 0
    %v1634 = vsel %vm243, %v1578, 0
    %v1636 = vsel %vm243, %v1580, 0
    %v1639 = vsel %vm292, %v1588, 0
    %v1642 = vsel %vm292, %v1589, 0
    %1644 = vmatprep.subr.mxu0 0.0
    %1645 = vmatpush1.msra.mxu0 0.0
    %1646 = vmatprep.subr.mxu0 0.0
    %1647 = vmatpush1.msra.mxu0 0.0
    %1648 = vmatprep.subr.mxu0 0.0
    %1649 = vmatpush1.msra.mxu0 0.0
    %1650 = vmatprep.subr.mxu0 0.0
    %1651 = vmatpush1.msra.mxu0 0.0
    %1652 = vmatprep.subr.mxu0 0.0
    %1653 = vmatpush1.msra.mxu0 0.0
    %1654 = vmatprep.subr.mxu0 0.0
    %1655 = vmatpush1.msra.mxu0 0.0
    %1656 = vmatprep.subr.mxu0 0.0
    %1657 = vmatpush1.msra.mxu0 0.0
    %1658 = vmatprep.subr.mxu0 0.0
    %1659 = vmatpush1.msra.mxu0 0.0
    %1660 = vmatprep.subr.mxu0 0.0
    %1661 = vmatpush1.msra.mxu0 0.0
    %1662 = vmatprep.subr.mxu0 0.0
    %1663 = vmatpush1.msra.mxu0 0.0
    %1664 = vmatprep.subr.mxu0 0.0
    %1665 = vmatpush1.msra.mxu0 0.0
    %1666 = vmatprep.subr.mxu0 0.0
    %1667 = vmatpush1.msra.mxu0 0.0
    %1668 = vmatprep.subr.mxu0 %v1642
    %1669 = vmatpush1.msra.mxu0 %v1639
    %1670 = vmatprep.subr.mxu0 %v1587
    %1671 = vmatpush1.msra.mxu0 %v1586
    %1672 = vmatprep.subr.mxu0 %v1585
    %1673 = vmatpush1.msra.mxu0 %v1584
    %1674 = vmatprep.subr.mxu0 %v1583
    %1675 = vmatpush1.msra.mxu0 %v1582
    %1676 = vmatprep.subr.mxu0 0.0
    %1677 = vmatpush2.msra.mxu0 0.0
    %1678 = vmatprep.subr.mxu0 0.0
    %1679 = vmatpush2.msra.mxu0 0.0
    %1680 = vmatprep.subr.mxu0 0.0
    %1681 = vmatpush2.msra.mxu0 0.0
    %1682 = vmatprep.subr.mxu0 0.0
    %1683 = vmatpush2.msra.mxu0 0.0
    %1684 = vmatprep.subr.mxu0 0.0
    %1685 = vmatpush2.msra.mxu0 0.0
    %1686 = vmatprep.subr.mxu0 0.0
    %1687 = vmatpush2.msra.mxu0 0.0
    %1688 = vmatprep.subr.mxu0 0.0
    %1689 = vmatpush2.msra.mxu0 0.0
    %1690 = vmatprep.subr.mxu0 0.0
    %1691 = vmatpush2.msra.mxu0 0.0
    %1692 = vmatprep.subr.mxu0 0.0
    %1693 = vmatpush2.msra.mxu0 0.0
    %1694 = vmatprep.subr.mxu0 0.0
    %1695 = vmatpush2.msra.mxu0 0.0
    %1696 = vmatprep.subr.mxu0 0.0
    %1697 = vmatpush2.msra.mxu0 0.0
    %1698 = vmatprep.subr.mxu0 0.0
    %1699 = vmatpush2.msra.mxu0 0.0
    %1700 = vmatprep.subr.mxu0 0.0
    %1701 = vmatpush2.msra.mxu0 0.0
    %1702 = vmatprep.subr.mxu0 0.0
    %1703 = vmatpush2.msra.mxu0 0.0
    %1704 = vmatprep.subr.mxu0 0.0
    %1705 = vmatpush2.msra.mxu0 0.0
    %1706 = vmatprep.subr.mxu0 0.0
    %1707 = vmatpush2.msra.mxu0 0.0
    %1708 = vmatprep.mubr.f32.mxu0 0.0
    %1709 = vmatmul.mubr.f32.gmra.mxu0 %v1590
    %v1710 = vpop.f32.mrf.mxu0
    %v1711 = vadd.f32 0.0, %v1710
    %v1712 = vpop.f32.mrf.mxu0
    %v1713 = vadd.f32 0.0, %v1712
    %1714 = vmatprep.mubr.f32.mxu0 0.0
    %1715 = vmatmul.mubr.f32.gmra.mxu0 %v1592
    %v1716 = vpop.f32.mrf.mxu0
    %v1717 = vadd.f32 0.0, %v1716
    %v1718 = vpop.f32.mrf.mxu0
    %v1719 = vadd.f32 0.0, %v1718
    %1720 = vmatprep.mubr.f32.mxu0 0.0
    %1721 = vmatmul.mubr.f32.gmra.mxu0 %v1594
    %v1722 = vpop.f32.mrf.mxu0
    %v1723 = vadd.f32 0.0, %v1722
    %v1724 = vpop.f32.mrf.mxu0
    %v1725 = vadd.f32 0.0, %v1724
    %1726 = vmatprep.mubr.f32.mxu0 0.0
    %1727 = vmatmul.mubr.f32.gmra.mxu0 %v1596
    %v1728 = vpop.f32.mrf.mxu0
    %v1729 = vadd.f32 0.0, %v1728
    %v1730 = vpop.f32.mrf.mxu0
    %v1731 = vadd.f32 0.0, %v1730
    %1732 = vmatprep.mubr.f32.mxu0 0.0
    %1733 = vmatmul.mubr.f32.gmra.mxu0 %v1598
    %v1734 = vpop.f32.mrf.mxu0
    %v1735 = vadd.f32 0.0, %v1734
    %v1736 = vpop.f32.mrf.mxu0
    %v1737 = vadd.f32 0.0, %v1736
    %1738 = vmatprep.mubr.f32.mxu0 0.0
    %1739 = vmatmul.mubr.f32.gmra.mxu0 %v1600
    %v1740 = vpop.f32.mrf.mxu0
    %v1741 = vadd.f32 0.0, %v1740
    %v1742 = vpop.f32.mrf.mxu0
    %v1743 = vadd.f32 0.0, %v1742
    %1744 = vmatprep.mubr.f32.mxu0 0.0
    %1745 = vmatmul.mubr.f32.gmra.mxu0 %v1602
    %v1746 = vpop.f32.mrf.mxu0
    %v1747 = vadd.f32 0.0, %v1746
    %v1748 = vpop.f32.mrf.mxu0
    %v1749 = vadd.f32 0.0, %v1748
    %1750 = vmatprep.mubr.f32.mxu0 0.0
    %1751 = vmatmul.mubr.f32.gmra.mxu0 %v1604
    %v1752 = vpop.f32.mrf.mxu0
    %v1753 = vadd.f32 0.0, %v1752
    %v1754 = vpop.f32.mrf.mxu0
    %v1755 = vadd.f32 0.0, %v1754
    %1756 = vmatprep.mubr.f32.mxu0 0.0
    %1757 = vmatmul.mubr.f32.gmra.mxu0 %v1606
    %v1758 = vpop.f32.mrf.mxu0
    %v1759 = vadd.f32 0.0, %v1758
    %v1760 = vpop.f32.mrf.mxu0
    %v1761 = vadd.f32 0.0, %v1760
    %1762 = vmatprep.mubr.f32.mxu0 0.0
    %1763 = vmatmul.mubr.f32.gmra.mxu0 %v1608
    %v1764 = vpop.f32.mrf.mxu0
    %v1765 = vadd.f32 0.0, %v1764
    %v1766 = vpop.f32.mrf.mxu0
    %v1767 = vadd.f32 0.0, %v1766
    %1768 = vmatprep.mubr.f32.mxu0 0.0
    %1769 = vmatmul.mubr.f32.gmra.mxu0 %v1610
    %v1770 = vpop.f32.mrf.mxu0
    %v1771 = vadd.f32 0.0, %v1770
    %v1772 = vpop.f32.mrf.mxu0
    %v1773 = vadd.f32 0.0, %v1772
    %1774 = vmatprep.mubr.f32.mxu0 0.0
    %1775 = vmatmul.mubr.f32.gmra.mxu0 %v1612
    %v1776 = vpop.f32.mrf.mxu0
    %v1777 = vadd.f32 0.0, %v1776
    %v1778 = vpop.f32.mrf.mxu0
    %v1779 = vadd.f32 0.0, %v1778
    %1780 = vmatprep.mubr.f32.mxu0 0.0
    %1781 = vmatmul.mubr.f32.gmra.mxu0 %v1614
    %v1782 = vpop.f32.mrf.mxu0
    %v1783 = vadd.f32 0.0, %v1782
    %v1784 = vpop.f32.mrf.mxu0
    %v1785 = vadd.f32 0.0, %v1784
    %1786 = vmatprep.mubr.f32.mxu0 0.0
    %1787 = vmatmul.mubr.f32.gmra.mxu0 %v1616
    %v1788 = vpop.f32.mrf.mxu0
    %v1789 = vadd.f32 0.0, %v1788
    %v1790 = vpop.f32.mrf.mxu0
    %v1791 = vadd.f32 0.0, %v1790
    %1792 = vmatprep.mubr.f32.mxu0 0.0
    %1793 = vmatmul.mubr.f32.gmra.mxu0 %v1618
    %v1794 = vpop.f32.mrf.mxu0
    %v1795 = vadd.f32 0.0, %v1794
    %v1796 = vpop.f32.mrf.mxu0
    %v1797 = vadd.f32 0.0, %v1796
    %1798 = vmatprep.mubr.f32.mxu0 0.0
    %1799 = vmatmul.mubr.f32.gmra.mxu0 %v1620
    %v1800 = vpop.f32.mrf.mxu0
    %v1801 = vadd.f32 0.0, %v1800
    %v1802 = vpop.f32.mrf.mxu0
    %v1803 = vadd.f32 0.0, %v1802
    %1804 = vmatprep.mubr.f32.mxu0 0.0
    %1805 = vmatmul.mubr.f32.gmra.mxu0 %v1622
    %v1806 = vpop.f32.mrf.mxu0
    %v1807 = vadd.f32 0.0, %v1806
    %v1808 = vpop.f32.mrf.mxu0
    %v1809 = vadd.f32 0.0, %v1808
    %1810 = vmatprep.mubr.f32.mxu0 0.0
    %1811 = vmatmul.mubr.f32.gmra.mxu0 %v1624
    %v1812 = vpop.f32.mrf.mxu0
    %v1813 = vadd.f32 0.0, %v1812
    %v1814 = vpop.f32.mrf.mxu0
    %v1815 = vadd.f32 0.0, %v1814
    %1816 = vmatprep.mubr.f32.mxu0 0.0
    %1817 = vmatmul.mubr.f32.gmra.mxu0 %v1626
    %v1818 = vpop.f32.mrf.mxu0
    %v1819 = vadd.f32 0.0, %v1818
    %v1820 = vpop.f32.mrf.mxu0
    %v1821 = vadd.f32 0.0, %v1820
    %1822 = vmatprep.mubr.f32.mxu0 0.0
    %1823 = vmatmul.mubr.f32.gmra.mxu0 %v1628
    %v1824 = vpop.f32.mrf.mxu0
    %v1825 = vadd.f32 0.0, %v1824
    %v1826 = vpop.f32.mrf.mxu0
    %v1827 = vadd.f32 0.0, %v1826
    %1828 = vmatprep.mubr.f32.mxu0 0.0
    %1829 = vmatmul.mubr.f32.gmra.mxu0 %v1630
    %v1830 = vpop.f32.mrf.mxu0
    %v1831 = vadd.f32 0.0, %v1830
    %v1832 = vpop.f32.mrf.mxu0
    %v1833 = vadd.f32 0.0, %v1832
    %1834 = vmatprep.mubr.f32.mxu0 0.0
    %1835 = vmatmul.mubr.f32.gmra.mxu0 %v1632
    %v1836 = vpop.f32.mrf.mxu0
    %v1837 = vadd.f32 0.0, %v1836
    %v1838 = vpop.f32.mrf.mxu0
    %v1839 = vadd.f32 0.0, %v1838
    %1840 = vmatprep.mubr.f32.mxu0 0.0
    %1841 = vmatmul.mubr.f32.gmra.mxu0 %v1634
    %v1842 = vpop.f32.mrf.mxu0
    %v1843 = vadd.f32 0.0, %v1842
    %v1844 = vpop.f32.mrf.mxu0
    %v1845 = vadd.f32 0.0, %v1844
    %1846 = vmatprep.mubr.f32.mxu0 0.0
    %1847 = vmatmul.mubr.f32.gmra.mxu0 %v1636
    %v1848 = vpop.f32.mrf.mxu0
    %v1849 = vadd.f32 0.0, %v1848
    %v1850 = vpop.f32.mrf.mxu0
    %v1851 = vadd.f32 0.0, %v1850
    %1852 = vdwg.mxu0
    %v1853 = vadd.f32 %v1477, %v1711
    %v1854 = vadd.f32 %v1478, %v1713
    %v1855 = vadd.f32 %v1479, %v1717
    %v1856 = vadd.f32 %v1480, %v1719
    %v1857 = vadd.f32 %v1481, %v1723
    %v1858 = vadd.f32 %v1482, %v1725
    %v1859 = vadd.f32 %v1483, %v1729
    %v1860 = vadd.f32 %v1484, %v1731
    %v1861 = vadd.f32 %v1485, %v1735
    %v1862 = vadd.f32 %v1486, %v1737
    %v1863 = vadd.f32 %v1487, %v1741
    %v1864 = vadd.f32 %v1488, %v1743
    %v1865 = vadd.f32 %v1489, %v1747
    %v1866 = vadd.f32 %v1490, %v1749
    %v1867 = vadd.f32 %v1491, %v1753
    %v1868 = vadd.f32 %v1492, %v1755
    %v1869 = vadd.f32 %v1493, %v1759
    %v1870 = vadd.f32 %v1494, %v1761
    %v1871 = vadd.f32 %v1495, %v1765
    %v1872 = vadd.f32 %v1496, %v1767
    %v1873 = vadd.f32 %v1497, %v1771
    %v1874 = vadd.f32 %v1498, %v1773
    %v1875 = vadd.f32 %v1499, %v1777
    %v1876 = vadd.f32 %v1500, %v1779
    %v1877 = vadd.f32 %v1501, %v1783
    %v1878 = vadd.f32 %v1502, %v1785
    %v1879 = vadd.f32 %v1503, %v1789
    %v1880 = vadd.f32 %v1504, %v1791
    %v1881 = vadd.f32 %v1505, %v1795
    %v1882 = vadd.f32 %v1506, %v1797
    %v1883 = vadd.f32 %v1507, %v1801
    %v1884 = vadd.f32 %v1508, %v1803
    %v1885 = vadd.f32 %v1509, %v1807
    %v1886 = vadd.f32 %v1510, %v1809
    %v1887 = vadd.f32 %v1511, %v1813
    %v1888 = vadd.f32 %v1512, %v1815
    %v1889 = vadd.f32 %v1513, %v1819
    %v1890 = vadd.f32 %v1514, %v1821
    %v1891 = vadd.f32 %v1515, %v1825
    %v1892 = vadd.f32 %v1516, %v1827
    %v1893 = vadd.f32 %v1517, %v1831
    %v1894 = vadd.f32 %v1518, %v1833
    %v1895 = vadd.f32 %v1519, %v1837
    %v1896 = vadd.f32 %v1520, %v1839
    %v1897 = vadd.f32 %v1521, %v1843
    %v1898 = vadd.f32 %v1522, %v1845
    %v1899 = vadd.f32 %v1523, %v1849
    %v1900 = vadd.f32 %v1524, %v1851
    %v1901 = vld [vmem:[%s2] sm:$0x3]
    %v1903 = vlaneseq
    %v1904 = vshrl.u32 %v1903, 7
    %v1905 = vsub.s32 0, %v1904
    %v1906 = vrot.slane %v1901, %v1905
    %v1907 = vlaneseq
    %v1908 = vshrl.u32 %v1907, 7
    %v1909 = vsub.s32 1, %v1908
    %v1910 = vrot.slane %v1901, %v1909
    %v1913 = vadd.f32 %v1853, %v1906
    %v1914 = vadd.f32 %v1854, %v1910
    %v1915 = vadd.f32 %v1855, %v1906
    %v1916 = vadd.f32 %v1856, %v1910
    %v1917 = vadd.f32 %v1857, %v1906
    %v1918 = vadd.f32 %v1858, %v1910
    %v1919 = vadd.f32 %v1859, %v1906
    %v1920 = vadd.f32 %v1860, %v1910
    %v1921 = vadd.f32 %v1861, %v1906
    %v1922 = vadd.f32 %v1862, %v1910
    %v1923 = vadd.f32 %v1863, %v1906
    %v1924 = vadd.f32 %v1864, %v1910
    %v1925 = vadd.f32 %v1865, %v1906
    %v1926 = vadd.f32 %v1866, %v1910
    %v1927 = vadd.f32 %v1867, %v1906
    %v1928 = vadd.f32 %v1868, %v1910
    %v1929 = vadd.f32 %v1869, %v1906
    %v1930 = vadd.f32 %v1870, %v1910
    %v1931 = vadd.f32 %v1871, %v1906
    %v1932 = vadd.f32 %v1872, %v1910
    %v1933 = vadd.f32 %v1873, %v1906
    %v1934 = vadd.f32 %v1874, %v1910
    %v1935 = vadd.f32 %v1875, %v1906
    %v1936 = vadd.f32 %v1876, %v1910
    %v1937 = vadd.f32 %v1877, %v1906
    %v1938 = vadd.f32 %v1878, %v1910
    %v1939 = vadd.f32 %v1879, %v1906
    %v1940 = vadd.f32 %v1880, %v1910
    %v1941 = vadd.f32 %v1881, %v1906
    %v1942 = vadd.f32 %v1882, %v1910
    %v1943 = vadd.f32 %v1883, %v1906
    %v1944 = vadd.f32 %v1884, %v1910
    %v1945 = vadd.f32 %v1885, %v1906
    %v1946 = vadd.f32 %v1886, %v1910
    %v1947 = vadd.f32 %v1887, %v1906
    %v1948 = vadd.f32 %v1888, %v1910
    %v1949 = vadd.f32 %v1889, %v1906
    %v1950 = vadd.f32 %v1890, %v1910
    %v1951 = vadd.f32 %v1891, %v1906
    %v1952 = vadd.f32 %v1892, %v1910
    %v1953 = vadd.f32 %v1893, %v1906
    %v1954 = vadd.f32 %v1894, %v1910
    %v1955 = vadd.f32 %v1895, %v1906
    %v1956 = vadd.f32 %v1896, %v1910
    %v1957 = vadd.f32 %v1897, %v1906
    %v1958 = vadd.f32 %v1898, %v1910
    %v1959 = vadd.f32 %v1899, %v1906
    %v1960 = vadd.f32 %v1900, %v1910
    %v1961 = vmax.f32 %v1913, 0.0
    %v1962 = vmax.f32 %v1914, 0.0
    %v1963 = vmax.f32 %v1915, 0.0
    %v1964 = vmax.f32 %v1916, 0.0
    %v1965 = vmax.f32 %v1917, 0.0
    %v1966 = vmax.f32 %v1918, 0.0
    %v1967 = vmax.f32 %v1919, 0.0
    %v1968 = vmax.f32 %v1920, 0.0
    %v1969 = vmax.f32 %v1921, 0.0
    %v1970 = vmax.f32 %v1922, 0.0
    %v1971 = vmax.f32 %v1923, 0.0
    %v1972 = vmax.f32 %v1924, 0.0
    %v1973 = vmax.f32 %v1925, 0.0
    %v1974 = vmax.f32 %v1926, 0.0
    %v1975 = vmax.f32 %v1927, 0.0
    %v1976 = vmax.f32 %v1928, 0.0
    %v1977 = vmax.f32 %v1929, 0.0
    %v1978 = vmax.f32 %v1930, 0.0
    %v1979 = vmax.f32 %v1931, 0.0
    %v1980 = vmax.f32 %v1932, 0.0
    %v1981 = vmax.f32 %v1933, 0.0
    %v1982 = vmax.f32 %v1934, 0.0
    %v1983 = vmax.f32 %v1935, 0.0
    %v1984 = vmax.f32 %v1936, 0.0
    %v1985 = vmax.f32 %v1937, 0.0
    %v1986 = vmax.f32 %v1938, 0.0
    %v1987 = vmax.f32 %v1939, 0.0
    %v1988 = vmax.f32 %v1940, 0.0
    %v1989 = vmax.f32 %v1941, 0.0
    %v1990 = vmax.f32 %v1942, 0.0
    %v1991 = vmax.f32 %v1943, 0.0
    %v1992 = vmax.f32 %v1944, 0.0
    %v1993 = vmax.f32 %v1945, 0.0
    %v1994 = vmax.f32 %v1946, 0.0
    %v1995 = vmax.f32 %v1947, 0.0
    %v1996 = vmax.f32 %v1948, 0.0
    %v1997 = vmax.f32 %v1949, 0.0
    %v1998 = vmax.f32 %v1950, 0.0
    %v1999 = vmax.f32 %v1951, 0.0
    %v2000 = vmax.f32 %v1952, 0.0
    %v2001 = vmax.f32 %v1953, 0.0
    %v2002 = vmax.f32 %v1954, 0.0
    %v2003 = vmax.f32 %v1955, 0.0
    %v2004 = vmax.f32 %v1956, 0.0
    %v2005 = vmax.f32 %v1957, 0.0
    %v2006 = vmax.f32 %v1958, 0.0
    %v2007 = vmax.f32 %v1959, 0.0
    %v2008 = vmax.f32 %v1960, 0.0
    %v2009 = vld [vmem:[#allocation2] sm:$0xff]
    %v2010 = vld [vmem:[#allocation2 + $0x8] sm:$0xff]
    %v2011 = vld [vmem:[#allocation2 + $0x10] sm:$0xff]
    %v2012 = vld [vmem:[#allocation2 + $0x18] sm:$0xff]
    %v2013 = vld [vmem:[#allocation2 + $0x20] sm:$0xff]
    %v2014 = vld [vmem:[#allocation2 + $0x28] sm:$0xff]
    %v2015 = vld [vmem:[#allocation2 + $0x30] sm:$0xff]
    %v2016 = vld [vmem:[#allocation2 + $0x38] sm:$0xff]
    %v2017 = vld [vmem:[#allocation2 + $0x40] sm:$0xff]
    %v2018 = vld [vmem:[#allocation2 + $0x48] sm:$0xff]
    %v2019 = vld [vmem:[#allocation2 + $0x50] sm:$0xff]
    %v2020 = vld [vmem:[#allocation2 + $0x58] sm:$0xff]
    %v2021 = vld [vmem:[#allocation2 + $0x60] sm:$0xff]
    %v2022 = vld [vmem:[#allocation2 + $0x68] sm:$0xff]
    %v2023 = vld [vmem:[#allocation2 + $0x70] sm:$0xff]
    %v2024 = vld [vmem:[#allocation2 + $0x78] sm:$0xff]
    %v2025 = vld [vmem:[#allocation2 + $0x80] sm:$0xff]
    %v2026 = vld [vmem:[#allocation2 + $0x88] sm:$0xff]
    %vm2027 = vcmask 130048
    %v2029 = vsel %vm2027, %v1962, 0
    %v2032 = vsel %vm2027, %v1964, 0
    %v2035 = vsel %vm2027, %v1966, 0
    %v2038 = vsel %vm2027, %v1968, 0
    %v2041 = vsel %vm2027, %v1970, 0
    %v2044 = vsel %vm2027, %v1972, 0
    %v2047 = vsel %vm2027, %v1974, 0
    %v2050 = vsel %vm2027, %v1976, 0
    %v2053 = vsel %vm2027, %v1978, 0
    %v2056 = vsel %vm2027, %v1980, 0
    %v2059 = vsel %vm2027, %v1982, 0
    %v2062 = vsel %vm2027, %v1984, 0
    %v2065 = vsel %vm2027, %v1986, 0
    %v2068 = vsel %vm2027, %v1988, 0
    %v2071 = vsel %vm2027, %v1990, 0
    %v2074 = vsel %vm2027, %v1992, 0
    %v2077 = vsel %vm2027, %v1994, 0
    %v2080 = vsel %vm2027, %v1996, 0
    %v2083 = vsel %vm2027, %v1998, 0
    %v2086 = vsel %vm2027, %v2000, 0
    %v2089 = vsel %vm2027, %v2002, 0
    %v2092 = vsel %vm2027, %v2004, 0
    %v2095 = vsel %vm2027, %v2006, 0
    %v2098 = vsel %vm2027, %v2008, 0
    %2100 = vmatprep.subr.mxu0 0.0
    %2101 = vmatpush1.msra.mxu0 %v2024
    %2102 = vmatprep.subr.mxu0 0.0
    %2103 = vmatpush1.msra.mxu0 %v2023
    %2104 = vmatprep.subr.mxu0 0.0
    %2105 = vmatpush1.msra.mxu0 %v2022
    %2106 = vmatprep.subr.mxu0 0.0
    %2107 = vmatpush1.msra.mxu0 %v2021
    %2108 = vmatprep.subr.mxu0 0.0
    %2109 = vmatpush1.msra.mxu0 %v2020
    %2110 = vmatprep.subr.mxu0 0.0
    %2111 = vmatpush1.msra.mxu0 %v2019
    %2112 = vmatprep.subr.mxu0 0.0
    %2113 = vmatpush1.msra.mxu0 %v2018
    %2114 = vmatprep.subr.mxu0 0.0
    %2115 = vmatpush1.msra.mxu0 %v2017
    %2116 = vmatprep.subr.mxu0 0.0
    %2117 = vmatpush1.msra.mxu0 %v2016
    %2118 = vmatprep.subr.mxu0 0.0
    %2119 = vmatpush1.msra.mxu0 %v2015
    %2120 = vmatprep.subr.mxu0 0.0
    %2121 = vmatpush1.msra.mxu0 %v2014
    %2122 = vmatprep.subr.mxu0 0.0
    %2123 = vmatpush1.msra.mxu0 %v2013
    %2124 = vmatprep.subr.mxu0 0.0
    %2125 = vmatpush1.msra.mxu0 %v2012
    %2126 = vmatprep.subr.mxu0 0.0
    %2127 = vmatpush1.msra.mxu0 %v2011
    %2128 = vmatprep.subr.mxu0 0.0
    %2129 = vmatpush1.msra.mxu0 %v2010
    %2130 = vmatprep.subr.mxu0 0.0
    %2131 = vmatpush1.msra.mxu0 %v2009
    %2132 = vmatprep.subr.mxu0 0.0
    %2133 = vmatpush2.msra.mxu0 0.0
    %2134 = vmatprep.subr.mxu0 0.0
    %2135 = vmatpush2.msra.mxu0 0.0
    %2136 = vmatprep.subr.mxu0 0.0
    %2137 = vmatpush2.msra.mxu0 0.0
    %2138 = vmatprep.subr.mxu0 0.0
    %2139 = vmatpush2.msra.mxu0 0.0
    %2140 = vmatprep.subr.mxu0 0.0
    %2141 = vmatpush2.msra.mxu0 0.0
    %2142 = vmatprep.subr.mxu0 0.0
    %2143 = vmatpush2.msra.mxu0 0.0
    %2144 = vmatprep.subr.mxu0 0.0
    %2145 = vmatpush2.msra.mxu0 0.0
    %2146 = vmatprep.subr.mxu0 0.0
    %2147 = vmatpush2.msra.mxu0 0.0
    %2148 = vmatprep.subr.mxu0 0.0
    %2149 = vmatpush2.msra.mxu0 0.0
    %2150 = vmatprep.subr.mxu0 0.0
    %2151 = vmatpush2.msra.mxu0 0.0
    %2152 = vmatprep.subr.mxu0 0.0
    %2153 = vmatpush2.msra.mxu0 0.0
    %2154 = vmatprep.subr.mxu0 0.0
    %2155 = vmatpush2.msra.mxu0 0.0
    %2156 = vmatprep.subr.mxu0 0.0
    %2157 = vmatpush2.msra.mxu0 0.0
    %2158 = vmatprep.subr.mxu0 0.0
    %2159 = vmatpush2.msra.mxu0 0.0
    %2160 = vmatprep.subr.mxu0 0.0
    %2161 = vmatpush2.msra.mxu0 %v2026
    %2162 = vmatprep.subr.mxu0 0.0
    %2163 = vmatpush2.msra.mxu0 %v2025
    %2164 = vmatprep.mubr.f32.mxu0 %v2029
    %2165 = vmatmul.mubr.f32.gmra.mxu0 %v1961
    %v2166 = vpop.f32.mrf.mxu0
    %v2167 = vadd.f32 0.0, %v2166
    %v2168 = vpop.f32.mrf.mxu0
    %2169 = vmatprep.mubr.f32.mxu0 %v2032
    %2170 = vmatmul.mubr.f32.gmra.mxu0 %v1963
    %v2171 = vpop.f32.mrf.mxu0
    %v2172 = vadd.f32 0.0, %v2171
    %v2173 = vpop.f32.mrf.mxu0
    %2174 = vmatprep.mubr.f32.mxu0 %v2035
    %2175 = vmatmul.mubr.f32.gmra.mxu0 %v1965
    %v2176 = vpop.f32.mrf.mxu0
    %v2177 = vadd.f32 0.0, %v2176
    %v2178 = vpop.f32.mrf.mxu0
    %2179 = vmatprep.mubr.f32.mxu0 %v2038
    %2180 = vmatmul.mubr.f32.gmra.mxu0 %v1967
    %v2181 = vpop.f32.mrf.mxu0
    %v2182 = vadd.f32 0.0, %v2181
    %v2183 = vpop.f32.mrf.mxu0
    %2184 = vmatprep.mubr.f32.mxu0 %v2041
    %2185 = vmatmul.mubr.f32.gmra.mxu0 %v1969
    %v2186 = vpop.f32.mrf.mxu0
    %v2187 = vadd.f32 0.0, %v2186
    %v2188 = vpop.f32.mrf.mxu0
    %2189 = vmatprep.mubr.f32.mxu0 %v2044
    %2190 = vmatmul.mubr.f32.gmra.mxu0 %v1971
    %v2191 = vpop.f32.mrf.mxu0
    %v2192 = vadd.f32 0.0, %v2191
    %v2193 = vpop.f32.mrf.mxu0
    %2194 = vmatprep.mubr.f32.mxu0 %v2047
    %2195 = vmatmul.mubr.f32.gmra.mxu0 %v1973
    %v2196 = vpop.f32.mrf.mxu0
    %v2197 = vadd.f32 0.0, %v2196
    %v2198 = vpop.f32.mrf.mxu0
    %2199 = vmatprep.mubr.f32.mxu0 %v2050
    %2200 = vmatmul.mubr.f32.gmra.mxu0 %v1975
    %v2201 = vpop.f32.mrf.mxu0
    %v2202 = vadd.f32 0.0, %v2201
    %v2203 = vpop.f32.mrf.mxu0
    %2204 = vmatprep.mubr.f32.mxu0 %v2053
    %2205 = vmatmul.mubr.f32.gmra.mxu0 %v1977
    %v2206 = vpop.f32.mrf.mxu0
    %v2207 = vadd.f32 0.0, %v2206
    %v2208 = vpop.f32.mrf.mxu0
    %2209 = vmatprep.mubr.f32.mxu0 %v2056
    %2210 = vmatmul.mubr.f32.gmra.mxu0 %v1979
    %v2211 = vpop.f32.mrf.mxu0
    %v2212 = vadd.f32 0.0, %v2211
    %v2213 = vpop.f32.mrf.mxu0
    %2214 = vmatprep.mubr.f32.mxu0 %v2059
    %2215 = vmatmul.mubr.f32.gmra.mxu0 %v1981
    %v2216 = vpop.f32.mrf.mxu0
    %v2217 = vadd.f32 0.0, %v2216
    %v2218 = vpop.f32.mrf.mxu0
    %2219 = vmatprep.mubr.f32.mxu0 %v2062
    %2220 = vmatmul.mubr.f32.gmra.mxu0 %v1983
    %v2221 = vpop.f32.mrf.mxu0
    %v2222 = vadd.f32 0.0, %v2221
    %v2223 = vpop.f32.mrf.mxu0
    %2224 = vmatprep.mubr.f32.mxu0 %v2065
    %2225 = vmatmul.mubr.f32.gmra.mxu0 %v1985
    %v2226 = vpop.f32.mrf.mxu0
    %v2227 = vadd.f32 0.0, %v2226
    %v2228 = vpop.f32.mrf.mxu0
    %2229 = vmatprep.mubr.f32.mxu0 %v2068
    %2230 = vmatmul.mubr.f32.gmra.mxu0 %v1987
    %v2231 = vpop.f32.mrf.mxu0
    %v2232 = vadd.f32 0.0, %v2231
    %v2233 = vpop.f32.mrf.mxu0
    %2234 = vmatprep.mubr.f32.mxu0 %v2071
    %2235 = vmatmul.mubr.f32.gmra.mxu0 %v1989
    %v2236 = vpop.f32.mrf.mxu0
    %v2237 = vadd.f32 0.0, %v2236
    %v2238 = vpop.f32.mrf.mxu0
    %2239 = vmatprep.mubr.f32.mxu0 %v2074
    %2240 = vmatmul.mubr.f32.gmra.mxu0 %v1991
    %v2241 = vpop.f32.mrf.mxu0
    %v2242 = vadd.f32 0.0, %v2241
    %v2243 = vpop.f32.mrf.mxu0
    %2244 = vmatprep.mubr.f32.mxu0 %v2077
    %2245 = vmatmul.mubr.f32.gmra.mxu0 %v1993
    %v2246 = vpop.f32.mrf.mxu0
    %v2247 = vadd.f32 0.0, %v2246
    %v2248 = vpop.f32.mrf.mxu0
    %2249 = vmatprep.mubr.f32.mxu0 %v2080
    %2250 = vmatmul.mubr.f32.gmra.mxu0 %v1995
    %v2251 = vpop.f32.mrf.mxu0
    %v2252 = vadd.f32 0.0, %v2251
    %v2253 = vpop.f32.mrf.mxu0
    %2254 = vmatprep.mubr.f32.mxu0 %v2083
    %2255 = vmatmul.mubr.f32.gmra.mxu0 %v1997
    %v2256 = vpop.f32.mrf.mxu0
    %v2257 = vadd.f32 0.0, %v2256
    %v2258 = vpop.f32.mrf.mxu0
    %2259 = vmatprep.mubr.f32.mxu0 %v2086
    %2260 = vmatmul.mubr.f32.gmra.mxu0 %v1999
    %v2261 = vpop.f32.mrf.mxu0
    %v2262 = vadd.f32 0.0, %v2261
    %v2263 = vpop.f32.mrf.mxu0
    %2264 = vmatprep.mubr.f32.mxu0 %v2089
    %2265 = vmatmul.mubr.f32.gmra.mxu0 %v2001
    %v2266 = vpop.f32.mrf.mxu0
    %v2267 = vadd.f32 0.0, %v2266
    %v2268 = vpop.f32.mrf.mxu0
    %2269 = vmatprep.mubr.f32.mxu0 %v2092
    %2270 = vmatmul.mubr.f32.gmra.mxu0 %v2003
    %v2271 = vpop.f32.mrf.mxu0
    %v2272 = vadd.f32 0.0, %v2271
    %v2273 = vpop.f32.mrf.mxu0
    %2274 = vmatprep.mubr.f32.mxu0 %v2095
    %2275 = vmatmul.mubr.f32.gmra.mxu0 %v2005
    %v2276 = vpop.f32.mrf.mxu0
    %v2277 = vadd.f32 0.0, %v2276
    %v2278 = vpop.f32.mrf.mxu0
    %2279 = vmatprep.mubr.f32.mxu0 %v2098
    %2280 = vmatmul.mubr.f32.gmra.mxu0 %v2007
    %v2281 = vpop.f32.mrf.mxu0
    %v2282 = vadd.f32 0.0, %v2281
    %v2283 = vpop.f32.mrf.mxu0
    %2284 = vdwg.mxu0
    %v2285 = vld [vmem:[#allocation4] sm:$0xff]
    %v2286 = vld [vmem:[#allocation4 + $0x8] sm:$0xff]
    %v2287 = vld [vmem:[#allocation4 + $0x10] sm:$0xff]
    %v2288 = vld [vmem:[#allocation4 + $0x18] sm:$0xff]
    %v2289 = vld [vmem:[#allocation4 + $0x20] sm:$0xff]
    %v2290 = vld [vmem:[#allocation4 + $0x28] sm:$0xff]
    %v2291 = vld [vmem:[#allocation4 + $0x30] sm:$0xff]
    %v2292 = vld [vmem:[#allocation4 + $0x38] sm:$0xff]
    %v2293 = vld [vmem:[#allocation4 + $0x40] sm:$0xff]
    %v2294 = vld [vmem:[#allocation4 + $0x48] sm:$0xff]
    %v2295 = vld [vmem:[#allocation4 + $0x50] sm:$0xff]
    %v2296 = vld [vmem:[#allocation4 + $0x58] sm:$0xff]
    %v2297 = vld [vmem:[#allocation4 + $0x60] sm:$0xff]
    %v2298 = vld [vmem:[#allocation4 + $0x68] sm:$0xff]
    %v2299 = vld [vmem:[#allocation4 + $0x70] sm:$0xff]
    %v2300 = vld [vmem:[#allocation4 + $0x78] sm:$0xff]
    %v2301 = vld [vmem:[#allocation4 + $0x80] sm:$0xff]
    %v2302 = vld [vmem:[#allocation4 + $0x88] sm:$0xff]
    %2303 = vmatprep.subr.mxu0 0.0
    %2304 = vmatpush1.msra.mxu0 %v2300
    %2305 = vmatprep.subr.mxu0 0.0
    %2306 = vmatpush1.msra.mxu0 %v2299
    %2307 = vmatprep.subr.mxu0 0.0
    %2308 = vmatpush1.msra.mxu0 %v2298
    %2309 = vmatprep.subr.mxu0 0.0
    %2310 = vmatpush1.msra.mxu0 %v2297
    %2311 = vmatprep.subr.mxu0 0.0
    %2312 = vmatpush1.msra.mxu0 %v2296
    %2313 = vmatprep.subr.mxu0 0.0
    %2314 = vmatpush1.msra.mxu0 %v2295
    %2315 = vmatprep.subr.mxu0 0.0
    %2316 = vmatpush1.msra.mxu0 %v2294
    %2317 = vmatprep.subr.mxu0 0.0
    %2318 = vmatpush1.msra.mxu0 %v2293
    %2319 = vmatprep.subr.mxu0 0.0
    %2320 = vmatpush1.msra.mxu0 %v2292
    %2321 = vmatprep.subr.mxu0 0.0
    %2322 = vmatpush1.msra.mxu0 %v2291
    %2323 = vmatprep.subr.mxu0 0.0
    %2324 = vmatpush1.msra.mxu0 %v2290
    %2325 = vmatprep.subr.mxu0 0.0
    %2326 = vmatpush1.msra.mxu0 %v2289
    %2327 = vmatprep.subr.mxu0 0.0
    %2328 = vmatpush1.msra.mxu0 %v2288
    %2329 = vmatprep.subr.mxu0 0.0
    %2330 = vmatpush1.msra.mxu0 %v2287
    %2331 = vmatprep.subr.mxu0 0.0
    %2332 = vmatpush1.msra.mxu0 %v2286
    %2333 = vmatprep.subr.mxu0 0.0
    %2334 = vmatpush1.msra.mxu0 %v2285
    %2335 = vmatprep.subr.mxu0 0.0
    %2336 = vmatpush2.msra.mxu0 0.0
    %2337 = vmatprep.subr.mxu0 0.0
    %2338 = vmatpush2.msra.mxu0 0.0
    %2339 = vmatprep.subr.mxu0 0.0
    %2340 = vmatpush2.msra.mxu0 0.0
    %2341 = vmatprep.subr.mxu0 0.0
    %2342 = vmatpush2.msra.mxu0 0.0
    %2343 = vmatprep.subr.mxu0 0.0
    %2344 = vmatpush2.msra.mxu0 0.0
    %2345 = vmatprep.subr.mxu0 0.0
    %2346 = vmatpush2.msra.mxu0 0.0
    %2347 = vmatprep.subr.mxu0 0.0
    %2348 = vmatpush2.msra.mxu0 0.0
    %2349 = vmatprep.subr.mxu0 0.0
    %2350 = vmatpush2.msra.mxu0 0.0
    %2351 = vmatprep.subr.mxu0 0.0
    %2352 = vmatpush2.msra.mxu0 0.0
    %2353 = vmatprep.subr.mxu0 0.0
    %2354 = vmatpush2.msra.mxu0 0.0
    %2355 = vmatprep.subr.mxu0 0.0
    %2356 = vmatpush2.msra.mxu0 0.0
    %2357 = vmatprep.subr.mxu0 0.0
    %2358 = vmatpush2.msra.mxu0 0.0
    %2359 = vmatprep.subr.mxu0 0.0
    %2360 = vmatpush2.msra.mxu0 0.0
    %2361 = vmatprep.subr.mxu0 0.0
    %2362 = vmatpush2.msra.mxu0 0.0
    %2363 = vmatprep.subr.mxu0 0.0
    %2364 = vmatpush2.msra.mxu0 %v2302
    %2365 = vmatprep.subr.mxu0 0.0
    %2366 = vmatpush2.msra.mxu0 %v2301
    %2367 = vmatprep.mubr.f32.mxu0 %v2029
    %2368 = vmatmul.mubr.f32.gmra.mxu0 %v1961
    %v2369 = vpop.f32.mrf.mxu0
    %v2370 = vadd.f32 0.0, %v2369
    %v2371 = vpop.f32.mrf.mxu0
    %2372 = vmatprep.mubr.f32.mxu0 %v2032
    %2373 = vmatmul.mubr.f32.gmra.mxu0 %v1963
    %v2374 = vpop.f32.mrf.mxu0
    %v2375 = vadd.f32 0.0, %v2374
    %v2376 = vpop.f32.mrf.mxu0
    %2377 = vmatprep.mubr.f32.mxu0 %v2035
    %2378 = vmatmul.mubr.f32.gmra.mxu0 %v1965
    %v2379 = vpop.f32.mrf.mxu0
    %v2380 = vadd.f32 0.0, %v2379
    %v2381 = vpop.f32.mrf.mxu0
    %2382 = vmatprep.mubr.f32.mxu0 %v2038
    %2383 = vmatmul.mubr.f32.gmra.mxu0 %v1967
    %v2384 = vpop.f32.mrf.mxu0
    %v2385 = vadd.f32 0.0, %v2384
    %v2386 = vpop.f32.mrf.mxu0
    %2387 = vmatprep.mubr.f32.mxu0 %v2041
    %2388 = vmatmul.mubr.f32.gmra.mxu0 %v1969
    %v2389 = vpop.f32.mrf.mxu0
    %v2390 = vadd.f32 0.0, %v2389
    %v2391 = vpop.f32.mrf.mxu0
    %2392 = vmatprep.mubr.f32.mxu0 %v2044
    %2393 = vmatmul.mubr.f32.gmra.mxu0 %v1971
    %v2394 = vpop.f32.mrf.mxu0
    %v2395 = vadd.f32 0.0, %v2394
    %v2396 = vpop.f32.mrf.mxu0
    %2397 = vmatprep.mubr.f32.mxu0 %v2047
    %2398 = vmatmul.mubr.f32.gmra.mxu0 %v1973
    %v2399 = vpop.f32.mrf.mxu0
    %v2400 = vadd.f32 0.0, %v2399
    %v2401 = vpop.f32.mrf.mxu0
    %2402 = vmatprep.mubr.f32.mxu0 %v2050
    %2403 = vmatmul.mubr.f32.gmra.mxu0 %v1975
    %v2404 = vpop.f32.mrf.mxu0
    %v2405 = vadd.f32 0.0, %v2404
    %v2406 = vpop.f32.mrf.mxu0
    %2407 = vmatprep.mubr.f32.mxu0 %v2053
    %2408 = vmatmul.mubr.f32.gmra.mxu0 %v1977
    %v2409 = vpop.f32.mrf.mxu0
    %v2410 = vadd.f32 0.0, %v2409
    %v2411 = vpop.f32.mrf.mxu0
    %2412 = vmatprep.mubr.f32.mxu0 %v2056
    %2413 = vmatmul.mubr.f32.gmra.mxu0 %v1979
    %v2414 = vpop.f32.mrf.mxu0
    %v2415 = vadd.f32 0.0, %v2414
    %v2416 = vpop.f32.mrf.mxu0
    %2417 = vmatprep.mubr.f32.mxu0 %v2059
    %2418 = vmatmul.mubr.f32.gmra.mxu0 %v1981
    %v2419 = vpop.f32.mrf.mxu0
    %v2420 = vadd.f32 0.0, %v2419
    %v2421 = vpop.f32.mrf.mxu0
    %2422 = vmatprep.mubr.f32.mxu0 %v2062
    %2423 = vmatmul.mubr.f32.gmra.mxu0 %v1983
    %v2424 = vpop.f32.mrf.mxu0
    %v2425 = vadd.f32 0.0, %v2424
    %v2426 = vpop.f32.mrf.mxu0
    %2427 = vmatprep.mubr.f32.mxu0 %v2065
    %2428 = vmatmul.mubr.f32.gmra.mxu0 %v1985
    %v2429 = vpop.f32.mrf.mxu0
    %v2430 = vadd.f32 0.0, %v2429
    %v2431 = vpop.f32.mrf.mxu0
    %2432 = vmatprep.mubr.f32.mxu0 %v2068
    %2433 = vmatmul.mubr.f32.gmra.mxu0 %v1987
    %v2434 = vpop.f32.mrf.mxu0
    %v2435 = vadd.f32 0.0, %v2434
    %v2436 = vpop.f32.mrf.mxu0
    %2437 = vmatprep.mubr.f32.mxu0 %v2071
    %2438 = vmatmul.mubr.f32.gmra.mxu0 %v1989
    %v2439 = vpop.f32.mrf.mxu0
    %v2440 = vadd.f32 0.0, %v2439
    %v2441 = vpop.f32.mrf.mxu0
    %2442 = vmatprep.mubr.f32.mxu0 %v2074
    %2443 = vmatmul.mubr.f32.gmra.mxu0 %v1991
    %v2444 = vpop.f32.mrf.mxu0
    %v2445 = vadd.f32 0.0, %v2444
    %v2446 = vpop.f32.mrf.mxu0
    %2447 = vmatprep.mubr.f32.mxu0 %v2077
    %2448 = vmatmul.mubr.f32.gmra.mxu0 %v1993
    %v2449 = vpop.f32.mrf.mxu0
    %v2450 = vadd.f32 0.0, %v2449
    %v2451 = vpop.f32.mrf.mxu0
    %2452 = vmatprep.mubr.f32.mxu0 %v2080
    %2453 = vmatmul.mubr.f32.gmra.mxu0 %v1995
    %v2454 = vpop.f32.mrf.mxu0
    %v2455 = vadd.f32 0.0, %v2454
    %v2456 = vpop.f32.mrf.mxu0
    %2457 = vmatprep.mubr.f32.mxu0 %v2083
    %2458 = vmatmul.mubr.f32.gmra.mxu0 %v1997
    %v2459 = vpop.f32.mrf.mxu0
    %v2460 = vadd.f32 0.0, %v2459
    %v2461 = vpop.f32.mrf.mxu0
    %2462 = vmatprep.mubr.f32.mxu0 %v2086
    %2463 = vmatmul.mubr.f32.gmra.mxu0 %v1999
    %v2464 = vpop.f32.mrf.mxu0
    %v2465 = vadd.f32 0.0, %v2464
    %v2466 = vpop.f32.mrf.mxu0
    %2467 = vmatprep.mubr.f32.mxu0 %v2089
    %2468 = vmatmul.mubr.f32.gmra.mxu0 %v2001
    %v2469 = vpop.f32.mrf.mxu0
    %v2470 = vadd.f32 0.0, %v2469
    %v2471 = vpop.f32.mrf.mxu0
    %2472 = vmatprep.mubr.f32.mxu0 %v2092
    %2473 = vmatmul.mubr.f32.gmra.mxu0 %v2003
    %v2474 = vpop.f32.mrf.mxu0
    %v2475 = vadd.f32 0.0, %v2474
    %v2476 = vpop.f32.mrf.mxu0
    %2477 = vmatprep.mubr.f32.mxu0 %v2095
    %2478 = vmatmul.mubr.f32.gmra.mxu0 %v2005
    %v2479 = vpop.f32.mrf.mxu0
    %v2480 = vadd.f32 0.0, %v2479
    %v2481 = vpop.f32.mrf.mxu0
    %2482 = vmatprep.mubr.f32.mxu0 %v2098
    %2483 = vmatmul.mubr.f32.gmra.mxu0 %v2007
    %v2484 = vpop.f32.mrf.mxu0
    %v2485 = vadd.f32 0.0, %v2484
    %v2486 = vpop.f32.mrf.mxu0
    %2487 = vdwg.mxu0
    %v2488 = vmax.f32 %v2167, %v2370
    %v2489 = vmax.f32 %v2172, %v2375
    %v2490 = vmax.f32 %v2177, %v2380
    %v2491 = vmax.f32 %v2182, %v2385
    %v2492 = vmax.f32 %v2187, %v2390
    %v2493 = vmax.f32 %v2192, %v2395
    %v2494 = vmax.f32 %v2197, %v2400
    %v2495 = vmax.f32 %v2202, %v2405
    %v2496 = vmax.f32 %v2207, %v2410
    %v2497 = vmax.f32 %v2212, %v2415
    %v2498 = vmax.f32 %v2217, %v2420
    %v2499 = vmax.f32 %v2222, %v2425
    %v2500 = vmax.f32 %v2227, %v2430
    %v2501 = vmax.f32 %v2232, %v2435
    %v2502 = vmax.f32 %v2237, %v2440
    %v2503 = vmax.f32 %v2242, %v2445
    %v2504 = vmax.f32 %v2247, %v2450
    %v2505 = vmax.f32 %v2252, %v2455
    %v2506 = vmax.f32 %v2257, %v2460
    %v2507 = vmax.f32 %v2262, %v2465
    %v2508 = vmax.f32 %v2267, %v2470
    %v2509 = vmax.f32 %v2272, %v2475
    %v2510 = vmax.f32 %v2277, %v2480
    %v2511 = vmax.f32 %v2282, %v2485
    %v2536 = vcombine.high %v2488, %v2488
    %v2538 = vunpack.c.l.s4 1983009808
    %v2539 = vunpack.c.0.s8 %v2538
    %v2540 = vlaneseq
    %v2541 = vshrl.u32 %v2540, 7
    %v2542 = vsub.s32 %v2539, %v2541
    %v2543 = vrot.slane %v2488, %v2542
    %v2545 = vunpack.c.l.s4 1983009808
    %v2546 = vunpack.c.0.s8 %v2545
    %v2547 = vlaneseq
    %v2548 = vshrl.u32 %v2547, 7
    %v2549 = vsub.s32 %v2546, %v2548
    %v2550 = vrot.slane %v2536, %v2549
    %v2551 = vcombine.high %v2543, %v2543
    %v2552 = vcombine.high %v2550, %v2550
    %v2553 = vcombine.high %v2489, %v2489
    %v2555 = vunpack.c.l.s4 1983009808
    %v2556 = vunpack.c.0.s8 %v2555
    %v2557 = vlaneseq
    %v2558 = vshrl.u32 %v2557, 7
    %v2559 = vsub.s32 %v2556, %v2558
    %v2560 = vrot.slane %v2489, %v2559
    %v2562 = vunpack.c.l.s4 1983009808
    %v2563 = vunpack.c.0.s8 %v2562
    %v2564 = vlaneseq
    %v2565 = vshrl.u32 %v2564, 7
    %v2566 = vsub.s32 %v2563, %v2565
    %v2567 = vrot.slane %v2553, %v2566
    %v2568 = vcombine.high %v2560, %v2560
    %v2569 = vcombine.high %v2567, %v2567
    %v2570 = vcombine.high %v2490, %v2490
    %v2572 = vunpack.c.l.s4 1983009808
    %v2573 = vunpack.c.0.s8 %v2572
    %v2574 = vlaneseq
    %v2575 = vshrl.u32 %v2574, 7
    %v2576 = vsub.s32 %v2573, %v2575
    %v2577 = vrot.slane %v2490, %v2576
    %v2579 = vunpack.c.l.s4 1983009808
    %v2580 = vunpack.c.0.s8 %v2579
    %v2581 = vlaneseq
    %v2582 = vshrl.u32 %v2581, 7
    %v2583 = vsub.s32 %v2580, %v2582
    %v2584 = vrot.slane %v2570, %v2583
    %v2585 = vcombine.high %v2577, %v2577
    %v2586 = vcombine.high %v2584, %v2584
    %v2587 = vcombine.high %v2491, %v2491
    %v2589 = vunpack.c.l.s4 1983009808
    %v2590 = vunpack.c.0.s8 %v2589
    %v2591 = vlaneseq
    %v2592 = vshrl.u32 %v2591, 7
    %v2593 = vsub.s32 %v2590, %v2592
    %v2594 = vrot.slane %v2491, %v2593
    %v2596 = vunpack.c.l.s4 1983009808
    %v2597 = vunpack.c.0.s8 %v2596
    %v2598 = vlaneseq
    %v2599 = vshrl.u32 %v2598, 7
    %v2600 = vsub.s32 %v2597, %v2599
    %v2601 = vrot.slane %v2587, %v2600
    %v2602 = vcombine.high %v2594, %v2594
    %v2603 = vcombine.high %v2601, %v2601
    %v2604 = vcombine.high %v2492, %v2492
    %v2606 = vunpack.c.l.s4 1983009808
    %v2607 = vunpack.c.0.s8 %v2606
    %v2608 = vlaneseq
    %v2609 = vshrl.u32 %v2608, 7
    %v2610 = vsub.s32 %v2607, %v2609
    %v2611 = vrot.slane %v2492, %v2610
    %v2613 = vunpack.c.l.s4 1983009808
    %v2614 = vunpack.c.0.s8 %v2613
    %v2615 = vlaneseq
    %v2616 = vshrl.u32 %v2615, 7
    %v2617 = vsub.s32 %v2614, %v2616
    %v2618 = vrot.slane %v2604, %v2617
    %v2619 = vcombine.high %v2611, %v2611
    %v2620 = vcombine.high %v2618, %v2618
    %v2621 = vcombine.high %v2493, %v2493
    %v2623 = vunpack.c.l.s4 1983009808
    %v2624 = vunpack.c.0.s8 %v2623
    %v2625 = vlaneseq
    %v2626 = vshrl.u32 %v2625, 7
    %v2627 = vsub.s32 %v2624, %v2626
    %v2628 = vrot.slane %v2493, %v2627
    %v2630 = vunpack.c.l.s4 1983009808
    %v2631 = vunpack.c.0.s8 %v2630
    %v2632 = vlaneseq
    %v2633 = vshrl.u32 %v2632, 7
    %v2634 = vsub.s32 %v2631, %v2633
    %v2635 = vrot.slane %v2621, %v2634
    %v2636 = vcombine.high %v2628, %v2628
    %v2637 = vcombine.high %v2635, %v2635
    %v2638 = vcombine.high %v2494, %v2494
    %v2640 = vunpack.c.l.s4 1983009808
    %v2641 = vunpack.c.0.s8 %v2640
    %v2642 = vlaneseq
    %v2643 = vshrl.u32 %v2642, 7
    %v2644 = vsub.s32 %v2641, %v2643
    %v2645 = vrot.slane %v2494, %v2644
    %v2647 = vunpack.c.l.s4 1983009808
    %v2648 = vunpack.c.0.s8 %v2647
    %v2649 = vlaneseq
    %v2650 = vshrl.u32 %v2649, 7
    %v2651 = vsub.s32 %v2648, %v2650
    %v2652 = vrot.slane %v2638, %v2651
    %v2653 = vcombine.high %v2645, %v2645
    %v2654 = vcombine.high %v2652, %v2652
    %v2655 = vcombine.high %v2495, %v2495
    %v2657 = vunpack.c.l.s4 1983009808
    %v2658 = vunpack.c.0.s8 %v2657
    %v2659 = vlaneseq
    %v2660 = vshrl.u32 %v2659, 7
    %v2661 = vsub.s32 %v2658, %v2660
    %v2662 = vrot.slane %v2495, %v2661
    %v2664 = vunpack.c.l.s4 1983009808
    %v2665 = vunpack.c.0.s8 %v2664
    %v2666 = vlaneseq
    %v2667 = vshrl.u32 %v2666, 7
    %v2668 = vsub.s32 %v2665, %v2667
    %v2669 = vrot.slane %v2655, %v2668
    %v2670 = vcombine.high %v2662, %v2662
    %v2671 = vcombine.high %v2669, %v2669
    %v2672 = vcombine.high %v2496, %v2496
    %v2674 = vunpack.c.l.s4 1983009808
    %v2675 = vunpack.c.0.s8 %v2674
    %v2676 = vlaneseq
    %v2677 = vshrl.u32 %v2676, 7
    %v2678 = vsub.s32 %v2675, %v2677
    %v2679 = vrot.slane %v2496, %v2678
    %v2681 = vunpack.c.l.s4 1983009808
    %v2682 = vunpack.c.0.s8 %v2681
    %v2683 = vlaneseq
    %v2684 = vshrl.u32 %v2683, 7
    %v2685 = vsub.s32 %v2682, %v2684
    %v2686 = vrot.slane %v2672, %v2685
    %v2687 = vcombine.high %v2679, %v2679
    %v2688 = vcombine.high %v2686, %v2686
    %v2689 = vcombine.high %v2497, %v2497
    %v2691 = vunpack.c.l.s4 1983009808
    %v2692 = vunpack.c.0.s8 %v2691
    %v2693 = vlaneseq
    %v2694 = vshrl.u32 %v2693, 7
    %v2695 = vsub.s32 %v2692, %v2694
    %v2696 = vrot.slane %v2497, %v2695
    %v2698 = vunpack.c.l.s4 1983009808
    %v2699 = vunpack.c.0.s8 %v2698
    %v2700 = vlaneseq
    %v2701 = vshrl.u32 %v2700, 7
    %v2702 = vsub.s32 %v2699, %v2701
    %v2703 = vrot.slane %v2689, %v2702
    %v2704 = vcombine.high %v2696, %v2696
    %v2705 = vcombine.high %v2703, %v2703
    %v2706 = vcombine.high %v2498, %v2498
    %v2708 = vunpack.c.l.s4 1983009808
    %v2709 = vunpack.c.0.s8 %v2708
    %v2710 = vlaneseq
    %v2711 = vshrl.u32 %v2710, 7
    %v2712 = vsub.s32 %v2709, %v2711
    %v2713 = vrot.slane %v2498, %v2712
    %v2715 = vunpack.c.l.s4 1983009808
    %v2716 = vunpack.c.0.s8 %v2715
    %v2717 = vlaneseq
    %v2718 = vshrl.u32 %v2717, 7
    %v2719 = vsub.s32 %v2716, %v2718
    %v2720 = vrot.slane %v2706, %v2719
    %v2721 = vcombine.high %v2713, %v2713
    %v2722 = vcombine.high %v2720, %v2720
    %v2723 = vcombine.high %v2499, %v2499
    %v2725 = vunpack.c.l.s4 1983009808
    %v2726 = vunpack.c.0.s8 %v2725
    %v2727 = vlaneseq
    %v2728 = vshrl.u32 %v2727, 7
    %v2729 = vsub.s32 %v2726, %v2728
    %v2730 = vrot.slane %v2499, %v2729
    %v2732 = vunpack.c.l.s4 1983009808
    %v2733 = vunpack.c.0.s8 %v2732
    %v2734 = vlaneseq
    %v2735 = vshrl.u32 %v2734, 7
    %v2736 = vsub.s32 %v2733, %v2735
    %v2737 = vrot.slane %v2723, %v2736
    %v2738 = vcombine.high %v2730, %v2730
    %v2739 = vcombine.high %v2737, %v2737
    %v2740 = vcombine.high %v2500, %v2500
    %v2742 = vunpack.c.l.s4 1983009808
    %v2743 = vunpack.c.0.s8 %v2742
    %v2744 = vlaneseq
    %v2745 = vshrl.u32 %v2744, 7
    %v2746 = vsub.s32 %v2743, %v2745
    %v2747 = vrot.slane %v2500, %v2746
    %v2749 = vunpack.c.l.s4 1983009808
    %v2750 = vunpack.c.0.s8 %v2749
    %v2751 = vlaneseq
    %v2752 = vshrl.u32 %v2751, 7
    %v2753 = vsub.s32 %v2750, %v2752
    %v2754 = vrot.slane %v2740, %v2753
    %v2755 = vcombine.high %v2747, %v2747
    %v2756 = vcombine.high %v2754, %v2754
    %v2757 = vcombine.high %v2501, %v2501
    %v2759 = vunpack.c.l.s4 1983009808
    %v2760 = vunpack.c.0.s8 %v2759
    %v2761 = vlaneseq
    %v2762 = vshrl.u32 %v2761, 7
    %v2763 = vsub.s32 %v2760, %v2762
    %v2764 = vrot.slane %v2501, %v2763
    %v2766 = vunpack.c.l.s4 1983009808
    %v2767 = vunpack.c.0.s8 %v2766
    %v2768 = vlaneseq
    %v2769 = vshrl.u32 %v2768, 7
    %v2770 = vsub.s32 %v2767, %v2769
    %v2771 = vrot.slane %v2757, %v2770
    %v2772 = vcombine.high %v2764, %v2764
    %v2773 = vcombine.high %v2771, %v2771
    %v2774 = vcombine.high %v2502, %v2502
    %v2776 = vunpack.c.l.s4 1983009808
    %v2777 = vunpack.c.0.s8 %v2776
    %v2778 = vlaneseq
    %v2779 = vshrl.u32 %v2778, 7
    %v2780 = vsub.s32 %v2777, %v2779
    %v2781 = vrot.slane %v2502, %v2780
    %v2783 = vunpack.c.l.s4 1983009808
    %v2784 = vunpack.c.0.s8 %v2783
    %v2785 = vlaneseq
    %v2786 = vshrl.u32 %v2785, 7
    %v2787 = vsub.s32 %v2784, %v2786
    %v2788 = vrot.slane %v2774, %v2787
    %v2789 = vcombine.high %v2781, %v2781
    %v2790 = vcombine.high %v2788, %v2788
    %v2791 = vcombine.high %v2503, %v2503
    %v2793 = vunpack.c.l.s4 1983009808
    %v2794 = vunpack.c.0.s8 %v2793
    %v2795 = vlaneseq
    %v2796 = vshrl.u32 %v2795, 7
    %v2797 = vsub.s32 %v2794, %v2796
    %v2798 = vrot.slane %v2503, %v2797
    %v2800 = vunpack.c.l.s4 1983009808
    %v2801 = vunpack.c.0.s8 %v2800
    %v2802 = vlaneseq
    %v2803 = vshrl.u32 %v2802, 7
    %v2804 = vsub.s32 %v2801, %v2803
    %v2805 = vrot.slane %v2791, %v2804
    %v2806 = vcombine.high %v2798, %v2798
    %v2807 = vcombine.high %v2805, %v2805
    %v2808 = vcombine.high %v2504, %v2504
    %v2810 = vunpack.c.l.s4 1983009808
    %v2811 = vunpack.c.0.s8 %v2810
    %v2812 = vlaneseq
    %v2813 = vshrl.u32 %v2812, 7
    %v2814 = vsub.s32 %v2811, %v2813
    %v2815 = vrot.slane %v2504, %v2814
    %v2817 = vunpack.c.l.s4 1983009808
    %v2818 = vunpack.c.0.s8 %v2817
    %v2819 = vlaneseq
    %v2820 = vshrl.u32 %v2819, 7
    %v2821 = vsub.s32 %v2818, %v2820
    %v2822 = vrot.slane %v2808, %v2821
    %v2823 = vcombine.high %v2815, %v2815
    %v2824 = vcombine.high %v2822, %v2822
    %v2825 = vcombine.high %v2505, %v2505
    %v2827 = vunpack.c.l.s4 1983009808
    %v2828 = vunpack.c.0.s8 %v2827
    %v2829 = vlaneseq
    %v2830 = vshrl.u32 %v2829, 7
    %v2831 = vsub.s32 %v2828, %v2830
    %v2832 = vrot.slane %v2505, %v2831
    %v2834 = vunpack.c.l.s4 1983009808
    %v2835 = vunpack.c.0.s8 %v2834
    %v2836 = vlaneseq
    %v2837 = vshrl.u32 %v2836, 7
    %v2838 = vsub.s32 %v2835, %v2837
    %v2839 = vrot.slane %v2825, %v2838
    %v2840 = vcombine.high %v2832, %v2832
    %v2841 = vcombine.high %v2839, %v2839
    %v2842 = vcombine.high %v2506, %v2506
    %v2844 = vunpack.c.l.s4 1983009808
    %v2845 = vunpack.c.0.s8 %v2844
    %v2846 = vlaneseq
    %v2847 = vshrl.u32 %v2846, 7
    %v2848 = vsub.s32 %v2845, %v2847
    %v2849 = vrot.slane %v2506, %v2848
    %v2851 = vunpack.c.l.s4 1983009808
    %v2852 = vunpack.c.0.s8 %v2851
    %v2853 = vlaneseq
    %v2854 = vshrl.u32 %v2853, 7
    %v2855 = vsub.s32 %v2852, %v2854
    %v2856 = vrot.slane %v2842, %v2855
    %v2857 = vcombine.high %v2849, %v2849
    %v2858 = vcombine.high %v2856, %v2856
    %v2859 = vcombine.high %v2507, %v2507
    %v2861 = vunpack.c.l.s4 1983009808
    %v2862 = vunpack.c.0.s8 %v2861
    %v2863 = vlaneseq
    %v2864 = vshrl.u32 %v2863, 7
    %v2865 = vsub.s32 %v2862, %v2864
    %v2866 = vrot.slane %v2507, %v2865
    %v2868 = vunpack.c.l.s4 1983009808
    %v2869 = vunpack.c.0.s8 %v2868
    %v2870 = vlaneseq
    %v2871 = vshrl.u32 %v2870, 7
    %v2872 = vsub.s32 %v2869, %v2871
    %v2873 = vrot.slane %v2859, %v2872
    %v2874 = vcombine.high %v2866, %v2866
    %v2875 = vcombine.high %v2873, %v2873
    %v2876 = vcombine.high %v2508, %v2508
    %v2878 = vunpack.c.l.s4 1983009808
    %v2879 = vunpack.c.0.s8 %v2878
    %v2880 = vlaneseq
    %v2881 = vshrl.u32 %v2880, 7
    %v2882 = vsub.s32 %v2879, %v2881
    %v2883 = vrot.slane %v2508, %v2882
    %v2885 = vunpack.c.l.s4 1983009808
    %v2886 = vunpack.c.0.s8 %v2885
    %v2887 = vlaneseq
    %v2888 = vshrl.u32 %v2887, 7
    %v2889 = vsub.s32 %v2886, %v2888
    %v2890 = vrot.slane %v2876, %v2889
    %v2891 = vcombine.high %v2883, %v2883
    %v2892 = vcombine.high %v2890, %v2890
    %v2893 = vcombine.high %v2509, %v2509
    %v2895 = vunpack.c.l.s4 1983009808
    %v2896 = vunpack.c.0.s8 %v2895
    %v2897 = vlaneseq
    %v2898 = vshrl.u32 %v2897, 7
    %v2899 = vsub.s32 %v2896, %v2898
    %v2900 = vrot.slane %v2509, %v2899
    %v2902 = vunpack.c.l.s4 1983009808
    %v2903 = vunpack.c.0.s8 %v2902
    %v2904 = vlaneseq
    %v2905 = vshrl.u32 %v2904, 7
    %v2906 = vsub.s32 %v2903, %v2905
    %v2907 = vrot.slane %v2893, %v2906
    %v2908 = vcombine.high %v2900, %v2900
    %v2909 = vcombine.high %v2907, %v2907
    %v2910 = vcombine.high %v2510, %v2510
    %v2912 = vunpack.c.l.s4 1983009808
    %v2913 = vunpack.c.0.s8 %v2912
    %v2914 = vlaneseq
    %v2915 = vshrl.u32 %v2914, 7
    %v2916 = vsub.s32 %v2913, %v2915
    %v2917 = vrot.slane %v2510, %v2916
    %v2919 = vunpack.c.l.s4 1983009808
    %v2920 = vunpack.c.0.s8 %v2919
    %v2921 = vlaneseq
    %v2922 = vshrl.u32 %v2921, 7
    %v2923 = vsub.s32 %v2920, %v2922
    %v2924 = vrot.slane %v2910, %v2923
    %v2925 = vcombine.high %v2917, %v2917
    %v2926 = vcombine.high %v2924, %v2924
    %v2927 = vcombine.high %v2511, %v2511
    %v2929 = vunpack.c.l.s4 1983009808
    %v2930 = vunpack.c.0.s8 %v2929
    %v2931 = vlaneseq
    %v2932 = vshrl.u32 %v2931, 7
    %v2933 = vsub.s32 %v2930, %v2932
    %v2934 = vrot.slane %v2511, %v2933
    %v2936 = vunpack.c.l.s4 1983009808
    %v2937 = vunpack.c.0.s8 %v2936
    %v2938 = vlaneseq
    %v2939 = vshrl.u32 %v2938, 7
    %v2940 = vsub.s32 %v2937, %v2939
    %v2941 = vrot.slane %v2927, %v2940
    %v2942 = vcombine.high %v2934, %v2934
    %v2943 = vcombine.high %v2941, %v2941
    %v3040 = vrot.slane %v2543, 7
    %v3041 = vrot.slane %v3040, 2
    %v3042 = vrot.slane %v2551, 7
    %v3043 = vrot.slane %v3042, 2
    %v3044 = vrot.slane %v2550, 7
    %v3045 = vrot.slane %v3044, 2
    %v3046 = vrot.slane %v2552, 7
    %v3047 = vrot.slane %v3046, 2
    %v3048 = vrot.slane %v2560, 7
    %v3049 = vrot.slane %v3048, 2
    %v3050 = vrot.slane %v2568, 7
    %v3051 = vrot.slane %v3050, 2
    %v3052 = vrot.slane %v2567, 7
    %v3053 = vrot.slane %v3052, 2
    %v3054 = vrot.slane %v2569, 7
    %v3055 = vrot.slane %v3054, 2
    %v3056 = vrot.slane %v2577, 7
    %v3057 = vrot.slane %v3056, 2
    %v3058 = vrot.slane %v2585, 7
    %v3059 = vrot.slane %v3058, 2
    %v3060 = vrot.slane %v2584, 7
    %v3061 = vrot.slane %v3060, 2
    %v3062 = vrot.slane %v2586, 7
    %v3063 = vrot.slane %v3062, 2
    %v3064 = vrot.slane %v2594, 7
    %v3065 = vrot.slane %v3064, 2
    %v3066 = vrot.slane %v2602, 7
    %v3067 = vrot.slane %v3066, 2
    %v3068 = vrot.slane %v2601, 7
    %v3069 = vrot.slane %v3068, 2
    %v3070 = vrot.slane %v2603, 7
    %v3071 = vrot.slane %v3070, 2
    %v3072 = vrot.slane %v2611, 7
    %v3073 = vrot.slane %v3072, 2
    %v3074 = vrot.slane %v2619, 7
    %v3075 = vrot.slane %v3074, 2
    %v3076 = vrot.slane %v2618, 7
    %v3077 = vrot.slane %v3076, 2
    %v3078 = vrot.slane %v2620, 7
    %v3079 = vrot.slane %v3078, 2
    %v3080 = vrot.slane %v2628, 7
    %v3081 = vrot.slane %v3080, 2
    %v3082 = vrot.slane %v2636, 7
    %v3083 = vrot.slane %v3082, 2
    %v3084 = vrot.slane %v2635, 7
    %v3085 = vrot.slane %v3084, 2
    %v3086 = vrot.slane %v2637, 7
    %v3087 = vrot.slane %v3086, 2
    %v3088 = vrot.slane %v2645, 7
    %v3089 = vrot.slane %v3088, 2
    %v3090 = vrot.slane %v2653, 7
    %v3091 = vrot.slane %v3090, 2
    %v3092 = vrot.slane %v2652, 7
    %v3093 = vrot.slane %v3092, 2
    %v3094 = vrot.slane %v2654, 7
    %v3095 = vrot.slane %v3094, 2
    %v3096 = vrot.slane %v2662, 7
    %v3097 = vrot.slane %v3096, 2
    %v3098 = vrot.slane %v2670, 7
    %v3099 = vrot.slane %v3098, 2
    %v3100 = vrot.slane %v2669, 7
    %v3101 = vrot.slane %v3100, 2
    %v3102 = vrot.slane %v2671, 7
    %v3103 = vrot.slane %v3102, 2
    %v3104 = vrot.slane %v2679, 7
    %v3105 = vrot.slane %v3104, 2
    %v3106 = vrot.slane %v2687, 7
    %v3107 = vrot.slane %v3106, 2
    %v3108 = vrot.slane %v2686, 7
    %v3109 = vrot.slane %v3108, 2
    %v3110 = vrot.slane %v2688, 7
    %v3111 = vrot.slane %v3110, 2
    %v3112 = vrot.slane %v2696, 7
    %v3113 = vrot.slane %v3112, 2
    %v3114 = vrot.slane %v2704, 7
    %v3115 = vrot.slane %v3114, 2
    %v3116 = vrot.slane %v2703, 7
    %v3117 = vrot.slane %v3116, 2
    %v3118 = vrot.slane %v2705, 7
    %v3119 = vrot.slane %v3118, 2
    %v3120 = vrot.slane %v2713, 7
    %v3121 = vrot.slane %v3120, 2
    %v3122 = vrot.slane %v2721, 7
    %v3123 = vrot.slane %v3122, 2
    %v3124 = vrot.slane %v2720, 7
    %v3125 = vrot.slane %v3124, 2
    %v3126 = vrot.slane %v2722, 7
    %v3127 = vrot.slane %v3126, 2
    %v3128 = vrot.slane %v2730, 7
    %v3129 = vrot.slane %v3128, 2
    %v3130 = vrot.slane %v2738, 7
    %v3131 = vrot.slane %v3130, 2
    %v3132 = vrot.slane %v2737, 7
    %v3133 = vrot.slane %v3132, 2
    %v3134 = vrot.slane %v2739, 7
    %v3135 = vrot.slane %v3134, 2
    %v3136 = vrot.slane %v2747, 7
    %v3137 = vrot.slane %v3136, 2
    %v3138 = vrot.slane %v2755, 7
    %v3139 = vrot.slane %v3138, 2
    %v3140 = vrot.slane %v2754, 7
    %v3141 = vrot.slane %v3140, 2
    %v3142 = vrot.slane %v2756, 7
    %v3143 = vrot.slane %v3142, 2
    %v3144 = vrot.slane %v2764, 7
    %v3145 = vrot.slane %v3144, 2
    %v3146 = vrot.slane %v2772, 7
    %v3147 = vrot.slane %v3146, 2
    %v3148 = vrot.slane %v2771, 7
    %v3149 = vrot.slane %v3148, 2
    %v3150 = vrot.slane %v2773, 7
    %v3151 = vrot.slane %v3150, 2
    %v3152 = vrot.slane %v2781, 7
    %v3153 = vrot.slane %v3152, 2
    %v3154 = vrot.slane %v2789, 7
    %v3155 = vrot.slane %v3154, 2
    %v3156 = vrot.slane %v2788, 7
    %v3157 = vrot.slane %v3156, 2
    %v3158 = vrot.slane %v2790, 7
    %v3159 = vrot.slane %v3158, 2
    %v3160 = vrot.slane %v2798, 7
    %v3161 = vrot.slane %v3160, 2
    %v3162 = vrot.slane %v2806, 7
    %v3163 = vrot.slane %v3162, 2
    %v3164 = vrot.slane %v2805, 7
    %v3165 = vrot.slane %v3164, 2
    %v3166 = vrot.slane %v2807, 7
    %v3167 = vrot.slane %v3166, 2
    %v3168 = vrot.slane %v2815, 7
    %v3169 = vrot.slane %v3168, 2
    %v3170 = vrot.slane %v2823, 7
    %v3171 = vrot.slane %v3170, 2
    %v3172 = vrot.slane %v2822, 7
    %v3173 = vrot.slane %v3172, 2
    %v3174 = vrot.slane %v2824, 7
    %v3175 = vrot.slane %v3174, 2
    %v3176 = vrot.slane %v2832, 7
    %v3177 = vrot.slane %v3176, 2
    %v3178 = vrot.slane %v2840, 7
    %v3179 = vrot.slane %v3178, 2
    %v3180 = vrot.slane %v2839, 7
    %v3181 = vrot.slane %v3180, 2
    %v3182 = vrot.slane %v2841, 7
    %v3183 = vrot.slane %v3182, 2
    %v3184 = vrot.slane %v2849, 7
    %v3185 = vrot.slane %v3184, 2
    %v3186 = vrot.slane %v2857, 7
    %v3187 = vrot.slane %v3186, 2
    %v3188 = vrot.slane %v2856, 7
    %v3189 = vrot.slane %v3188, 2
    %v3190 = vrot.slane %v2858, 7
    %v3191 = vrot.slane %v3190, 2
    %v3192 = vrot.slane %v2866, 7
    %v3193 = vrot.slane %v3192, 2
    %v3194 = vrot.slane %v2874, 7
    %v3195 = vrot.slane %v3194, 2
    %v3196 = vrot.slane %v2873, 7
    %v3197 = vrot.slane %v3196, 2
    %v3198 = vrot.slane %v2875, 7
    %v3199 = vrot.slane %v3198, 2
    %v3200 = vrot.slane %v2883, 7
    %v3201 = vrot.slane %v3200, 2
    %v3202 = vrot.slane %v2891, 7
    %v3203 = vrot.slane %v3202, 2
    %v3204 = vrot.slane %v2890, 7
    %v3205 = vrot.slane %v3204, 2
    %v3206 = vrot.slane %v2892, 7
    %v3207 = vrot.slane %v3206, 2
    %v3208 = vrot.slane %v2900, 7
    %v3209 = vrot.slane %v3208, 2
    %v3210 = vrot.slane %v2908, 7
    %v3211 = vrot.slane %v3210, 2
    %v3212 = vrot.slane %v2907, 7
    %v3213 = vrot.slane %v3212, 2
    %v3214 = vrot.slane %v2909, 7
    %v3215 = vrot.slane %v3214, 2
    %v3216 = vrot.slane %v2917, 7
    %v3217 = vrot.slane %v3216, 2
    %v3218 = vrot.slane %v2925, 7
    %v3219 = vrot.slane %v3218, 2
    %v3220 = vrot.slane %v2924, 7
    %v3221 = vrot.slane %v3220, 2
    %v3222 = vrot.slane %v2926, 7
    %v3223 = vrot.slane %v3222, 2
    %v3224 = vrot.slane %v2934, 7
    %v3225 = vrot.slane %v3224, 2
    %v3226 = vrot.slane %v2942, 7
    %v3227 = vrot.slane %v3226, 2
    %v3228 = vrot.slane %v2941, 7
    %v3229 = vrot.slane %v3228, 2
    %v3230 = vrot.slane %v2943, 7
    %v3231 = vrot.slane %v3230, 2
    %v3328 = vmax.f32 %v2543, %v3041
    %v3329 = vmax.f32 %v2551, %v3043
    %v3330 = vmax.f32 %v2550, %v3045
    %v3331 = vmax.f32 %v2552, %v3047
    %v3332 = vmax.f32 %v2560, %v3049
    %v3333 = vmax.f32 %v2568, %v3051
    %v3334 = vmax.f32 %v2567, %v3053
    %v3335 = vmax.f32 %v2569, %v3055
    %v3336 = vmax.f32 %v2577, %v3057
    %v3337 = vmax.f32 %v2585, %v3059
    %v3338 = vmax.f32 %v2584, %v3061
    %v3339 = vmax.f32 %v2586, %v3063
    %v3340 = vmax.f32 %v2594, %v3065
    %v3341 = vmax.f32 %v2602, %v3067
    %v3342 = vmax.f32 %v2601, %v3069
    %v3343 = vmax.f32 %v2603, %v3071
    %v3344 = vmax.f32 %v2611, %v3073
    %v3345 = vmax.f32 %v2619, %v3075
    %v3346 = vmax.f32 %v2618, %v3077
    %v3347 = vmax.f32 %v2620, %v3079
    %v3348 = vmax.f32 %v2628, %v3081
    %v3349 = vmax.f32 %v2636, %v3083
    %v3350 = vmax.f32 %v2635, %v3085
    %v3351 = vmax.f32 %v2637, %v3087
    %v3352 = vmax.f32 %v2645, %v3089
    %v3353 = vmax.f32 %v2653, %v3091
    %v3354 = vmax.f32 %v2652, %v3093
    %v3355 = vmax.f32 %v2654, %v3095
    %v3356 = vmax.f32 %v2662, %v3097
    %v3357 = vmax.f32 %v2670, %v3099
    %v3358 = vmax.f32 %v2669, %v3101
    %v3359 = vmax.f32 %v2671, %v3103
    %v3360 = vmax.f32 %v2679, %v3105
    %v3361 = vmax.f32 %v2687, %v3107
    %v3362 = vmax.f32 %v2686, %v3109
    %v3363 = vmax.f32 %v2688, %v3111
    %v3364 = vmax.f32 %v2696, %v3113
    %v3365 = vmax.f32 %v2704, %v3115
    %v3366 = vmax.f32 %v2703, %v3117
    %v3367 = vmax.f32 %v2705, %v3119
    %v3368 = vmax.f32 %v2713, %v3121
    %v3369 = vmax.f32 %v2721, %v3123
    %v3370 = vmax.f32 %v2720, %v3125
    %v3371 = vmax.f32 %v2722, %v3127
    %v3372 = vmax.f32 %v2730, %v3129
    %v3373 = vmax.f32 %v2738, %v3131
    %v3374 = vmax.f32 %v2737, %v3133
    %v3375 = vmax.f32 %v2739, %v3135
    %v3376 = vmax.f32 %v2747, %v3137
    %v3377 = vmax.f32 %v2755, %v3139
    %v3378 = vmax.f32 %v2754, %v3141
    %v3379 = vmax.f32 %v2756, %v3143
    %v3380 = vmax.f32 %v2764, %v3145
    %v3381 = vmax.f32 %v2772, %v3147
    %v3382 = vmax.f32 %v2771, %v3149
    %v3383 = vmax.f32 %v2773, %v3151
    %v3384 = vmax.f32 %v2781, %v3153
    %v3385 = vmax.f32 %v2789, %v3155
    %v3386 = vmax.f32 %v2788, %v3157
    %v3387 = vmax.f32 %v2790, %v3159
    %v3388 = vmax.f32 %v2798, %v3161
    %v3389 = vmax.f32 %v2806, %v3163
    %v3390 = vmax.f32 %v2805, %v3165
    %v3391 = vmax.f32 %v2807, %v3167
    %v3392 = vmax.f32 %v2815, %v3169
    %v3393 = vmax.f32 %v2823, %v3171
    %v3394 = vmax.f32 %v2822, %v3173
    %v3395 = vmax.f32 %v2824, %v3175
    %v3396 = vmax.f32 %v2832, %v3177
    %v3397 = vmax.f32 %v2840, %v3179
    %v3398 = vmax.f32 %v2839, %v3181
    %v3399 = vmax.f32 %v2841, %v3183
    %v3400 = vmax.f32 %v2849, %v3185
    %v3401 = vmax.f32 %v2857, %v3187
    %v3402 = vmax.f32 %v2856, %v3189
    %v3403 = vmax.f32 %v2858, %v3191
    %v3404 = vmax.f32 %v2866, %v3193
    %v3405 = vmax.f32 %v2874, %v3195
    %v3406 = vmax.f32 %v2873, %v3197
    %v3407 = vmax.f32 %v2875, %v3199
    %v3408 = vmax.f32 %v2883, %v3201
    %v3409 = vmax.f32 %v2891, %v3203
    %v3410 = vmax.f32 %v2890, %v3205
    %v3411 = vmax.f32 %v2892, %v3207
    %v3412 = vmax.f32 %v2900, %v3209
    %v3413 = vmax.f32 %v2908, %v3211
    %v3414 = vmax.f32 %v2907, %v3213
    %v3415 = vmax.f32 %v2909, %v3215
    %v3416 = vmax.f32 %v2917, %v3217
    %v3417 = vmax.f32 %v2925, %v3219
    %v3418 = vmax.f32 %v2924, %v3221
    %v3419 = vmax.f32 %v2926, %v3223
    %v3420 = vmax.f32 %v2934, %v3225
    %v3421 = vmax.f32 %v2942, %v3227
    %v3422 = vmax.f32 %v2941, %v3229
    %v3423 = vmax.f32 %v2943, %v3231
    %v3424 = vld [vmem:[%s5] sm:$0xff]
    %v3425 = vld [vmem:[%s5 + $0x8] sm:$0xff]
    %v3426 = vld [vmem:[%s5 + $0x10] sm:$0xff]
    %v3427 = vld [vmem:[%s5 + $0x18] sm:$0xff]
    %v3428 = vld [vmem:[%s5 + $0x20] sm:$0xff]
    %v3429 = vld [vmem:[%s5 + $0x28] sm:$0xff]
    %v3430 = vld [vmem:[%s5 + $0x30] sm:$0xff]
    %v3431 = vld [vmem:[%s5 + $0x38] sm:$0xff]
    %v3432 = vld [vmem:[%s5 + $0x40] sm:$0xff]
    %s3433 = scalar_lea.vmem %s5, 72
    %v3434 = vld [vmem:[%s3433] sm:$0xff]
    %v3435 = vld [vmem:[%s3433 + $0x8] sm:$0xff]
    %v3436 = vld [vmem:[%s3433 + $0x10] sm:$0xff]
    %v3437 = vld [vmem:[%s3433 + $0x18] sm:$0xff]
    %v3438 = vld [vmem:[%s3433 + $0x20] sm:$0xff]
    %v3439 = vld [vmem:[%s3433 + $0x28] sm:$0xff]
    %v3440 = vld [vmem:[%s3433 + $0x30] sm:$0xff]
    %v3441 = vld [vmem:[%s3433 + $0x38] sm:$0xff]
    %v3442 = vld [vmem:[%s3433 + $0x40] sm:$0xff]
    %v3507 = vlaneseq
    %v3508 = vshrl.u32 %v3507, 7
    %v3509 = vsub.s32 0, %v3508
    %v3510 = vrot.slane %v3329, %v3509
    %v3511 = vlaneseq
    %v3512 = vshrl.u32 %v3511, 7
    %v3513 = vsub.s32 0, %v3512
    %v3514 = vrot.slane %v3330, %v3513
    %v3515 = vlaneseq
    %v3516 = vshrl.u32 %v3515, 7
    %v3517 = vsub.s32 0, %v3516
    %v3518 = vrot.slane %v3331, %v3517
    %v3519 = vlaneseq
    %v3520 = vshrl.u32 %v3519, 7
    %v3521 = vsub.s32 0, %v3520
    %v3522 = vrot.slane %v3332, %v3521
    %v3523 = vlaneseq
    %v3524 = vshrl.u32 %v3523, 7
    %v3525 = vsub.s32 0, %v3524
    %v3526 = vrot.slane %v3333, %v3525
    %v3527 = vlaneseq
    %v3528 = vshrl.u32 %v3527, 7
    %v3529 = vsub.s32 0, %v3528
    %v3530 = vrot.slane %v3334, %v3529
    %v3531 = vlaneseq
    %v3532 = vshrl.u32 %v3531, 7
    %v3533 = vsub.s32 0, %v3532
    %v3534 = vrot.slane %v3335, %v3533
    %v3535 = vlaneseq
    %v3536 = vshrl.u32 %v3535, 7
    %v3537 = vsub.s32 0, %v3536
    %v3538 = vrot.slane %v3336, %v3537
    %v3539 = vlaneseq
    %v3540 = vshrl.u32 %v3539, 7
    %v3541 = vsub.s32 0, %v3540
    %v3542 = vrot.slane %v3341, %v3541
    %v3543 = vlaneseq
    %v3544 = vshrl.u32 %v3543, 7
    %v3545 = vsub.s32 0, %v3544
    %v3546 = vrot.slane %v3342, %v3545
    %v3547 = vlaneseq
    %v3548 = vshrl.u32 %v3547, 7
    %v3549 = vsub.s32 0, %v3548
    %v3550 = vrot.slane %v3343, %v3549
    %v3551 = vlaneseq
    %v3552 = vshrl.u32 %v3551, 7
    %v3553 = vsub.s32 0, %v3552
    %v3554 = vrot.slane %v3344, %v3553
    %v3555 = vlaneseq
    %v3556 = vshrl.u32 %v3555, 7
    %v3557 = vsub.s32 0, %v3556
    %v3558 = vrot.slane %v3345, %v3557
    %v3559 = vlaneseq
    %v3560 = vshrl.u32 %v3559, 7
    %v3561 = vsub.s32 0, %v3560
    %v3562 = vrot.slane %v3346, %v3561
    %v3563 = vlaneseq
    %v3564 = vshrl.u32 %v3563, 7
    %v3565 = vsub.s32 0, %v3564
    %v3566 = vrot.slane %v3347, %v3565
    %v3567 = vlaneseq
    %v3568 = vshrl.u32 %v3567, 7
    %v3569 = vsub.s32 0, %v3568
    %v3570 = vrot.slane %v3348, %v3569
    %v3571 = vlaneseq
    %v3572 = vshrl.u32 %v3571, 7
    %v3573 = vsub.s32 0, %v3572
    %v3574 = vrot.slane %v3353, %v3573
    %v3575 = vlaneseq
    %v3576 = vshrl.u32 %v3575, 7
    %v3577 = vsub.s32 0, %v3576
    %v3578 = vrot.slane %v3354, %v3577
    %v3579 = vlaneseq
    %v3580 = vshrl.u32 %v3579, 7
    %v3581 = vsub.s32 0, %v3580
    %v3582 = vrot.slane %v3355, %v3581
    %v3583 = vlaneseq
    %v3584 = vshrl.u32 %v3583, 7
    %v3585 = vsub.s32 0, %v3584
    %v3586 = vrot.slane %v3356, %v3585
    %v3587 = vlaneseq
    %v3588 = vshrl.u32 %v3587, 7
    %v3589 = vsub.s32 0, %v3588
    %v3590 = vrot.slane %v3357, %v3589
    %v3591 = vlaneseq
    %v3592 = vshrl.u32 %v3591, 7
    %v3593 = vsub.s32 0, %v3592
    %v3594 = vrot.slane %v3358, %v3593
    %v3595 = vlaneseq
    %v3596 = vshrl.u32 %v3595, 7
    %v3597 = vsub.s32 0, %v3596
    %v3598 = vrot.slane %v3359, %v3597
    %v3599 = vlaneseq
    %v3600 = vshrl.u32 %v3599, 7
    %v3601 = vsub.s32 0, %v3600
    %v3602 = vrot.slane %v3360, %v3601
    %v3603 = vlaneseq
    %v3604 = vshrl.u32 %v3603, 7
    %v3605 = vsub.s32 0, %v3604
    %v3606 = vrot.slane %v3365, %v3605
    %v3607 = vlaneseq
    %v3608 = vshrl.u32 %v3607, 7
    %v3609 = vsub.s32 0, %v3608
    %v3610 = vrot.slane %v3366, %v3609
    %v3611 = vlaneseq
    %v3612 = vshrl.u32 %v3611, 7
    %v3613 = vsub.s32 0, %v3612
    %v3614 = vrot.slane %v3367, %v3613
    %v3615 = vlaneseq
    %v3616 = vshrl.u32 %v3615, 7
    %v3617 = vsub.s32 0, %v3616
    %v3618 = vrot.slane %v3368, %v3617
    %v3619 = vlaneseq
    %v3620 = vshrl.u32 %v3619, 7
    %v3621 = vsub.s32 0, %v3620
    %v3622 = vrot.slane %v3369, %v3621
    %v3623 = vlaneseq
    %v3624 = vshrl.u32 %v3623, 7
    %v3625 = vsub.s32 0, %v3624
    %v3626 = vrot.slane %v3370, %v3625
    %v3627 = vlaneseq
    %v3628 = vshrl.u32 %v3627, 7
    %v3629 = vsub.s32 0, %v3628
    %v3630 = vrot.slane %v3371, %v3629
    %v3631 = vlaneseq
    %v3632 = vshrl.u32 %v3631, 7
    %v3633 = vsub.s32 0, %v3632
    %v3634 = vrot.slane %v3372, %v3633
    %v3635 = vlaneseq
    %v3636 = vshrl.u32 %v3635, 7
    %v3637 = vsub.s32 0, %v3636
    %v3638 = vrot.slane %v3377, %v3637
    %v3639 = vlaneseq
    %v3640 = vshrl.u32 %v3639, 7
    %v3641 = vsub.s32 0, %v3640
    %v3642 = vrot.slane %v3378, %v3641
    %v3643 = vlaneseq
    %v3644 = vshrl.u32 %v3643, 7
    %v3645 = vsub.s32 0, %v3644
    %v3646 = vrot.slane %v3379, %v3645
    %v3647 = vlaneseq
    %v3648 = vshrl.u32 %v3647, 7
    %v3649 = vsub.s32 0, %v3648
    %v3650 = vrot.slane %v3380, %v3649
    %v3651 = vlaneseq
    %v3652 = vshrl.u32 %v3651, 7
    %v3653 = vsub.s32 0, %v3652
    %v3654 = vrot.slane %v3381, %v3653
    %v3655 = vlaneseq
    %v3656 = vshrl.u32 %v3655, 7
    %v3657 = vsub.s32 0, %v3656
    %v3658 = vrot.slane %v3382, %v3657
    %v3659 = vlaneseq
    %v3660 = vshrl.u32 %v3659, 7
    %v3661 = vsub.s32 0, %v3660
    %v3662 = vrot.slane %v3383, %v3661
    %v3663 = vlaneseq
    %v3664 = vshrl.u32 %v3663, 7
    %v3665 = vsub.s32 0, %v3664
    %v3666 = vrot.slane %v3384, %v3665
    %v3667 = vlaneseq
    %v3668 = vshrl.u32 %v3667, 7
    %v3669 = vsub.s32 0, %v3668
    %v3670 = vrot.slane %v3389, %v3669
    %v3671 = vlaneseq
    %v3672 = vshrl.u32 %v3671, 7
    %v3673 = vsub.s32 0, %v3672
    %v3674 = vrot.slane %v3390, %v3673
    %v3675 = vlaneseq
    %v3676 = vshrl.u32 %v3675, 7
    %v3677 = vsub.s32 0, %v3676
    %v3678 = vrot.slane %v3391, %v3677
    %v3679 = vlaneseq
    %v3680 = vshrl.u32 %v3679, 7
    %v3681 = vsub.s32 0, %v3680
    %v3682 = vrot.slane %v3392, %v3681
    %v3683 = vlaneseq
    %v3684 = vshrl.u32 %v3683, 7
    %v3685 = vsub.s32 0, %v3684
    %v3686 = vrot.slane %v3393, %v3685
    %v3687 = vlaneseq
    %v3688 = vshrl.u32 %v3687, 7
    %v3689 = vsub.s32 0, %v3688
    %v3690 = vrot.slane %v3394, %v3689
    %v3691 = vlaneseq
    %v3692 = vshrl.u32 %v3691, 7
    %v3693 = vsub.s32 0, %v3692
    %v3694 = vrot.slane %v3395, %v3693
    %v3695 = vlaneseq
    %v3696 = vshrl.u32 %v3695, 7
    %v3697 = vsub.s32 0, %v3696
    %v3698 = vrot.slane %v3396, %v3697
    %v3699 = vlaneseq
    %v3700 = vshrl.u32 %v3699, 7
    %v3701 = vsub.s32 0, %v3700
    %v3702 = vrot.slane %v3401, %v3701
    %v3703 = vlaneseq
    %v3704 = vshrl.u32 %v3703, 7
    %v3705 = vsub.s32 0, %v3704
    %v3706 = vrot.slane %v3402, %v3705
    %v3707 = vlaneseq
    %v3708 = vshrl.u32 %v3707, 7
    %v3709 = vsub.s32 0, %v3708
    %v3710 = vrot.slane %v3403, %v3709
    %v3711 = vlaneseq
    %v3712 = vshrl.u32 %v3711, 7
    %v3713 = vsub.s32 0, %v3712
    %v3714 = vrot.slane %v3404, %v3713
    %v3715 = vlaneseq
    %v3716 = vshrl.u32 %v3715, 7
    %v3717 = vsub.s32 0, %v3716
    %v3718 = vrot.slane %v3405, %v3717
    %v3719 = vlaneseq
    %v3720 = vshrl.u32 %v3719, 7
    %v3721 = vsub.s32 0, %v3720
    %v3722 = vrot.slane %v3406, %v3721
    %v3723 = vlaneseq
    %v3724 = vshrl.u32 %v3723, 7
    %v3725 = vsub.s32 0, %v3724
    %v3726 = vrot.slane %v3407, %v3725
    %v3727 = vlaneseq
    %v3728 = vshrl.u32 %v3727, 7
    %v3729 = vsub.s32 0, %v3728
    %v3730 = vrot.slane %v3408, %v3729
    %v3731 = vlaneseq
    %v3732 = vshrl.u32 %v3731, 7
    %v3733 = vsub.s32 0, %v3732
    %v3734 = vrot.slane %v3413, %v3733
    %v3735 = vlaneseq
    %v3736 = vshrl.u32 %v3735, 7
    %v3737 = vsub.s32 0, %v3736
    %v3738 = vrot.slane %v3414, %v3737
    %v3739 = vlaneseq
    %v3740 = vshrl.u32 %v3739, 7
    %v3741 = vsub.s32 0, %v3740
    %v3742 = vrot.slane %v3415, %v3741
    %v3743 = vlaneseq
    %v3744 = vshrl.u32 %v3743, 7
    %v3745 = vsub.s32 0, %v3744
    %v3746 = vrot.slane %v3416, %v3745
    %v3747 = vlaneseq
    %v3748 = vshrl.u32 %v3747, 7
    %v3749 = vsub.s32 0, %v3748
    %v3750 = vrot.slane %v3417, %v3749
    %v3751 = vlaneseq
    %v3752 = vshrl.u32 %v3751, 7
    %v3753 = vsub.s32 0, %v3752
    %v3754 = vrot.slane %v3418, %v3753
    %v3755 = vlaneseq
    %v3756 = vshrl.u32 %v3755, 7
    %v3757 = vsub.s32 0, %v3756
    %v3758 = vrot.slane %v3419, %v3757
    %v3759 = vlaneseq
    %v3760 = vshrl.u32 %v3759, 7
    %v3761 = vsub.s32 0, %v3760
    %v3762 = vrot.slane %v3420, %v3761
    %vm3763 = vcmask 1041409
    %v3764 = vsel %vm3763, %v3514, %v3510
    %vm3765 = vcmask 1042434
    %v3766 = vsel %vm3765, %v3518, %v3764
    %vm3767 = vcmask 1043459
    %v3768 = vsel %vm3767, %v3522, %v3766
    %vm3769 = vcmask 1044484
    %v3770 = vsel %vm3769, %v3526, %v3768
    %vm3771 = vcmask 1045509
    %v3772 = vsel %vm3771, %v3530, %v3770
    %vm3773 = vcmask 1046534
    %v3774 = vsel %vm3773, %v3534, %v3772
    %vm3775 = vcmask 1047559
    %v3776 = vsel %vm3775, %v3538, %v3774
    %v3777 = vsel %vm3763, %v3546, %v3542
    %v3778 = vsel %vm3765, %v3550, %v3777
    %v3779 = vsel %vm3767, %v3554, %v3778
    %v3780 = vsel %vm3769, %v3558, %v3779
    %v3781 = vsel %vm3771, %v3562, %v3780
    %v3782 = vsel %vm3773, %v3566, %v3781
    %v3783 = vsel %vm3775, %v3570, %v3782
    %v3784 = vsel %vm3763, %v3578, %v3574
    %v3785 = vsel %vm3765, %v3582, %v3784
    %v3786 = vsel %vm3767, %v3586, %v3785
    %v3787 = vsel %vm3769, %v3590, %v3786
    %v3788 = vsel %vm3771, %v3594, %v3787
    %v3789 = vsel %vm3773, %v3598, %v3788
    %v3790 = vsel %vm3775, %v3602, %v3789
    %v3791 = vsel %vm3763, %v3610, %v3606
    %v3792 = vsel %vm3765, %v3614, %v3791
    %v3793 = vsel %vm3767, %v3618, %v3792
    %v3794 = vsel %vm3769, %v3622, %v3793
    %v3795 = vsel %vm3771, %v3626, %v3794
    %v3796 = vsel %vm3773, %v3630, %v3795
    %v3797 = vsel %vm3775, %v3634, %v3796
    %v3798 = vsel %vm3763, %v3642, %v3638
    %v3799 = vsel %vm3765, %v3646, %v3798
    %v3800 = vsel %vm3767, %v3650, %v3799
    %v3801 = vsel %vm3769, %v3654, %v3800
    %v3802 = vsel %vm3771, %v3658, %v3801
    %v3803 = vsel %vm3773, %v3662, %v3802
    %v3804 = vsel %vm3775, %v3666, %v3803
    %v3805 = vsel %vm3763, %v3674, %v3670
    %v3806 = vsel %vm3765, %v3678, %v3805
    %v3807 = vsel %vm3767, %v3682, %v3806
    %v3808 = vsel %vm3769, %v3686, %v3807
    %v3809 = vsel %vm3771, %v3690, %v3808
    %v3810 = vsel %vm3773, %v3694, %v3809
    %v3811 = vsel %vm3775, %v3698, %v3810
    %v3812 = vsel %vm3763, %v3706, %v3702
    %v3813 = vsel %vm3765, %v3710, %v3812
    %v3814 = vsel %vm3767, %v3714, %v3813
    %v3815 = vsel %vm3769, %v3718, %v3814
    %v3816 = vsel %vm3771, %v3722, %v3815
    %v3817 = vsel %vm3773, %v3726, %v3816
    %v3818 = vsel %vm3775, %v3730, %v3817
    %v3819 = vsel %vm3763, %v3738, %v3734
    %v3820 = vsel %vm3765, %v3742, %v3819
    %v3821 = vsel %vm3767, %v3746, %v3820
    %v3822 = vsel %vm3769, %v3750, %v3821
    %v3823 = vsel %vm3771, %v3754, %v3822
    %v3824 = vsel %vm3773, %v3758, %v3823
    %v3825 = vsel %vm3775, %v3762, %v3824
    %vm3826 = vcmask 588800
    %v3827 = vsel %vm3826, %v3776, 0
    %v3829 = vsel %vm3826, %v3783, 0
    %v3831 = vsel %vm3826, %v3790, 0
    %v3833 = vsel %vm3826, %v3797, 0
    %v3835 = vsel %vm3826, %v3804, 0
    %v3837 = vsel %vm3826, %v3811, 0
    %v3839 = vsel %vm3826, %v3818, 0
    %v3841 = vsel %vm3826, %v3825, 0
    %3843 = vmatprep.subr.mxu0 0.0
    %3844 = vmatpush1.msra.mxu0 0.0
    %3845 = vmatprep.subr.mxu0 0.0
    %3846 = vmatpush1.msra.mxu0 0.0
    %3847 = vmatprep.subr.mxu0 0.0
    %3848 = vmatpush1.msra.mxu0 0.0
    %3849 = vmatprep.subr.mxu0 0.0
    %3850 = vmatpush1.msra.mxu0 0.0
    %3851 = vmatprep.subr.mxu0 0.0
    %3852 = vmatpush1.msra.mxu0 0.0
    %3853 = vmatprep.subr.mxu0 0.0
    %3854 = vmatpush1.msra.mxu0 0.0
    %3855 = vmatprep.subr.mxu0 0.0
    %3856 = vmatpush1.msra.mxu0 0.0
    %3857 = vmatprep.subr.mxu0 0.0
    %3858 = vmatpush1.msra.mxu0 %v3442
    %3859 = vmatprep.subr.mxu0 0.0
    %3860 = vmatpush1.msra.mxu0 %v3441
    %3861 = vmatprep.subr.mxu0 0.0
    %3862 = vmatpush1.msra.mxu0 %v3440
    %3863 = vmatprep.subr.mxu0 0.0
    %3864 = vmatpush1.msra.mxu0 %v3439
    %3865 = vmatprep.subr.mxu0 0.0
    %3866 = vmatpush1.msra.mxu0 %v3438
    %3867 = vmatprep.subr.mxu0 0.0
    %3868 = vmatpush1.msra.mxu0 %v3437
    %3869 = vmatprep.subr.mxu0 0.0
    %3870 = vmatpush1.msra.mxu0 %v3436
    %3871 = vmatprep.subr.mxu0 0.0
    %3872 = vmatpush1.msra.mxu0 %v3435
    %3873 = vmatprep.subr.mxu0 0.0
    %3874 = vmatpush1.msra.mxu0 %v3434
    %3875 = vmatprep.subr.mxu0 0.0
    %3876 = vmatpush2.msra.mxu0 0.0
    %3877 = vmatprep.subr.mxu0 0.0
    %3878 = vmatpush2.msra.mxu0 0.0
    %3879 = vmatprep.subr.mxu0 0.0
    %3880 = vmatpush2.msra.mxu0 0.0
    %3881 = vmatprep.subr.mxu0 0.0
    %3882 = vmatpush2.msra.mxu0 0.0
    %3883 = vmatprep.subr.mxu0 0.0
    %3884 = vmatpush2.msra.mxu0 0.0
    %3885 = vmatprep.subr.mxu0 0.0
    %3886 = vmatpush2.msra.mxu0 0.0
    %3887 = vmatprep.subr.mxu0 0.0
    %3888 = vmatpush2.msra.mxu0 0.0
    %3889 = vmatprep.subr.mxu0 0.0
    %3890 = vmatpush2.msra.mxu0 0.0
    %3891 = vmatprep.subr.mxu0 0.0
    %3892 = vmatpush2.msra.mxu0 0.0
    %3893 = vmatprep.subr.mxu0 0.0
    %3894 = vmatpush2.msra.mxu0 0.0
    %3895 = vmatprep.subr.mxu0 0.0
    %3896 = vmatpush2.msra.mxu0 0.0
    %3897 = vmatprep.subr.mxu0 0.0
    %3898 = vmatpush2.msra.mxu0 0.0
    %3899 = vmatprep.subr.mxu0 0.0
    %3900 = vmatpush2.msra.mxu0 0.0
    %3901 = vmatprep.subr.mxu0 0.0
    %3902 = vmatpush2.msra.mxu0 0.0
    %3903 = vmatprep.subr.mxu0 0.0
    %3904 = vmatpush2.msra.mxu0 0.0
    %3905 = vmatprep.subr.mxu0 0.0
    %3906 = vmatpush2.msra.mxu0 0.0
    %3907 = vmatprep.mubr.f32.mxu0 0.0
    %3908 = vmatmul.mubr.f32.gmra.mxu0 %v3827
    %v3909 = vpop.f32.mrf.mxu0
    %v3910 = vadd.f32 0.0, %v3909
    %v3911 = vpop.f32.mrf.mxu0
    %3912 = vmatprep.mubr.f32.mxu0 0.0
    %3913 = vmatmul.mubr.f32.gmra.mxu0 %v3829
    %v3914 = vpop.f32.mrf.mxu0
    %v3915 = vadd.f32 0.0, %v3914
    %v3916 = vpop.f32.mrf.mxu0
    %3917 = vmatprep.mubr.f32.mxu0 0.0
    %3918 = vmatmul.mubr.f32.gmra.mxu0 %v3831
    %v3919 = vpop.f32.mrf.mxu0
    %v3920 = vadd.f32 0.0, %v3919
    %v3921 = vpop.f32.mrf.mxu0
    %3922 = vmatprep.mubr.f32.mxu0 0.0
    %3923 = vmatmul.mubr.f32.gmra.mxu0 %v3833
    %v3924 = vpop.f32.mrf.mxu0
    %v3925 = vadd.f32 0.0, %v3924
    %v3926 = vpop.f32.mrf.mxu0
    %3927 = vmatprep.mubr.f32.mxu0 0.0
    %3928 = vmatmul.mubr.f32.gmra.mxu0 %v3835
    %v3929 = vpop.f32.mrf.mxu0
    %v3930 = vadd.f32 0.0, %v3929
    %v3931 = vpop.f32.mrf.mxu0
    %3932 = vmatprep.mubr.f32.mxu0 0.0
    %3933 = vmatmul.mubr.f32.gmra.mxu0 %v3837
    %v3934 = vpop.f32.mrf.mxu0
    %v3935 = vadd.f32 0.0, %v3934
    %v3936 = vpop.f32.mrf.mxu0
    %3937 = vmatprep.mubr.f32.mxu0 0.0
    %3938 = vmatmul.mubr.f32.gmra.mxu0 %v3839
    %v3939 = vpop.f32.mrf.mxu0
    %v3940 = vadd.f32 0.0, %v3939
    %v3941 = vpop.f32.mrf.mxu0
    %3942 = vmatprep.mubr.f32.mxu0 0.0
    %3943 = vmatmul.mubr.f32.gmra.mxu0 %v3841
    %v3944 = vpop.f32.mrf.mxu0
    %v3945 = vadd.f32 0.0, %v3944
    %v3946 = vpop.f32.mrf.mxu0
    %3947 = vdwg.mxu0
    %v3956 = vlaneseq
    %v3957 = vshrl.u32 %v3956, 7
    %v3958 = vsub.s32 0, %v3957
    %v3959 = vrot.slane %v3328, %v3958
    %v3960 = vlaneseq
    %v3961 = vshrl.u32 %v3960, 7
    %v3962 = vsub.s32 0, %v3961
    %v3963 = vrot.slane %v3340, %v3962
    %v3964 = vlaneseq
    %v3965 = vshrl.u32 %v3964, 7
    %v3966 = vsub.s32 0, %v3965
    %v3967 = vrot.slane %v3352, %v3966
    %v3968 = vlaneseq
    %v3969 = vshrl.u32 %v3968, 7
    %v3970 = vsub.s32 0, %v3969
    %v3971 = vrot.slane %v3364, %v3970
    %v3972 = vlaneseq
    %v3973 = vshrl.u32 %v3972, 7
    %v3974 = vsub.s32 0, %v3973
    %v3975 = vrot.slane %v3376, %v3974
    %v3976 = vlaneseq
    %v3977 = vshrl.u32 %v3976, 7
    %v3978 = vsub.s32 0, %v3977
    %v3979 = vrot.slane %v3388, %v3978
    %v3980 = vlaneseq
    %v3981 = vshrl.u32 %v3980, 7
    %v3982 = vsub.s32 0, %v3981
    %v3983 = vrot.slane %v3400, %v3982
    %v3984 = vlaneseq
    %v3985 = vshrl.u32 %v3984, 7
    %v3986 = vsub.s32 0, %v3985
    %v3987 = vrot.slane %v3412, %v3986
    %v3988 = vsel %vm3763, %v3510, %v3959
    %v3989 = vsel %vm3765, %v3514, %v3988
    %v3990 = vsel %vm3767, %v3518, %v3989
    %v3991 = vsel %vm3769, %v3522, %v3990
    %v3992 = vsel %vm3771, %v3526, %v3991
    %v3993 = vsel %vm3773, %v3530, %v3992
    %v3994 = vsel %vm3775, %v3534, %v3993
    %v3995 = vsel %vm3763, %v3542, %v3963
    %v3996 = vsel %vm3765, %v3546, %v3995
    %v3997 = vsel %vm3767, %v3550, %v3996
    %v3998 = vsel %vm3769, %v3554, %v3997
    %v3999 = vsel %vm3771, %v3558, %v3998
    %v4000 = vsel %vm3773, %v3562, %v3999
    %v4001 = vsel %vm3775, %v3566, %v4000
    %v4002 = vsel %vm3763, %v3574, %v3967
    %v4003 = vsel %vm3765, %v3578, %v4002
    %v4004 = vsel %vm3767, %v3582, %v4003
    %v4005 = vsel %vm3769, %v3586, %v4004
    %v4006 = vsel %vm3771, %v3590, %v4005
    %v4007 = vsel %vm3773, %v3594, %v4006
    %v4008 = vsel %vm3775, %v3598, %v4007
    %v4009 = vsel %vm3763, %v3606, %v3971
    %v4010 = vsel %vm3765, %v3610, %v4009
    %v4011 = vsel %vm3767, %v3614, %v4010
    %v4012 = vsel %vm3769, %v3618, %v4011
    %v4013 = vsel %vm3771, %v3622, %v4012
    %v4014 = vsel %vm3773, %v3626, %v4013
    %v4015 = vsel %vm3775, %v3630, %v4014
    %v4016 = vsel %vm3763, %v3638, %v3975
    %v4017 = vsel %vm3765, %v3642, %v4016
    %v4018 = vsel %vm3767, %v3646, %v4017
    %v4019 = vsel %vm3769, %v3650, %v4018
    %v4020 = vsel %vm3771, %v3654, %v4019
    %v4021 = vsel %vm3773, %v3658, %v4020
    %v4022 = vsel %vm3775, %v3662, %v4021
    %v4023 = vsel %vm3763, %v3670, %v3979
    %v4024 = vsel %vm3765, %v3674, %v4023
    %v4025 = vsel %vm3767, %v3678, %v4024
    %v4026 = vsel %vm3769, %v3682, %v4025
    %v4027 = vsel %vm3771, %v3686, %v4026
    %v4028 = vsel %vm3773, %v3690, %v4027
    %v4029 = vsel %vm3775, %v3694, %v4028
    %v4030 = vsel %vm3763, %v3702, %v3983
    %v4031 = vsel %vm3765, %v3706, %v4030
    %v4032 = vsel %vm3767, %v3710, %v4031
    %v4033 = vsel %vm3769, %v3714, %v4032
    %v4034 = vsel %vm3771, %v3718, %v4033
    %v4035 = vsel %vm3773, %v3722, %v4034
    %v4036 = vsel %vm3775, %v3726, %v4035
    %v4037 = vsel %vm3763, %v3734, %v3987
    %v4038 = vsel %vm3765, %v3738, %v4037
    %v4039 = vsel %vm3767, %v3742, %v4038
    %v4040 = vsel %vm3769, %v3746, %v4039
    %v4041 = vsel %vm3771, %v3750, %v4040
    %v4042 = vsel %vm3773, %v3754, %v4041
    %v4043 = vsel %vm3775, %v3758, %v4042
    %v4044 = vsel %vm3826, %v3994, 0
    %v4046 = vsel %vm3826, %v4001, 0
    %v4048 = vsel %vm3826, %v4008, 0
    %v4050 = vsel %vm3826, %v4015, 0
    %v4052 = vsel %vm3826, %v4022, 0
    %v4054 = vsel %vm3826, %v4029, 0
    %v4056 = vsel %vm3826, %v4036, 0
    %v4058 = vsel %vm3826, %v4043, 0
    %4060 = vmatprep.subr.mxu0 0.0
    %4061 = vmatpush1.msra.mxu0 0.0
    %4062 = vmatprep.subr.mxu0 0.0
    %4063 = vmatpush1.msra.mxu0 0.0
    %4064 = vmatprep.subr.mxu0 0.0
    %4065 = vmatpush1.msra.mxu0 0.0
    %4066 = vmatprep.subr.mxu0 0.0
    %4067 = vmatpush1.msra.mxu0 0.0
    %4068 = vmatprep.subr.mxu0 0.0
    %4069 = vmatpush1.msra.mxu0 0.0
    %4070 = vmatprep.subr.mxu0 0.0
    %4071 = vmatpush1.msra.mxu0 0.0
    %4072 = vmatprep.subr.mxu0 0.0
    %4073 = vmatpush1.msra.mxu0 0.0
    %4074 = vmatprep.subr.mxu0 0.0
    %4075 = vmatpush1.msra.mxu0 %v3432
    %4076 = vmatprep.subr.mxu0 0.0
    %4077 = vmatpush1.msra.mxu0 %v3431
    %4078 = vmatprep.subr.mxu0 0.0
    %4079 = vmatpush1.msra.mxu0 %v3430
    %4080 = vmatprep.subr.mxu0 0.0
    %4081 = vmatpush1.msra.mxu0 %v3429
    %4082 = vmatprep.subr.mxu0 0.0
    %4083 = vmatpush1.msra.mxu0 %v3428
    %4084 = vmatprep.subr.mxu0 0.0
    %4085 = vmatpush1.msra.mxu0 %v3427
    %4086 = vmatprep.subr.mxu0 0.0
    %4087 = vmatpush1.msra.mxu0 %v3426
    %4088 = vmatprep.subr.mxu0 0.0
    %4089 = vmatpush1.msra.mxu0 %v3425
    %4090 = vmatprep.subr.mxu0 0.0
    %4091 = vmatpush1.msra.mxu0 %v3424
    %4092 = vmatprep.subr.mxu0 0.0
    %4093 = vmatpush2.msra.mxu0 0.0
    %4094 = vmatprep.subr.mxu0 0.0
    %4095 = vmatpush2.msra.mxu0 0.0
    %4096 = vmatprep.subr.mxu0 0.0
    %4097 = vmatpush2.msra.mxu0 0.0
    %4098 = vmatprep.subr.mxu0 0.0
    %4099 = vmatpush2.msra.mxu0 0.0
    %4100 = vmatprep.subr.mxu0 0.0
    %4101 = vmatpush2.msra.mxu0 0.0
    %4102 = vmatprep.subr.mxu0 0.0
    %4103 = vmatpush2.msra.mxu0 0.0
    %4104 = vmatprep.subr.mxu0 0.0
    %4105 = vmatpush2.msra.mxu0 0.0
    %4106 = vmatprep.subr.mxu0 0.0
    %4107 = vmatpush2.msra.mxu0 0.0
    %4108 = vmatprep.subr.mxu0 0.0
    %4109 = vmatpush2.msra.mxu0 0.0
    %4110 = vmatprep.subr.mxu0 0.0
    %4111 = vmatpush2.msra.mxu0 0.0
    %4112 = vmatprep.subr.mxu0 0.0
    %4113 = vmatpush2.msra.mxu0 0.0
    %4114 = vmatprep.subr.mxu0 0.0
    %4115 = vmatpush2.msra.mxu0 0.0
    %4116 = vmatprep.subr.mxu0 0.0
    %4117 = vmatpush2.msra.mxu0 0.0
    %4118 = vmatprep.subr.mxu0 0.0
    %4119 = vmatpush2.msra.mxu0 0.0
    %4120 = vmatprep.subr.mxu0 0.0
    %4121 = vmatpush2.msra.mxu0 0.0
    %4122 = vmatprep.subr.mxu0 0.0
    %4123 = vmatpush2.msra.mxu0 0.0
    %4124 = vmatprep.mubr.f32.mxu0 0.0
    %4125 = vmatmul.mubr.f32.gmra.mxu0 %v4044
    %v4126 = vpop.f32.mrf.mxu0
    %v4127 = vadd.f32 %v3910, %v4126
    %v4128 = vpop.f32.mrf.mxu0
    %4129 = vmatprep.mubr.f32.mxu0 0.0
    %4130 = vmatmul.mubr.f32.gmra.mxu0 %v4046
    %v4131 = vpop.f32.mrf.mxu0
    %v4132 = vadd.f32 %v3915, %v4131
    %v4133 = vpop.f32.mrf.mxu0
    %4134 = vmatprep.mubr.f32.mxu0 0.0
    %4135 = vmatmul.mubr.f32.gmra.mxu0 %v4048
    %v4136 = vpop.f32.mrf.mxu0
    %v4137 = vadd.f32 %v3920, %v4136
    %v4138 = vpop.f32.mrf.mxu0
    %4139 = vmatprep.mubr.f32.mxu0 0.0
    %4140 = vmatmul.mubr.f32.gmra.mxu0 %v4050
    %v4141 = vpop.f32.mrf.mxu0
    %v4142 = vadd.f32 %v3925, %v4141
    %v4143 = vpop.f32.mrf.mxu0
    %4144 = vmatprep.mubr.f32.mxu0 0.0
    %4145 = vmatmul.mubr.f32.gmra.mxu0 %v4052
    %v4146 = vpop.f32.mrf.mxu0
    %v4147 = vadd.f32 %v3930, %v4146
    %v4148 = vpop.f32.mrf.mxu0
    %4149 = vmatprep.mubr.f32.mxu0 0.0
    %4150 = vmatmul.mubr.f32.gmra.mxu0 %v4054
    %v4151 = vpop.f32.mrf.mxu0
    %v4152 = vadd.f32 %v3935, %v4151
    %v4153 = vpop.f32.mrf.mxu0
    %4154 = vmatprep.mubr.f32.mxu0 0.0
    %4155 = vmatmul.mubr.f32.gmra.mxu0 %v4056
    %v4156 = vpop.f32.mrf.mxu0
    %v4157 = vadd.f32 %v3940, %v4156
    %v4158 = vpop.f32.mrf.mxu0
    %4159 = vmatprep.mubr.f32.mxu0 0.0
    %4160 = vmatmul.mubr.f32.gmra.mxu0 %v4058
    %v4161 = vpop.f32.mrf.mxu0
    %v4162 = vadd.f32 %v3945, %v4161
    %v4163 = vpop.f32.mrf.mxu0
    %4164 = vdwg.mxu0
    %s4165 = scalar_lea.vmem %s5, 144
    %v4166 = vld [vmem:[%s4165] sm:$0xff]
    %v4167 = vld [vmem:[%s4165 + $0x8] sm:$0xff]
    %v4168 = vld [vmem:[%s4165 + $0x10] sm:$0xff]
    %v4169 = vld [vmem:[%s4165 + $0x18] sm:$0xff]
    %v4170 = vld [vmem:[%s4165 + $0x20] sm:$0xff]
    %v4171 = vld [vmem:[%s4165 + $0x28] sm:$0xff]
    %v4172 = vld [vmem:[%s4165 + $0x30] sm:$0xff]
    %v4173 = vld [vmem:[%s4165 + $0x38] sm:$0xff]
    %v4174 = vld [vmem:[%s4165 + $0x40] sm:$0xff]
    %v4183 = vlaneseq
    %v4184 = vshrl.u32 %v4183, 7
    %v4185 = vsub.s32 0, %v4184
    %v4186 = vrot.slane %v3337, %v4185
    %v4187 = vlaneseq
    %v4188 = vshrl.u32 %v4187, 7
    %v4189 = vsub.s32 0, %v4188
    %v4190 = vrot.slane %v3349, %v4189
    %v4191 = vlaneseq
    %v4192 = vshrl.u32 %v4191, 7
    %v4193 = vsub.s32 0, %v4192
    %v4194 = vrot.slane %v3361, %v4193
    %v4195 = vlaneseq
    %v4196 = vshrl.u32 %v4195, 7
    %v4197 = vsub.s32 0, %v4196
    %v4198 = vrot.slane %v3373, %v4197
    %v4199 = vlaneseq
    %v4200 = vshrl.u32 %v4199, 7
    %v4201 = vsub.s32 0, %v4200
    %v4202 = vrot.slane %v3385, %v4201
    %v4203 = vlaneseq
    %v4204 = vshrl.u32 %v4203, 7
    %v4205 = vsub.s32 0, %v4204
    %v4206 = vrot.slane %v3397, %v4205
    %v4207 = vlaneseq
    %v4208 = vshrl.u32 %v4207, 7
    %v4209 = vsub.s32 0, %v4208
    %v4210 = vrot.slane %v3409, %v4209
    %v4211 = vlaneseq
    %v4212 = vshrl.u32 %v4211, 7
    %v4213 = vsub.s32 0, %v4212
    %v4214 = vrot.slane %v3421, %v4213
    %v4215 = vsel %vm3763, %v3518, %v3514
    %v4216 = vsel %vm3765, %v3522, %v4215
    %v4217 = vsel %vm3767, %v3526, %v4216
    %v4218 = vsel %vm3769, %v3530, %v4217
    %v4219 = vsel %vm3771, %v3534, %v4218
    %v4220 = vsel %vm3773, %v3538, %v4219
    %v4221 = vsel %vm3775, %v4186, %v4220
    %v4222 = vsel %vm3763, %v3550, %v3546
    %v4223 = vsel %vm3765, %v3554, %v4222
    %v4224 = vsel %vm3767, %v3558, %v4223
    %v4225 = vsel %vm3769, %v3562, %v4224
    %v4226 = vsel %vm3771, %v3566, %v4225
    %v4227 = vsel %vm3773, %v3570, %v4226
    %v4228 = vsel %vm3775, %v4190, %v4227
    %v4229 = vsel %vm3763, %v3582, %v3578
    %v4230 = vsel %vm3765, %v3586, %v4229
    %v4231 = vsel %vm3767, %v3590, %v4230
    %v4232 = vsel %vm3769, %v3594, %v4231
    %v4233 = vsel %vm3771, %v3598, %v4232
    %v4234 = vsel %vm3773, %v3602, %v4233
    %v4235 = vsel %vm3775, %v4194, %v4234
    %v4236 = vsel %vm3763, %v3614, %v3610
    %v4237 = vsel %vm3765, %v3618, %v4236
    %v4238 = vsel %vm3767, %v3622, %v4237
    %v4239 = vsel %vm3769, %v3626, %v4238
    %v4240 = vsel %vm3771, %v3630, %v4239
    %v4241 = vsel %vm3773, %v3634, %v4240
    %v4242 = vsel %vm3775, %v4198, %v4241
    %v4243 = vsel %vm3763, %v3646, %v3642
    %v4244 = vsel %vm3765, %v3650, %v4243
    %v4245 = vsel %vm3767, %v3654, %v4244
    %v4246 = vsel %vm3769, %v3658, %v4245
    %v4247 = vsel %vm3771, %v3662, %v4246
    %v4248 = vsel %vm3773, %v3666, %v4247
    %v4249 = vsel %vm3775, %v4202, %v4248
    %v4250 = vsel %vm3763, %v3678, %v3674
    %v4251 = vsel %vm3765, %v3682, %v4250
    %v4252 = vsel %vm3767, %v3686, %v4251
    %v4253 = vsel %vm3769, %v3690, %v4252
    %v4254 = vsel %vm3771, %v3694, %v4253
    %v4255 = vsel %vm3773, %v3698, %v4254
    %v4256 = vsel %vm3775, %v4206, %v4255
    %v4257 = vsel %vm3763, %v3710, %v3706
    %v4258 = vsel %vm3765, %v3714, %v4257
    %v4259 = vsel %vm3767, %v3718, %v4258
    %v4260 = vsel %vm3769, %v3722, %v4259
    %v4261 = vsel %vm3771, %v3726, %v4260
    %v4262 = vsel %vm3773, %v3730, %v4261
    %v4263 = vsel %vm3775, %v4210, %v4262
    %v4264 = vsel %vm3763, %v3742, %v3738
    %v4265 = vsel %vm3765, %v3746, %v4264
    %v4266 = vsel %vm3767, %v3750, %v4265
    %v4267 = vsel %vm3769, %v3754, %v4266
    %v4268 = vsel %vm3771, %v3758, %v4267
    %v4269 = vsel %vm3773, %v3762, %v4268
    %v4270 = vsel %vm3775, %v4214, %v4269
    %v4271 = vsel %vm3826, %v4221, 0
    %v4273 = vsel %vm3826, %v4228, 0
    %v4275 = vsel %vm3826, %v4235, 0
    %v4277 = vsel %vm3826, %v4242, 0
    %v4279 = vsel %vm3826, %v4249, 0
    %v4281 = vsel %vm3826, %v4256, 0
    %v4283 = vsel %vm3826, %v4263, 0
    %v4285 = vsel %vm3826, %v4270, 0
    %4287 = vmatprep.subr.mxu0 0.0
    %4288 = vmatpush1.msra.mxu0 0.0
    %4289 = vmatprep.subr.mxu0 0.0
    %4290 = vmatpush1.msra.mxu0 0.0
    %4291 = vmatprep.subr.mxu0 0.0
    %4292 = vmatpush1.msra.mxu0 0.0
    %4293 = vmatprep.subr.mxu0 0.0
    %4294 = vmatpush1.msra.mxu0 0.0
    %4295 = vmatprep.subr.mxu0 0.0
    %4296 = vmatpush1.msra.mxu0 0.0
    %4297 = vmatprep.subr.mxu0 0.0
    %4298 = vmatpush1.msra.mxu0 0.0
    %4299 = vmatprep.subr.mxu0 0.0
    %4300 = vmatpush1.msra.mxu0 0.0
    %4301 = vmatprep.subr.mxu0 0.0
    %4302 = vmatpush1.msra.mxu0 %v4174
    %4303 = vmatprep.subr.mxu0 0.0
    %4304 = vmatpush1.msra.mxu0 %v4173
    %4305 = vmatprep.subr.mxu0 0.0
    %4306 = vmatpush1.msra.mxu0 %v4172
    %4307 = vmatprep.subr.mxu0 0.0
    %4308 = vmatpush1.msra.mxu0 %v4171
    %4309 = vmatprep.subr.mxu0 0.0
    %4310 = vmatpush1.msra.mxu0 %v4170
    %4311 = vmatprep.subr.mxu0 0.0
    %4312 = vmatpush1.msra.mxu0 %v4169
    %4313 = vmatprep.subr.mxu0 0.0
    %4314 = vmatpush1.msra.mxu0 %v4168
    %4315 = vmatprep.subr.mxu0 0.0
    %4316 = vmatpush1.msra.mxu0 %v4167
    %4317 = vmatprep.subr.mxu0 0.0
    %4318 = vmatpush1.msra.mxu0 %v4166
    %4319 = vmatprep.subr.mxu0 0.0
    %4320 = vmatpush2.msra.mxu0 0.0
    %4321 = vmatprep.subr.mxu0 0.0
    %4322 = vmatpush2.msra.mxu0 0.0
    %4323 = vmatprep.subr.mxu0 0.0
    %4324 = vmatpush2.msra.mxu0 0.0
    %4325 = vmatprep.subr.mxu0 0.0
    %4326 = vmatpush2.msra.mxu0 0.0
    %4327 = vmatprep.subr.mxu0 0.0
    %4328 = vmatpush2.msra.mxu0 0.0
    %4329 = vmatprep.subr.mxu0 0.0
    %4330 = vmatpush2.msra.mxu0 0.0
    %4331 = vmatprep.subr.mxu0 0.0
    %4332 = vmatpush2.msra.mxu0 0.0
    %4333 = vmatprep.subr.mxu0 0.0
    %4334 = vmatpush2.msra.mxu0 0.0
    %4335 = vmatprep.subr.mxu0 0.0
    %4336 = vmatpush2.msra.mxu0 0.0
    %4337 = vmatprep.subr.mxu0 0.0
    %4338 = vmatpush2.msra.mxu0 0.0
    %4339 = vmatprep.subr.mxu0 0.0
    %4340 = vmatpush2.msra.mxu0 0.0
    %4341 = vmatprep.subr.mxu0 0.0
    %4342 = vmatpush2.msra.mxu0 0.0
    %4343 = vmatprep.subr.mxu0 0.0
    %4344 = vmatpush2.msra.mxu0 0.0
    %4345 = vmatprep.subr.mxu0 0.0
    %4346 = vmatpush2.msra.mxu0 0.0
    %4347 = vmatprep.subr.mxu0 0.0
    %4348 = vmatpush2.msra.mxu0 0.0
    %4349 = vmatprep.subr.mxu0 0.0
    %4350 = vmatpush2.msra.mxu0 0.0
    %4351 = vmatprep.mubr.f32.mxu0 0.0
    %4352 = vmatmul.mubr.f32.gmra.mxu0 %v4271
    %v4353 = vpop.f32.mrf.mxu0
    %v4354 = vadd.f32 0.0, %v4353
    %v4355 = vpop.f32.mrf.mxu0
    %4356 = vmatprep.mubr.f32.mxu0 0.0
    %4357 = vmatmul.mubr.f32.gmra.mxu0 %v4273
    %v4358 = vpop.f32.mrf.mxu0
    %v4359 = vadd.f32 0.0, %v4358
    %v4360 = vpop.f32.mrf.mxu0
    %4361 = vmatprep.mubr.f32.mxu0 0.0
    %4362 = vmatmul.mubr.f32.gmra.mxu0 %v4275
    %v4363 = vpop.f32.mrf.mxu0
    %v4364 = vadd.f32 0.0, %v4363
    %v4365 = vpop.f32.mrf.mxu0
    %4366 = vmatprep.mubr.f32.mxu0 0.0
    %4367 = vmatmul.mubr.f32.gmra.mxu0 %v4277
    %v4368 = vpop.f32.mrf.mxu0
    %v4369 = vadd.f32 0.0, %v4368
    %v4370 = vpop.f32.mrf.mxu0
    %4371 = vmatprep.mubr.f32.mxu0 0.0
    %4372 = vmatmul.mubr.f32.gmra.mxu0 %v4279
    %v4373 = vpop.f32.mrf.mxu0
    %v4374 = vadd.f32 0.0, %v4373
    %v4375 = vpop.f32.mrf.mxu0
    %4376 = vmatprep.mubr.f32.mxu0 0.0
    %4377 = vmatmul.mubr.f32.gmra.mxu0 %v4281
    %v4378 = vpop.f32.mrf.mxu0
    %v4379 = vadd.f32 0.0, %v4378
    %v4380 = vpop.f32.mrf.mxu0
    %4381 = vmatprep.mubr.f32.mxu0 0.0
    %4382 = vmatmul.mubr.f32.gmra.mxu0 %v4283
    %v4383 = vpop.f32.mrf.mxu0
    %v4384 = vadd.f32 0.0, %v4383
    %v4385 = vpop.f32.mrf.mxu0
    %4386 = vmatprep.mubr.f32.mxu0 0.0
    %4387 = vmatmul.mubr.f32.gmra.mxu0 %v4285
    %v4388 = vpop.f32.mrf.mxu0
    %v4389 = vadd.f32 0.0, %v4388
    %v4390 = vpop.f32.mrf.mxu0
    %4391 = vdwg.mxu0
    %v4392 = vadd.f32 %v4127, %v4354
    %v4393 = vadd.f32 %v4132, %v4359
    %v4394 = vadd.f32 %v4137, %v4364
    %v4395 = vadd.f32 %v4142, %v4369
    %v4396 = vadd.f32 %v4147, %v4374
    %v4397 = vadd.f32 %v4152, %v4379
    %v4398 = vadd.f32 %v4157, %v4384
    %v4399 = vadd.f32 %v4162, %v4389
    %s4400 = scalar_lea.vmem %s5, 216
    %v4401 = vld [vmem:[%s4400] sm:$0xff]
    %v4402 = vld [vmem:[%s4400 + $0x8] sm:$0xff]
    %v4403 = vld [vmem:[%s4400 + $0x10] sm:$0xff]
    %v4404 = vld [vmem:[%s4400 + $0x18] sm:$0xff]
    %v4405 = vld [vmem:[%s4400 + $0x20] sm:$0xff]
    %v4406 = vld [vmem:[%s4400 + $0x28] sm:$0xff]
    %v4407 = vld [vmem:[%s4400 + $0x30] sm:$0xff]
    %v4408 = vld [vmem:[%s4400 + $0x38] sm:$0xff]
    %v4409 = vld [vmem:[%s4400 + $0x40] sm:$0xff]
    %v4418 = vlaneseq
    %v4419 = vshrl.u32 %v4418, 7
    %v4420 = vsub.s32 0, %v4419
    %v4421 = vrot.slane %v3338, %v4420
    %v4422 = vlaneseq
    %v4423 = vshrl.u32 %v4422, 7
    %v4424 = vsub.s32 0, %v4423
    %v4425 = vrot.slane %v3350, %v4424
    %v4426 = vlaneseq
    %v4427 = vshrl.u32 %v4426, 7
    %v4428 = vsub.s32 0, %v4427
    %v4429 = vrot.slane %v3362, %v4428
    %v4430 = vlaneseq
    %v4431 = vshrl.u32 %v4430, 7
    %v4432 = vsub.s32 0, %v4431
    %v4433 = vrot.slane %v3374, %v4432
    %v4434 = vlaneseq
    %v4435 = vshrl.u32 %v4434, 7
    %v4436 = vsub.s32 0, %v4435
    %v4437 = vrot.slane %v3386, %v4436
    %v4438 = vlaneseq
    %v4439 = vshrl.u32 %v4438, 7
    %v4440 = vsub.s32 0, %v4439
    %v4441 = vrot.slane %v3398, %v4440
    %v4442 = vlaneseq
    %v4443 = vshrl.u32 %v4442, 7
    %v4444 = vsub.s32 0, %v4443
    %v4445 = vrot.slane %v3410, %v4444
    %v4446 = vlaneseq
    %v4447 = vshrl.u32 %v4446, 7
    %v4448 = vsub.s32 0, %v4447
    %v4449 = vrot.slane %v3422, %v4448
    %v4450 = vsel %vm3763, %v3522, %v3518
    %v4451 = vsel %vm3765, %v3526, %v4450
    %v4452 = vsel %vm3767, %v3530, %v4451
    %v4453 = vsel %vm3769, %v3534, %v4452
    %v4454 = vsel %vm3771, %v3538, %v4453
    %v4455 = vsel %vm3773, %v4186, %v4454
    %v4456 = vsel %vm3775, %v4421, %v4455
    %v4457 = vsel %vm3763, %v3554, %v3550
    %v4458 = vsel %vm3765, %v3558, %v4457
    %v4459 = vsel %vm3767, %v3562, %v4458
    %v4460 = vsel %vm3769, %v3566, %v4459
    %v4461 = vsel %vm3771, %v3570, %v4460
    %v4462 = vsel %vm3773, %v4190, %v4461
    %v4463 = vsel %vm3775, %v4425, %v4462
    %v4464 = vsel %vm3763, %v3586, %v3582
    %v4465 = vsel %vm3765, %v3590, %v4464
    %v4466 = vsel %vm3767, %v3594, %v4465
    %v4467 = vsel %vm3769, %v3598, %v4466
    %v4468 = vsel %vm3771, %v3602, %v4467
    %v4469 = vsel %vm3773, %v4194, %v4468
    %v4470 = vsel %vm3775, %v4429, %v4469
    %v4471 = vsel %vm3763, %v3618, %v3614
    %v4472 = vsel %vm3765, %v3622, %v4471
    %v4473 = vsel %vm3767, %v3626, %v4472
    %v4474 = vsel %vm3769, %v3630, %v4473
    %v4475 = vsel %vm3771, %v3634, %v4474
    %v4476 = vsel %vm3773, %v4198, %v4475
    %v4477 = vsel %vm3775, %v4433, %v4476
    %v4478 = vsel %vm3763, %v3650, %v3646
    %v4479 = vsel %vm3765, %v3654, %v4478
    %v4480 = vsel %vm3767, %v3658, %v4479
    %v4481 = vsel %vm3769, %v3662, %v4480
    %v4482 = vsel %vm3771, %v3666, %v4481
    %v4483 = vsel %vm3773, %v4202, %v4482
    %v4484 = vsel %vm3775, %v4437, %v4483
    %v4485 = vsel %vm3763, %v3682, %v3678
    %v4486 = vsel %vm3765, %v3686, %v4485
    %v4487 = vsel %vm3767, %v3690, %v4486
    %v4488 = vsel %vm3769, %v3694, %v4487
    %v4489 = vsel %vm3771, %v3698, %v4488
    %v4490 = vsel %vm3773, %v4206, %v4489
    %v4491 = vsel %vm3775, %v4441, %v4490
    %v4492 = vsel %vm3763, %v3714, %v3710
    %v4493 = vsel %vm3765, %v3718, %v4492
    %v4494 = vsel %vm3767, %v3722, %v4493
    %v4495 = vsel %vm3769, %v3726, %v4494
    %v4496 = vsel %vm3771, %v3730, %v4495
    %v4497 = vsel %vm3773, %v4210, %v4496
    %v4498 = vsel %vm3775, %v4445, %v4497
    %v4499 = vsel %vm3763, %v3746, %v3742
    %v4500 = vsel %vm3765, %v3750, %v4499
    %v4501 = vsel %vm3767, %v3754, %v4500
    %v4502 = vsel %vm3769, %v3758, %v4501
    %v4503 = vsel %vm3771, %v3762, %v4502
    %v4504 = vsel %vm3773, %v4214, %v4503
    %v4505 = vsel %vm3775, %v4449, %v4504
    %v4506 = vsel %vm3826, %v4456, 0
    %v4508 = vsel %vm3826, %v4463, 0
    %v4510 = vsel %vm3826, %v4470, 0
    %v4512 = vsel %vm3826, %v4477, 0
    %v4514 = vsel %vm3826, %v4484, 0
    %v4516 = vsel %vm3826, %v4491, 0
    %v4518 = vsel %vm3826, %v4498, 0
    %v4520 = vsel %vm3826, %v4505, 0
    %4522 = vmatprep.subr.mxu0 0.0
    %4523 = vmatpush1.msra.mxu0 0.0
    %4524 = vmatprep.subr.mxu0 0.0
    %4525 = vmatpush1.msra.mxu0 0.0
    %4526 = vmatprep.subr.mxu0 0.0
    %4527 = vmatpush1.msra.mxu0 0.0
    %4528 = vmatprep.subr.mxu0 0.0
    %4529 = vmatpush1.msra.mxu0 0.0
    %4530 = vmatprep.subr.mxu0 0.0
    %4531 = vmatpush1.msra.mxu0 0.0
    %4532 = vmatprep.subr.mxu0 0.0
    %4533 = vmatpush1.msra.mxu0 0.0
    %4534 = vmatprep.subr.mxu0 0.0
    %4535 = vmatpush1.msra.mxu0 0.0
    %4536 = vmatprep.subr.mxu0 0.0
    %4537 = vmatpush1.msra.mxu0 %v4409
    %4538 = vmatprep.subr.mxu0 0.0
    %4539 = vmatpush1.msra.mxu0 %v4408
    %4540 = vmatprep.subr.mxu0 0.0
    %4541 = vmatpush1.msra.mxu0 %v4407
    %4542 = vmatprep.subr.mxu0 0.0
    %4543 = vmatpush1.msra.mxu0 %v4406
    %4544 = vmatprep.subr.mxu0 0.0
    %4545 = vmatpush1.msra.mxu0 %v4405
    %4546 = vmatprep.subr.mxu0 0.0
    %4547 = vmatpush1.msra.mxu0 %v4404
    %4548 = vmatprep.subr.mxu0 0.0
    %4549 = vmatpush1.msra.mxu0 %v4403
    %4550 = vmatprep.subr.mxu0 0.0
    %4551 = vmatpush1.msra.mxu0 %v4402
    %4552 = vmatprep.subr.mxu0 0.0
    %4553 = vmatpush1.msra.mxu0 %v4401
    %4554 = vmatprep.subr.mxu0 0.0
    %4555 = vmatpush2.msra.mxu0 0.0
    %4556 = vmatprep.subr.mxu0 0.0
    %4557 = vmatpush2.msra.mxu0 0.0
    %4558 = vmatprep.subr.mxu0 0.0
    %4559 = vmatpush2.msra.mxu0 0.0
    %4560 = vmatprep.subr.mxu0 0.0
    %4561 = vmatpush2.msra.mxu0 0.0
    %4562 = vmatprep.subr.mxu0 0.0
    %4563 = vmatpush2.msra.mxu0 0.0
    %4564 = vmatprep.subr.mxu0 0.0
    %4565 = vmatpush2.msra.mxu0 0.0
    %4566 = vmatprep.subr.mxu0 0.0
    %4567 = vmatpush2.msra.mxu0 0.0
    %4568 = vmatprep.subr.mxu0 0.0
    %4569 = vmatpush2.msra.mxu0 0.0
    %4570 = vmatprep.subr.mxu0 0.0
    %4571 = vmatpush2.msra.mxu0 0.0
    %4572 = vmatprep.subr.mxu0 0.0
    %4573 = vmatpush2.msra.mxu0 0.0
    %4574 = vmatprep.subr.mxu0 0.0
    %4575 = vmatpush2.msra.mxu0 0.0
    %4576 = vmatprep.subr.mxu0 0.0
    %4577 = vmatpush2.msra.mxu0 0.0
    %4578 = vmatprep.subr.mxu0 0.0
    %4579 = vmatpush2.msra.mxu0 0.0
    %4580 = vmatprep.subr.mxu0 0.0
    %4581 = vmatpush2.msra.mxu0 0.0
    %4582 = vmatprep.subr.mxu0 0.0
    %4583 = vmatpush2.msra.mxu0 0.0
    %4584 = vmatprep.subr.mxu0 0.0
    %4585 = vmatpush2.msra.mxu0 0.0
    %4586 = vmatprep.mubr.f32.mxu0 0.0
    %4587 = vmatmul.mubr.f32.gmra.mxu0 %v4506
    %v4588 = vpop.f32.mrf.mxu0
    %v4589 = vadd.f32 0.0, %v4588
    %v4590 = vpop.f32.mrf.mxu0
    %4591 = vmatprep.mubr.f32.mxu0 0.0
    %4592 = vmatmul.mubr.f32.gmra.mxu0 %v4508
    %v4593 = vpop.f32.mrf.mxu0
    %v4594 = vadd.f32 0.0, %v4593
    %v4595 = vpop.f32.mrf.mxu0
    %4596 = vmatprep.mubr.f32.mxu0 0.0
    %4597 = vmatmul.mubr.f32.gmra.mxu0 %v4510
    %v4598 = vpop.f32.mrf.mxu0
    %v4599 = vadd.f32 0.0, %v4598
    %v4600 = vpop.f32.mrf.mxu0
    %4601 = vmatprep.mubr.f32.mxu0 0.0
    %4602 = vmatmul.mubr.f32.gmra.mxu0 %v4512
    %v4603 = vpop.f32.mrf.mxu0
    %v4604 = vadd.f32 0.0, %v4603
    %v4605 = vpop.f32.mrf.mxu0
    %4606 = vmatprep.mubr.f32.mxu0 0.0
    %4607 = vmatmul.mubr.f32.gmra.mxu0 %v4514
    %v4608 = vpop.f32.mrf.mxu0
    %v4609 = vadd.f32 0.0, %v4608
    %v4610 = vpop.f32.mrf.mxu0
    %4611 = vmatprep.mubr.f32.mxu0 0.0
    %4612 = vmatmul.mubr.f32.gmra.mxu0 %v4516
    %v4613 = vpop.f32.mrf.mxu0
    %v4614 = vadd.f32 0.0, %v4613
    %v4615 = vpop.f32.mrf.mxu0
    %4616 = vmatprep.mubr.f32.mxu0 0.0
    %4617 = vmatmul.mubr.f32.gmra.mxu0 %v4518
    %v4618 = vpop.f32.mrf.mxu0
    %v4619 = vadd.f32 0.0, %v4618
    %v4620 = vpop.f32.mrf.mxu0
    %4621 = vmatprep.mubr.f32.mxu0 0.0
    %4622 = vmatmul.mubr.f32.gmra.mxu0 %v4520
    %v4623 = vpop.f32.mrf.mxu0
    %v4624 = vadd.f32 0.0, %v4623
    %v4625 = vpop.f32.mrf.mxu0
    %4626 = vdwg.mxu0
    %v4627 = vadd.f32 %v4392, %v4589
    %v4628 = vadd.f32 %v4393, %v4594
    %v4629 = vadd.f32 %v4394, %v4599
    %v4630 = vadd.f32 %v4395, %v4604
    %v4631 = vadd.f32 %v4396, %v4609
    %v4632 = vadd.f32 %v4397, %v4614
    %v4633 = vadd.f32 %v4398, %v4619
    %v4634 = vadd.f32 %v4399, %v4624
    %s4635 = scalar_lea.vmem %s5, 288
    %v4636 = vld [vmem:[%s4635] sm:$0xff]
    %v4637 = vld [vmem:[%s4635 + $0x8] sm:$0xff]
    %v4638 = vld [vmem:[%s4635 + $0x10] sm:$0xff]
    %v4639 = vld [vmem:[%s4635 + $0x18] sm:$0xff]
    %v4640 = vld [vmem:[%s4635 + $0x20] sm:$0xff]
    %v4641 = vld [vmem:[%s4635 + $0x28] sm:$0xff]
    %v4642 = vld [vmem:[%s4635 + $0x30] sm:$0xff]
    %v4643 = vld [vmem:[%s4635 + $0x38] sm:$0xff]
    %v4644 = vld [vmem:[%s4635 + $0x40] sm:$0xff]
    %v4653 = vlaneseq
    %v4654 = vshrl.u32 %v4653, 7
    %v4655 = vsub.s32 0, %v4654
    %v4656 = vrot.slane %v3339, %v4655
    %v4657 = vlaneseq
    %v4658 = vshrl.u32 %v4657, 7
    %v4659 = vsub.s32 0, %v4658
    %v4660 = vrot.slane %v3351, %v4659
    %v4661 = vlaneseq
    %v4662 = vshrl.u32 %v4661, 7
    %v4663 = vsub.s32 0, %v4662
    %v4664 = vrot.slane %v3363, %v4663
    %v4665 = vlaneseq
    %v4666 = vshrl.u32 %v4665, 7
    %v4667 = vsub.s32 0, %v4666
    %v4668 = vrot.slane %v3375, %v4667
    %v4669 = vlaneseq
    %v4670 = vshrl.u32 %v4669, 7
    %v4671 = vsub.s32 0, %v4670
    %v4672 = vrot.slane %v3387, %v4671
    %v4673 = vlaneseq
    %v4674 = vshrl.u32 %v4673, 7
    %v4675 = vsub.s32 0, %v4674
    %v4676 = vrot.slane %v3399, %v4675
    %v4677 = vlaneseq
    %v4678 = vshrl.u32 %v4677, 7
    %v4679 = vsub.s32 0, %v4678
    %v4680 = vrot.slane %v3411, %v4679
    %v4681 = vlaneseq
    %v4682 = vshrl.u32 %v4681, 7
    %v4683 = vsub.s32 0, %v4682
    %v4684 = vrot.slane %v3423, %v4683
    %v4685 = vsel %vm3763, %v3526, %v3522
    %v4686 = vsel %vm3765, %v3530, %v4685
    %v4687 = vsel %vm3767, %v3534, %v4686
    %v4688 = vsel %vm3769, %v3538, %v4687
    %v4689 = vsel %vm3771, %v4186, %v4688
    %v4690 = vsel %vm3773, %v4421, %v4689
    %v4691 = vsel %vm3775, %v4656, %v4690
    %v4692 = vsel %vm3763, %v3558, %v3554
    %v4693 = vsel %vm3765, %v3562, %v4692
    %v4694 = vsel %vm3767, %v3566, %v4693
    %v4695 = vsel %vm3769, %v3570, %v4694
    %v4696 = vsel %vm3771, %v4190, %v4695
    %v4697 = vsel %vm3773, %v4425, %v4696
    %v4698 = vsel %vm3775, %v4660, %v4697
    %v4699 = vsel %vm3763, %v3590, %v3586
    %v4700 = vsel %vm3765, %v3594, %v4699
    %v4701 = vsel %vm3767, %v3598, %v4700
    %v4702 = vsel %vm3769, %v3602, %v4701
    %v4703 = vsel %vm3771, %v4194, %v4702
    %v4704 = vsel %vm3773, %v4429, %v4703
    %v4705 = vsel %vm3775, %v4664, %v4704
    %v4706 = vsel %vm3763, %v3622, %v3618
    %v4707 = vsel %vm3765, %v3626, %v4706
    %v4708 = vsel %vm3767, %v3630, %v4707
    %v4709 = vsel %vm3769, %v3634, %v4708
    %v4710 = vsel %vm3771, %v4198, %v4709
    %v4711 = vsel %vm3773, %v4433, %v4710
    %v4712 = vsel %vm3775, %v4668, %v4711
    %v4713 = vsel %vm3763, %v3654, %v3650
    %v4714 = vsel %vm3765, %v3658, %v4713
    %v4715 = vsel %vm3767, %v3662, %v4714
    %v4716 = vsel %vm3769, %v3666, %v4715
    %v4717 = vsel %vm3771, %v4202, %v4716
    %v4718 = vsel %vm3773, %v4437, %v4717
    %v4719 = vsel %vm3775, %v4672, %v4718
    %v4720 = vsel %vm3763, %v3686, %v3682
    %v4721 = vsel %vm3765, %v3690, %v4720
    %v4722 = vsel %vm3767, %v3694, %v4721
    %v4723 = vsel %vm3769, %v3698, %v4722
    %v4724 = vsel %vm3771, %v4206, %v4723
    %v4725 = vsel %vm3773, %v4441, %v4724
    %v4726 = vsel %vm3775, %v4676, %v4725
    %v4727 = vsel %vm3763, %v3718, %v3714
    %v4728 = vsel %vm3765, %v3722, %v4727
    %v4729 = vsel %vm3767, %v3726, %v4728
    %v4730 = vsel %vm3769, %v3730, %v4729
    %v4731 = vsel %vm3771, %v4210, %v4730
    %v4732 = vsel %vm3773, %v4445, %v4731
    %v4733 = vsel %vm3775, %v4680, %v4732
    %v4734 = vsel %vm3763, %v3750, %v3746
    %v4735 = vsel %vm3765, %v3754, %v4734
    %v4736 = vsel %vm3767, %v3758, %v4735
    %v4737 = vsel %vm3769, %v3762, %v4736
    %v4738 = vsel %vm3771, %v4214, %v4737
    %v4739 = vsel %vm3773, %v4449, %v4738
    %v4740 = vsel %vm3775, %v4684, %v4739
    %v4741 = vsel %vm3826, %v4691, 0
    %v4743 = vsel %vm3826, %v4698, 0
    %v4745 = vsel %vm3826, %v4705, 0
    %v4747 = vsel %vm3826, %v4712, 0
    %v4749 = vsel %vm3826, %v4719, 0
    %v4751 = vsel %vm3826, %v4726, 0
    %v4753 = vsel %vm3826, %v4733, 0
    %v4755 = vsel %vm3826, %v4740, 0
    %4757 = vmatprep.subr.mxu0 0.0
    %4758 = vmatpush1.msra.mxu0 0.0
    %4759 = vmatprep.subr.mxu0 0.0
    %4760 = vmatpush1.msra.mxu0 0.0
    %4761 = vmatprep.subr.mxu0 0.0
    %4762 = vmatpush1.msra.mxu0 0.0
    %4763 = vmatprep.subr.mxu0 0.0
    %4764 = vmatpush1.msra.mxu0 0.0
    %4765 = vmatprep.subr.mxu0 0.0
    %4766 = vmatpush1.msra.mxu0 0.0
    %4767 = vmatprep.subr.mxu0 0.0
    %4768 = vmatpush1.msra.mxu0 0.0
    %4769 = vmatprep.subr.mxu0 0.0
    %4770 = vmatpush1.msra.mxu0 0.0
    %4771 = vmatprep.subr.mxu0 0.0
    %4772 = vmatpush1.msra.mxu0 %v4644
    %4773 = vmatprep.subr.mxu0 0.0
    %4774 = vmatpush1.msra.mxu0 %v4643
    %4775 = vmatprep.subr.mxu0 0.0
    %4776 = vmatpush1.msra.mxu0 %v4642
    %4777 = vmatprep.subr.mxu0 0.0
    %4778 = vmatpush1.msra.mxu0 %v4641
    %4779 = vmatprep.subr.mxu0 0.0
    %4780 = vmatpush1.msra.mxu0 %v4640
    %4781 = vmatprep.subr.mxu0 0.0
    %4782 = vmatpush1.msra.mxu0 %v4639
    %4783 = vmatprep.subr.mxu0 0.0
    %4784 = vmatpush1.msra.mxu0 %v4638
    %4785 = vmatprep.subr.mxu0 0.0
    %4786 = vmatpush1.msra.mxu0 %v4637
    %4787 = vmatprep.subr.mxu0 0.0
    %4788 = vmatpush1.msra.mxu0 %v4636
    %4789 = vmatprep.subr.mxu0 0.0
    %4790 = vmatpush2.msra.mxu0 0.0
    %4791 = vmatprep.subr.mxu0 0.0
    %4792 = vmatpush2.msra.mxu0 0.0
    %4793 = vmatprep.subr.mxu0 0.0
    %4794 = vmatpush2.msra.mxu0 0.0
    %4795 = vmatprep.subr.mxu0 0.0
    %4796 = vmatpush2.msra.mxu0 0.0
    %4797 = vmatprep.subr.mxu0 0.0
    %4798 = vmatpush2.msra.mxu0 0.0
    %4799 = vmatprep.subr.mxu0 0.0
    %4800 = vmatpush2.msra.mxu0 0.0
    %4801 = vmatprep.subr.mxu0 0.0
    %4802 = vmatpush2.msra.mxu0 0.0
    %4803 = vmatprep.subr.mxu0 0.0
    %4804 = vmatpush2.msra.mxu0 0.0
    %4805 = vmatprep.subr.mxu0 0.0
    %4806 = vmatpush2.msra.mxu0 0.0
    %4807 = vmatprep.subr.mxu0 0.0
    %4808 = vmatpush2.msra.mxu0 0.0
    %4809 = vmatprep.subr.mxu0 0.0
    %4810 = vmatpush2.msra.mxu0 0.0
    %4811 = vmatprep.subr.mxu0 0.0
    %4812 = vmatpush2.msra.mxu0 0.0
    %4813 = vmatprep.subr.mxu0 0.0
    %4814 = vmatpush2.msra.mxu0 0.0
    %4815 = vmatprep.subr.mxu0 0.0
    %4816 = vmatpush2.msra.mxu0 0.0
    %4817 = vmatprep.subr.mxu0 0.0
    %4818 = vmatpush2.msra.mxu0 0.0
    %4819 = vmatprep.subr.mxu0 0.0
    %4820 = vmatpush2.msra.mxu0 0.0
    %4821 = vmatprep.mubr.f32.mxu0 0.0
    %4822 = vmatmul.mubr.f32.gmra.mxu0 %v4741
    %v4823 = vpop.f32.mrf.mxu0
    %v4824 = vadd.f32 0.0, %v4823
    %v4825 = vpop.f32.mrf.mxu0
    %4826 = vmatprep.mubr.f32.mxu0 0.0
    %4827 = vmatmul.mubr.f32.gmra.mxu0 %v4743
    %v4828 = vpop.f32.mrf.mxu0
    %v4829 = vadd.f32 0.0, %v4828
    %v4830 = vpop.f32.mrf.mxu0
    %4831 = vmatprep.mubr.f32.mxu0 0.0
    %4832 = vmatmul.mubr.f32.gmra.mxu0 %v4745
    %v4833 = vpop.f32.mrf.mxu0
    %v4834 = vadd.f32 0.0, %v4833
    %v4835 = vpop.f32.mrf.mxu0
    %4836 = vmatprep.mubr.f32.mxu0 0.0
    %4837 = vmatmul.mubr.f32.gmra.mxu0 %v4747
    %v4838 = vpop.f32.mrf.mxu0
    %v4839 = vadd.f32 0.0, %v4838
    %v4840 = vpop.f32.mrf.mxu0
    %4841 = vmatprep.mubr.f32.mxu0 0.0
    %4842 = vmatmul.mubr.f32.gmra.mxu0 %v4749
    %v4843 = vpop.f32.mrf.mxu0
    %v4844 = vadd.f32 0.0, %v4843
    %v4845 = vpop.f32.mrf.mxu0
    %4846 = vmatprep.mubr.f32.mxu0 0.0
    %4847 = vmatmul.mubr.f32.gmra.mxu0 %v4751
    %v4848 = vpop.f32.mrf.mxu0
    %v4849 = vadd.f32 0.0, %v4848
    %v4850 = vpop.f32.mrf.mxu0
    %4851 = vmatprep.mubr.f32.mxu0 0.0
    %4852 = vmatmul.mubr.f32.gmra.mxu0 %v4753
    %v4853 = vpop.f32.mrf.mxu0
    %v4854 = vadd.f32 0.0, %v4853
    %v4855 = vpop.f32.mrf.mxu0
    %4856 = vmatprep.mubr.f32.mxu0 0.0
    %4857 = vmatmul.mubr.f32.gmra.mxu0 %v4755
    %v4858 = vpop.f32.mrf.mxu0
    %v4859 = vadd.f32 0.0, %v4858
    %v4860 = vpop.f32.mrf.mxu0
    %4861 = vdwg.mxu0
    %v4862 = vadd.f32 %v4627, %v4824
    %v4863 = vadd.f32 %v4628, %v4829
    %v4864 = vadd.f32 %v4629, %v4834
    %v4865 = vadd.f32 %v4630, %v4839
    %v4866 = vadd.f32 %v4631, %v4844
    %v4867 = vadd.f32 %v4632, %v4849
    %v4868 = vadd.f32 %v4633, %v4854
    %v4869 = vadd.f32 %v4634, %v4859
    %v4870 = vld [vmem:[%s6] sm:$0x1]
    %v4872 = vlaneseq
    %v4873 = vshrl.u32 %v4872, 7
    %v4874 = vsub.s32 0, %v4873
    %v4875 = vrot.slane %v4870, %v4874
    %v4877 = vadd.f32 %v4862, %v4875
    %v4878 = vadd.f32 %v4863, %v4875
    %v4879 = vadd.f32 %v4864, %v4875
    %v4880 = vadd.f32 %v4865, %v4875
    %v4881 = vadd.f32 %v4866, %v4875
    %v4882 = vadd.f32 %v4867, %v4875
    %v4883 = vadd.f32 %v4868, %v4875
    %v4884 = vadd.f32 %v4869, %v4875
    %v4885 = vmax.f32 %v4877, 0.0
    %v4886 = vmax.f32 %v4878, 0.0
    %v4887 = vmax.f32 %v4879, 0.0
    %v4888 = vmax.f32 %v4880, 0.0
    %v4889 = vmax.f32 %v4881, 0.0
    %v4890 = vmax.f32 %v4882, 0.0
    %v4891 = vmax.f32 %v4883, 0.0
    %v4892 = vmax.f32 %v4884, 0.0
    %v4893 = vld [vmem:[%s7] sm:$0xff]
    %v4894 = vld [vmem:[%s7 + $0x8] sm:$0xff]
    %v4895 = vld [vmem:[%s7 + $0x10] sm:$0xff]
    %v4896 = vld [vmem:[%s7 + $0x18] sm:$0xff]
    %v4897 = vld [vmem:[%s7 + $0x20] sm:$0xff]
    %v4898 = vld [vmem:[%s7 + $0x28] sm:$0xff]
    %v4899 = vld [vmem:[%s7 + $0x30] sm:$0xff]
    %v4900 = vld [vmem:[%s7 + $0x38] sm:$0xff]
    %v4901 = vld [vmem:[%s7 + $0x40] sm:$0xff]
    %v4902 = vld [vmem:[%s7 + $0x48] sm:$0xff]
    %v4903 = vld [vmem:[%s7 + $0x50] sm:$0xff]
    %v4904 = vld [vmem:[%s7 + $0x58] sm:$0xff]
    %v4905 = vld [vmem:[%s7 + $0x60] sm:$0xff]
    %v4906 = vld [vmem:[%s7 + $0x68] sm:$0xff]
    %v4907 = vld [vmem:[%s7 + $0x70] sm:$0xff]
    %v4908 = vld [vmem:[%s7 + $0x78] sm:$0xff]
    %4909 = vmatprep.subr.mxu0 0.0
    %4910 = vmatpush1.msra.mxu0 %v4908
    %4911 = vmatprep.subr.mxu0 0.0
    %4912 = vmatpush1.msra.mxu0 %v4907
    %4913 = vmatprep.subr.mxu0 0.0
    %4914 = vmatpush1.msra.mxu0 %v4906
    %4915 = vmatprep.subr.mxu0 0.0
    %4916 = vmatpush1.msra.mxu0 %v4905
    %4917 = vmatprep.subr.mxu0 0.0
    %4918 = vmatpush1.msra.mxu0 %v4904
    %4919 = vmatprep.subr.mxu0 0.0
    %4920 = vmatpush1.msra.mxu0 %v4903
    %4921 = vmatprep.subr.mxu0 0.0
    %4922 = vmatpush1.msra.mxu0 %v4902
    %4923 = vmatprep.subr.mxu0 0.0
    %4924 = vmatpush1.msra.mxu0 %v4901
    %4925 = vmatprep.subr.mxu0 0.0
    %4926 = vmatpush1.msra.mxu0 %v4900
    %4927 = vmatprep.subr.mxu0 0.0
    %4928 = vmatpush1.msra.mxu0 %v4899
    %4929 = vmatprep.subr.mxu0 0.0
    %4930 = vmatpush1.msra.mxu0 %v4898
    %4931 = vmatprep.subr.mxu0 0.0
    %4932 = vmatpush1.msra.mxu0 %v4897
    %4933 = vmatprep.subr.mxu0 0.0
    %4934 = vmatpush1.msra.mxu0 %v4896
    %4935 = vmatprep.subr.mxu0 0.0
    %4936 = vmatpush1.msra.mxu0 %v4895
    %4937 = vmatprep.subr.mxu0 0.0
    %4938 = vmatpush1.msra.mxu0 %v4894
    %4939 = vmatprep.subr.mxu0 0.0
    %4940 = vmatpush1.msra.mxu0 %v4893
    %4941 = vmatprep.subr.mxu0 0.0
    %4942 = vmatpush2.msra.mxu0 0.0
    %4943 = vmatprep.subr.mxu0 0.0
    %4944 = vmatpush2.msra.mxu0 0.0
    %4945 = vmatprep.subr.mxu0 0.0
    %4946 = vmatpush2.msra.mxu0 0.0
    %4947 = vmatprep.subr.mxu0 0.0
    %4948 = vmatpush2.msra.mxu0 0.0
    %4949 = vmatprep.subr.mxu0 0.0
    %4950 = vmatpush2.msra.mxu0 0.0
    %4951 = vmatprep.subr.mxu0 0.0
    %4952 = vmatpush2.msra.mxu0 0.0
    %4953 = vmatprep.subr.mxu0 0.0
    %4954 = vmatpush2.msra.mxu0 0.0
    %4955 = vmatprep.subr.mxu0 0.0
    %4956 = vmatpush2.msra.mxu0 0.0
    %4957 = vmatprep.subr.mxu0 0.0
    %4958 = vmatpush2.msra.mxu0 0.0
    %4959 = vmatprep.subr.mxu0 0.0
    %4960 = vmatpush2.msra.mxu0 0.0
    %4961 = vmatprep.subr.mxu0 0.0
    %4962 = vmatpush2.msra.mxu0 0.0
    %4963 = vmatprep.subr.mxu0 0.0
    %4964 = vmatpush2.msra.mxu0 0.0
    %4965 = vmatprep.subr.mxu0 0.0
    %4966 = vmatpush2.msra.mxu0 0.0
    %4967 = vmatprep.subr.mxu0 0.0
    %4968 = vmatpush2.msra.mxu0 0.0
    %4969 = vmatprep.subr.mxu0 0.0
    %4970 = vmatpush2.msra.mxu0 0.0
    %4971 = vmatprep.subr.mxu0 0.0
    %4972 = vmatpush2.msra.mxu0 0.0
    %4973 = vmatprep.mubr.f32.mxu0 0.0
    %4974 = vmatmul.mubr.f32.gmra.mxu0 %v4885
    %v4975 = vpop.f32.mrf.mxu0
    %v4976 = vadd.f32 0.0, %v4975
    %v4977 = vpop.f32.mrf.mxu0
    %4978 = vmatprep.mubr.f32.mxu0 0.0
    %4979 = vmatmul.mubr.f32.gmra.mxu0 %v4886
    %v4980 = vpop.f32.mrf.mxu0
    %v4981 = vadd.f32 0.0, %v4980
    %v4982 = vpop.f32.mrf.mxu0
    %4983 = vmatprep.mubr.f32.mxu0 0.0
    %4984 = vmatmul.mubr.f32.gmra.mxu0 %v4887
    %v4985 = vpop.f32.mrf.mxu0
    %v4986 = vadd.f32 0.0, %v4985
    %v4987 = vpop.f32.mrf.mxu0
    %4988 = vmatprep.mubr.f32.mxu0 0.0
    %4989 = vmatmul.mubr.f32.gmra.mxu0 %v4888
    %v4990 = vpop.f32.mrf.mxu0
    %v4991 = vadd.f32 0.0, %v4990
    %v4992 = vpop.f32.mrf.mxu0
    %4993 = vmatprep.mubr.f32.mxu0 0.0
    %4994 = vmatmul.mubr.f32.gmra.mxu0 %v4889
    %v4995 = vpop.f32.mrf.mxu0
    %v4996 = vadd.f32 0.0, %v4995
    %v4997 = vpop.f32.mrf.mxu0
    %4998 = vmatprep.mubr.f32.mxu0 0.0
    %4999 = vmatmul.mubr.f32.gmra.mxu0 %v4890
    %v5000 = vpop.f32.mrf.mxu0
    %v5001 = vadd.f32 0.0, %v5000
    %v5002 = vpop.f32.mrf.mxu0
    %5003 = vmatprep.mubr.f32.mxu0 0.0
    %5004 = vmatmul.mubr.f32.gmra.mxu0 %v4891
    %v5005 = vpop.f32.mrf.mxu0
    %v5006 = vadd.f32 0.0, %v5005
    %v5007 = vpop.f32.mrf.mxu0
    %5008 = vmatprep.mubr.f32.mxu0 0.0
    %5009 = vmatmul.mubr.f32.gmra.mxu0 %v4892
    %v5010 = vpop.f32.mrf.mxu0
    %v5011 = vadd.f32 0.0, %v5010
    %v5012 = vpop.f32.mrf.mxu0
    %5013 = vdwg.mxu0
    %v5014 = vld [vmem:[%s8] sm:$0xff]
    %v5015 = vld [vmem:[%s8 + $0x8] sm:$0xff]
    %v5016 = vld [vmem:[%s8 + $0x10] sm:$0xff]
    %v5017 = vld [vmem:[%s8 + $0x18] sm:$0xff]
    %v5018 = vld [vmem:[%s8 + $0x20] sm:$0xff]
    %v5019 = vld [vmem:[%s8 + $0x28] sm:$0xff]
    %v5020 = vld [vmem:[%s8 + $0x30] sm:$0xff]
    %v5021 = vld [vmem:[%s8 + $0x38] sm:$0xff]
    %v5022 = vld [vmem:[%s8 + $0x40] sm:$0xff]
    %v5023 = vld [vmem:[%s8 + $0x48] sm:$0xff]
    %v5024 = vld [vmem:[%s8 + $0x50] sm:$0xff]
    %v5025 = vld [vmem:[%s8 + $0x58] sm:$0xff]
    %v5026 = vld [vmem:[%s8 + $0x60] sm:$0xff]
    %v5027 = vld [vmem:[%s8 + $0x68] sm:$0xff]
    %v5028 = vld [vmem:[%s8 + $0x70] sm:$0xff]
    %v5029 = vld [vmem:[%s8 + $0x78] sm:$0xff]
    %5030 = vmatprep.subr.mxu0 0.0
    %5031 = vmatpush1.msra.mxu0 %v5029
    %5032 = vmatprep.subr.mxu0 0.0
    %5033 = vmatpush1.msra.mxu0 %v5028
    %5034 = vmatprep.subr.mxu0 0.0
    %5035 = vmatpush1.msra.mxu0 %v5027
    %5036 = vmatprep.subr.mxu0 0.0
    %5037 = vmatpush1.msra.mxu0 %v5026
    %5038 = vmatprep.subr.mxu0 0.0
    %5039 = vmatpush1.msra.mxu0 %v5025
    %5040 = vmatprep.subr.mxu0 0.0
    %5041 = vmatpush1.msra.mxu0 %v5024
    %5042 = vmatprep.subr.mxu0 0.0
    %5043 = vmatpush1.msra.mxu0 %v5023
    %5044 = vmatprep.subr.mxu0 0.0
    %5045 = vmatpush1.msra.mxu0 %v5022
    %5046 = vmatprep.subr.mxu0 0.0
    %5047 = vmatpush1.msra.mxu0 %v5021
    %5048 = vmatprep.subr.mxu0 0.0
    %5049 = vmatpush1.msra.mxu0 %v5020
    %5050 = vmatprep.subr.mxu0 0.0
    %5051 = vmatpush1.msra.mxu0 %v5019
    %5052 = vmatprep.subr.mxu0 0.0
    %5053 = vmatpush1.msra.mxu0 %v5018
    %5054 = vmatprep.subr.mxu0 0.0
    %5055 = vmatpush1.msra.mxu0 %v5017
    %5056 = vmatprep.subr.mxu0 0.0
    %5057 = vmatpush1.msra.mxu0 %v5016
    %5058 = vmatprep.subr.mxu0 0.0
    %5059 = vmatpush1.msra.mxu0 %v5015
    %5060 = vmatprep.subr.mxu0 0.0
    %5061 = vmatpush1.msra.mxu0 %v5014
    %5062 = vmatprep.subr.mxu0 0.0
    %5063 = vmatpush2.msra.mxu0 0.0
    %5064 = vmatprep.subr.mxu0 0.0
    %5065 = vmatpush2.msra.mxu0 0.0
    %5066 = vmatprep.subr.mxu0 0.0
    %5067 = vmatpush2.msra.mxu0 0.0
    %5068 = vmatprep.subr.mxu0 0.0
    %5069 = vmatpush2.msra.mxu0 0.0
    %5070 = vmatprep.subr.mxu0 0.0
    %5071 = vmatpush2.msra.mxu0 0.0
    %5072 = vmatprep.subr.mxu0 0.0
    %5073 = vmatpush2.msra.mxu0 0.0
    %5074 = vmatprep.subr.mxu0 0.0
    %5075 = vmatpush2.msra.mxu0 0.0
    %5076 = vmatprep.subr.mxu0 0.0
    %5077 = vmatpush2.msra.mxu0 0.0
    %5078 = vmatprep.subr.mxu0 0.0
    %5079 = vmatpush2.msra.mxu0 0.0
    %5080 = vmatprep.subr.mxu0 0.0
    %5081 = vmatpush2.msra.mxu0 0.0
    %5082 = vmatprep.subr.mxu0 0.0
    %5083 = vmatpush2.msra.mxu0 0.0
    %5084 = vmatprep.subr.mxu0 0.0
    %5085 = vmatpush2.msra.mxu0 0.0
    %5086 = vmatprep.subr.mxu0 0.0
    %5087 = vmatpush2.msra.mxu0 0.0
    %5088 = vmatprep.subr.mxu0 0.0
    %5089 = vmatpush2.msra.mxu0 0.0
    %5090 = vmatprep.subr.mxu0 0.0
    %5091 = vmatpush2.msra.mxu0 0.0
    %5092 = vmatprep.subr.mxu0 0.0
    %5093 = vmatpush2.msra.mxu0 0.0
    %5094 = vmatprep.mubr.f32.mxu0 0.0
    %5095 = vmatmul.mubr.f32.gmra.mxu0 %v4885
    %v5096 = vpop.f32.mrf.mxu0
    %v5097 = vadd.f32 0.0, %v5096
    %v5098 = vpop.f32.mrf.mxu0
    %5099 = vmatprep.mubr.f32.mxu0 0.0
    %5100 = vmatmul.mubr.f32.gmra.mxu0 %v4886
    %v5101 = vpop.f32.mrf.mxu0
    %v5102 = vadd.f32 0.0, %v5101
    %v5103 = vpop.f32.mrf.mxu0
    %5104 = vmatprep.mubr.f32.mxu0 0.0
    %5105 = vmatmul.mubr.f32.gmra.mxu0 %v4887
    %v5106 = vpop.f32.mrf.mxu0
    %v5107 = vadd.f32 0.0, %v5106
    %v5108 = vpop.f32.mrf.mxu0
    %5109 = vmatprep.mubr.f32.mxu0 0.0
    %5110 = vmatmul.mubr.f32.gmra.mxu0 %v4888
    %v5111 = vpop.f32.mrf.mxu0
    %v5112 = vadd.f32 0.0, %v5111
    %v5113 = vpop.f32.mrf.mxu0
    %5114 = vmatprep.mubr.f32.mxu0 0.0
    %5115 = vmatmul.mubr.f32.gmra.mxu0 %v4889
    %v5116 = vpop.f32.mrf.mxu0
    %v5117 = vadd.f32 0.0, %v5116
    %v5118 = vpop.f32.mrf.mxu0
    %5119 = vmatprep.mubr.f32.mxu0 0.0
    %5120 = vmatmul.mubr.f32.gmra.mxu0 %v4890
    %v5121 = vpop.f32.mrf.mxu0
    %v5122 = vadd.f32 0.0, %v5121
    %v5123 = vpop.f32.mrf.mxu0
    %5124 = vmatprep.mubr.f32.mxu0 0.0
    %5125 = vmatmul.mubr.f32.gmra.mxu0 %v4891
    %v5126 = vpop.f32.mrf.mxu0
    %v5127 = vadd.f32 0.0, %v5126
    %v5128 = vpop.f32.mrf.mxu0
    %5129 = vmatprep.mubr.f32.mxu0 0.0
    %5130 = vmatmul.mubr.f32.gmra.mxu0 %v4892
    %v5131 = vpop.f32.mrf.mxu0
    %v5132 = vadd.f32 0.0, %v5131
    %v5133 = vpop.f32.mrf.mxu0
    %5134 = vdwg.mxu0
    %v5135 = vmax.f32 %v4976, %v5097
    %v5136 = vmax.f32 %v4981, %v5102
    %v5137 = vmax.f32 %v4986, %v5107
    %v5138 = vmax.f32 %v4991, %v5112
    %v5139 = vmax.f32 %v4996, %v5117
    %v5140 = vmax.f32 %v5001, %v5122
    %v5141 = vmax.f32 %v5006, %v5127
    %v5142 = vmax.f32 %v5011, %v5132
    %v5151 = vcombine.high %v5135, %v5135
    %v5153 = vunpack.c.l.s4 1983009808
    %v5154 = vunpack.c.0.s8 %v5153
    %v5155 = vlaneseq
    %v5156 = vshrl.u32 %v5155, 7
    %v5157 = vsub.s32 %v5154, %v5156
    %v5158 = vrot.slane %v5135, %v5157
    %v5160 = vunpack.c.l.s4 1983009808
    %v5161 = vunpack.c.0.s8 %v5160
    %v5162 = vlaneseq
    %v5163 = vshrl.u32 %v5162, 7
    %v5164 = vsub.s32 %v5161, %v5163
    %v5165 = vrot.slane %v5151, %v5164
    %v5166 = vcombine.high %v5158, %v5158
    %v5167 = vcombine.high %v5165, %v5165
    %v5168 = vcombine.high %v5136, %v5136
    %v5170 = vunpack.c.l.s4 1983009808
    %v5171 = vunpack.c.0.s8 %v5170
    %v5172 = vlaneseq
    %v5173 = vshrl.u32 %v5172, 7
    %v5174 = vsub.s32 %v5171, %v5173
    %v5175 = vrot.slane %v5136, %v5174
    %v5177 = vunpack.c.l.s4 1983009808
    %v5178 = vunpack.c.0.s8 %v5177
    %v5179 = vlaneseq
    %v5180 = vshrl.u32 %v5179, 7
    %v5181 = vsub.s32 %v5178, %v5180
    %v5182 = vrot.slane %v5168, %v5181
    %v5183 = vcombine.high %v5175, %v5175
    %v5184 = vcombine.high %v5182, %v5182
    %v5185 = vcombine.high %v5137, %v5137
    %v5187 = vunpack.c.l.s4 1983009808
    %v5188 = vunpack.c.0.s8 %v5187
    %v5189 = vlaneseq
    %v5190 = vshrl.u32 %v5189, 7
    %v5191 = vsub.s32 %v5188, %v5190
    %v5192 = vrot.slane %v5137, %v5191
    %v5194 = vunpack.c.l.s4 1983009808
    %v5195 = vunpack.c.0.s8 %v5194
    %v5196 = vlaneseq
    %v5197 = vshrl.u32 %v5196, 7
    %v5198 = vsub.s32 %v5195, %v5197
    %v5199 = vrot.slane %v5185, %v5198
    %v5200 = vcombine.high %v5192, %v5192
    %v5201 = vcombine.high %v5199, %v5199
    %v5202 = vcombine.high %v5138, %v5138
    %v5204 = vunpack.c.l.s4 1983009808
    %v5205 = vunpack.c.0.s8 %v5204
    %v5206 = vlaneseq
    %v5207 = vshrl.u32 %v5206, 7
    %v5208 = vsub.s32 %v5205, %v5207
    %v5209 = vrot.slane %v5138, %v5208
    %v5211 = vunpack.c.l.s4 1983009808
    %v5212 = vunpack.c.0.s8 %v5211
    %v5213 = vlaneseq
    %v5214 = vshrl.u32 %v5213, 7
    %v5215 = vsub.s32 %v5212, %v5214
    %v5216 = vrot.slane %v5202, %v5215
    %v5217 = vcombine.high %v5209, %v5209
    %v5218 = vcombine.high %v5216, %v5216
    %v5219 = vcombine.high %v5139, %v5139
    %v5221 = vunpack.c.l.s4 1983009808
    %v5222 = vunpack.c.0.s8 %v5221
    %v5223 = vlaneseq
    %v5224 = vshrl.u32 %v5223, 7
    %v5225 = vsub.s32 %v5222, %v5224
    %v5226 = vrot.slane %v5139, %v5225
    %v5228 = vunpack.c.l.s4 1983009808
    %v5229 = vunpack.c.0.s8 %v5228
    %v5230 = vlaneseq
    %v5231 = vshrl.u32 %v5230, 7
    %v5232 = vsub.s32 %v5229, %v5231
    %v5233 = vrot.slane %v5219, %v5232
    %v5234 = vcombine.high %v5226, %v5226
    %v5235 = vcombine.high %v5233, %v5233
    %v5236 = vcombine.high %v5140, %v5140
    %v5238 = vunpack.c.l.s4 1983009808
    %v5239 = vunpack.c.0.s8 %v5238
    %v5240 = vlaneseq
    %v5241 = vshrl.u32 %v5240, 7
    %v5242 = vsub.s32 %v5239, %v5241
    %v5243 = vrot.slane %v5140, %v5242
    %v5245 = vunpack.c.l.s4 1983009808
    %v5246 = vunpack.c.0.s8 %v5245
    %v5247 = vlaneseq
    %v5248 = vshrl.u32 %v5247, 7
    %v5249 = vsub.s32 %v5246, %v5248
    %v5250 = vrot.slane %v5236, %v5249
    %v5251 = vcombine.high %v5243, %v5243
    %v5252 = vcombine.high %v5250, %v5250
    %v5253 = vcombine.high %v5141, %v5141
    %v5255 = vunpack.c.l.s4 1983009808
    %v5256 = vunpack.c.0.s8 %v5255
    %v5257 = vlaneseq
    %v5258 = vshrl.u32 %v5257, 7
    %v5259 = vsub.s32 %v5256, %v5258
    %v5260 = vrot.slane %v5141, %v5259
    %v5262 = vunpack.c.l.s4 1983009808
    %v5263 = vunpack.c.0.s8 %v5262
    %v5264 = vlaneseq
    %v5265 = vshrl.u32 %v5264, 7
    %v5266 = vsub.s32 %v5263, %v5265
    %v5267 = vrot.slane %v5253, %v5266
    %v5268 = vcombine.high %v5260, %v5260
    %v5269 = vcombine.high %v5267, %v5267
    %v5270 = vcombine.high %v5142, %v5142
    %v5272 = vunpack.c.l.s4 1983009808
    %v5273 = vunpack.c.0.s8 %v5272
    %v5274 = vlaneseq
    %v5275 = vshrl.u32 %v5274, 7
    %v5276 = vsub.s32 %v5273, %v5275
    %v5277 = vrot.slane %v5142, %v5276
    %v5279 = vunpack.c.l.s4 1983009808
    %v5280 = vunpack.c.0.s8 %v5279
    %v5281 = vlaneseq
    %v5282 = vshrl.u32 %v5281, 7
    %v5283 = vsub.s32 %v5280, %v5282
    %v5284 = vrot.slane %v5270, %v5283
    %v5285 = vcombine.high %v5277, %v5277
    %v5286 = vcombine.high %v5284, %v5284
    %v5319 = vrot.slane %v5158, 7
    %v5320 = vrot.slane %v5319, 2
    %v5321 = vrot.slane %v5166, 7
    %v5322 = vrot.slane %v5321, 2
    %v5323 = vrot.slane %v5165, 7
    %v5324 = vrot.slane %v5323, 2
    %v5325 = vrot.slane %v5167, 7
    %v5326 = vrot.slane %v5325, 2
    %v5327 = vrot.slane %v5175, 7
    %v5328 = vrot.slane %v5327, 2
    %v5329 = vrot.slane %v5183, 7
    %v5330 = vrot.slane %v5329, 2
    %v5331 = vrot.slane %v5182, 7
    %v5332 = vrot.slane %v5331, 2
    %v5333 = vrot.slane %v5184, 7
    %v5334 = vrot.slane %v5333, 2
    %v5335 = vrot.slane %v5192, 7
    %v5336 = vrot.slane %v5335, 2
    %v5337 = vrot.slane %v5200, 7
    %v5338 = vrot.slane %v5337, 2
    %v5339 = vrot.slane %v5199, 7
    %v5340 = vrot.slane %v5339, 2
    %v5341 = vrot.slane %v5201, 7
    %v5342 = vrot.slane %v5341, 2
    %v5343 = vrot.slane %v5209, 7
    %v5344 = vrot.slane %v5343, 2
    %v5345 = vrot.slane %v5217, 7
    %v5346 = vrot.slane %v5345, 2
    %v5347 = vrot.slane %v5216, 7
    %v5348 = vrot.slane %v5347, 2
    %v5349 = vrot.slane %v5218, 7
    %v5350 = vrot.slane %v5349, 2
    %v5351 = vrot.slane %v5226, 7
    %v5352 = vrot.slane %v5351, 2
    %v5353 = vrot.slane %v5234, 7
    %v5354 = vrot.slane %v5353, 2
    %v5355 = vrot.slane %v5233, 7
    %v5356 = vrot.slane %v5355, 2
    %v5357 = vrot.slane %v5235, 7
    %v5358 = vrot.slane %v5357, 2
    %v5359 = vrot.slane %v5243, 7
    %v5360 = vrot.slane %v5359, 2
    %v5361 = vrot.slane %v5251, 7
    %v5362 = vrot.slane %v5361, 2
    %v5363 = vrot.slane %v5250, 7
    %v5364 = vrot.slane %v5363, 2
    %v5365 = vrot.slane %v5252, 7
    %v5366 = vrot.slane %v5365, 2
    %v5367 = vrot.slane %v5260, 7
    %v5368 = vrot.slane %v5367, 2
    %v5369 = vrot.slane %v5268, 7
    %v5370 = vrot.slane %v5369, 2
    %v5371 = vrot.slane %v5267, 7
    %v5372 = vrot.slane %v5371, 2
    %v5373 = vrot.slane %v5269, 7
    %v5374 = vrot.slane %v5373, 2
    %v5375 = vrot.slane %v5277, 7
    %v5376 = vrot.slane %v5375, 2
    %v5377 = vrot.slane %v5285, 7
    %v5378 = vrot.slane %v5377, 2
    %v5379 = vrot.slane %v5284, 7
    %v5380 = vrot.slane %v5379, 2
    %v5381 = vrot.slane %v5286, 7
    %v5382 = vrot.slane %v5381, 2
    %v5415 = vmax.f32 %v5158, %v5320
    %v5416 = vmax.f32 %v5166, %v5322
    %v5417 = vmax.f32 %v5165, %v5324
    %v5418 = vmax.f32 %v5167, %v5326
    %v5419 = vmax.f32 %v5175, %v5328
    %v5420 = vmax.f32 %v5183, %v5330
    %v5421 = vmax.f32 %v5182, %v5332
    %v5422 = vmax.f32 %v5184, %v5334
    %v5423 = vmax.f32 %v5192, %v5336
    %v5424 = vmax.f32 %v5200, %v5338
    %v5425 = vmax.f32 %v5199, %v5340
    %v5426 = vmax.f32 %v5201, %v5342
    %v5427 = vmax.f32 %v5209, %v5344
    %v5428 = vmax.f32 %v5217, %v5346
    %v5429 = vmax.f32 %v5216, %v5348
    %v5430 = vmax.f32 %v5218, %v5350
    %v5431 = vmax.f32 %v5226, %v5352
    %v5432 = vmax.f32 %v5234, %v5354
    %v5433 = vmax.f32 %v5233, %v5356
    %v5434 = vmax.f32 %v5235, %v5358
    %v5435 = vmax.f32 %v5243, %v5360
    %v5436 = vmax.f32 %v5251, %v5362
    %v5437 = vmax.f32 %v5250, %v5364
    %v5438 = vmax.f32 %v5252, %v5366
    %v5439 = vmax.f32 %v5260, %v5368
    %v5440 = vmax.f32 %v5268, %v5370
    %v5441 = vmax.f32 %v5267, %v5372
    %v5442 = vmax.f32 %v5269, %v5374
    %v5443 = vmax.f32 %v5277, %v5376
    %v5444 = vmax.f32 %v5285, %v5378
    %v5445 = vmax.f32 %v5284, %v5380
    %v5446 = vmax.f32 %v5286, %v5382
    %v5447 = vld [vmem:[%s9] sm:$0xff]
    %v5448 = vld [vmem:[%s9 + $0x8] sm:$0xff]
    %v5449 = vld [vmem:[%s9 + $0x10] sm:$0xff]
    %v5450 = vld [vmem:[%s9 + $0x18] sm:$0xff]
    %v5451 = vld [vmem:[%s9 + $0x20] sm:$0xff]
    %v5452 = vld [vmem:[%s9 + $0x28] sm:$0xff]
    %v5453 = vld [vmem:[%s9 + $0x30] sm:$0xff]
    %v5454 = vld [vmem:[%s9 + $0x38] sm:$0xff]
    %s5455 = scalar_lea.vmem %s9, 64
    %v5456 = vld [vmem:[%s5455] sm:$0xff]
    %v5457 = vld [vmem:[%s5455 + $0x8] sm:$0xff]
    %v5458 = vld [vmem:[%s5455 + $0x10] sm:$0xff]
    %v5459 = vld [vmem:[%s5455 + $0x18] sm:$0xff]
    %v5460 = vld [vmem:[%s5455 + $0x20] sm:$0xff]
    %v5461 = vld [vmem:[%s5455 + $0x28] sm:$0xff]
    %v5462 = vld [vmem:[%s5455 + $0x30] sm:$0xff]
    %v5463 = vld [vmem:[%s5455 + $0x38] sm:$0xff]
    %v5472 = vlaneseq
    %v5473 = vshrl.u32 %v5472, 7
    %v5474 = vsub.s32 0, %v5473
    %v5475 = vrot.slane %v5416, %v5474
    %v5476 = vlaneseq
    %v5477 = vshrl.u32 %v5476, 7
    %v5478 = vsub.s32 0, %v5477
    %v5479 = vrot.slane %v5420, %v5478
    %v5480 = vlaneseq
    %v5481 = vshrl.u32 %v5480, 7
    %v5482 = vsub.s32 0, %v5481
    %v5483 = vrot.slane %v5424, %v5482
    %v5484 = vlaneseq
    %v5485 = vshrl.u32 %v5484, 7
    %v5486 = vsub.s32 0, %v5485
    %v5487 = vrot.slane %v5428, %v5486
    %v5488 = vlaneseq
    %v5489 = vshrl.u32 %v5488, 7
    %v5490 = vsub.s32 0, %v5489
    %v5491 = vrot.slane %v5432, %v5490
    %v5492 = vlaneseq
    %v5493 = vshrl.u32 %v5492, 7
    %v5494 = vsub.s32 0, %v5493
    %v5495 = vrot.slane %v5436, %v5494
    %v5496 = vlaneseq
    %v5497 = vshrl.u32 %v5496, 7
    %v5498 = vsub.s32 0, %v5497
    %v5499 = vrot.slane %v5440, %v5498
    %v5500 = vlaneseq
    %v5501 = vshrl.u32 %v5500, 7
    %v5502 = vsub.s32 0, %v5501
    %v5503 = vrot.slane %v5444, %v5502
    %v5504 = vsel %vm3763, %v5479, %v5475
    %v5505 = vsel %vm3765, %v5483, %v5504
    %v5506 = vsel %vm3767, %v5487, %v5505
    %v5507 = vsel %vm3769, %v5491, %v5506
    %v5508 = vsel %vm3771, %v5495, %v5507
    %v5509 = vsel %vm3773, %v5499, %v5508
    %v5510 = vsel %vm3775, %v5503, %v5509
    %vm5511 = vcmask 523264
    %v5512 = vsel %vm5511, %v5510, 0
    %5514 = vmatprep.subr.mxu0 0.0
    %5515 = vmatpush1.msra.mxu0 0.0
    %5516 = vmatprep.subr.mxu0 0.0
    %5517 = vmatpush1.msra.mxu0 0.0
    %5518 = vmatprep.subr.mxu0 0.0
    %5519 = vmatpush1.msra.mxu0 0.0
    %5520 = vmatprep.subr.mxu0 0.0
    %5521 = vmatpush1.msra.mxu0 0.0
    %5522 = vmatprep.subr.mxu0 0.0
    %5523 = vmatpush1.msra.mxu0 0.0
    %5524 = vmatprep.subr.mxu0 0.0
    %5525 = vmatpush1.msra.mxu0 0.0
    %5526 = vmatprep.subr.mxu0 0.0
    %5527 = vmatpush1.msra.mxu0 0.0
    %5528 = vmatprep.subr.mxu0 0.0
    %5529 = vmatpush1.msra.mxu0 0.0
    %5530 = vmatprep.subr.mxu0 0.0
    %5531 = vmatpush1.msra.mxu0 %v5463
    %5532 = vmatprep.subr.mxu0 0.0
    %5533 = vmatpush1.msra.mxu0 %v5462
    %5534 = vmatprep.subr.mxu0 0.0
    %5535 = vmatpush1.msra.mxu0 %v5461
    %5536 = vmatprep.subr.mxu0 0.0
    %5537 = vmatpush1.msra.mxu0 %v5460
    %5538 = vmatprep.subr.mxu0 0.0
    %5539 = vmatpush1.msra.mxu0 %v5459
    %5540 = vmatprep.subr.mxu0 0.0
    %5541 = vmatpush1.msra.mxu0 %v5458
    %5542 = vmatprep.subr.mxu0 0.0
    %5543 = vmatpush1.msra.mxu0 %v5457
    %5544 = vmatprep.subr.mxu0 0.0
    %5545 = vmatpush1.msra.mxu0 %v5456
    %5546 = vmatprep.subr.mxu0 0.0
    %5547 = vmatpush2.msra.mxu0 0.0
    %5548 = vmatprep.subr.mxu0 0.0
    %5549 = vmatpush2.msra.mxu0 0.0
    %5550 = vmatprep.subr.mxu0 0.0
    %5551 = vmatpush2.msra.mxu0 0.0
    %5552 = vmatprep.subr.mxu0 0.0
    %5553 = vmatpush2.msra.mxu0 0.0
    %5554 = vmatprep.subr.mxu0 0.0
    %5555 = vmatpush2.msra.mxu0 0.0
    %5556 = vmatprep.subr.mxu0 0.0
    %5557 = vmatpush2.msra.mxu0 0.0
    %5558 = vmatprep.subr.mxu0 0.0
    %5559 = vmatpush2.msra.mxu0 0.0
    %5560 = vmatprep.subr.mxu0 0.0
    %5561 = vmatpush2.msra.mxu0 0.0
    %5562 = vmatprep.subr.mxu0 0.0
    %5563 = vmatpush2.msra.mxu0 0.0
    %5564 = vmatprep.subr.mxu0 0.0
    %5565 = vmatpush2.msra.mxu0 0.0
    %5566 = vmatprep.subr.mxu0 0.0
    %5567 = vmatpush2.msra.mxu0 0.0
    %5568 = vmatprep.subr.mxu0 0.0
    %5569 = vmatpush2.msra.mxu0 0.0
    %5570 = vmatprep.subr.mxu0 0.0
    %5571 = vmatpush2.msra.mxu0 0.0
    %5572 = vmatprep.subr.mxu0 0.0
    %5573 = vmatpush2.msra.mxu0 0.0
    %5574 = vmatprep.subr.mxu0 0.0
    %5575 = vmatpush2.msra.mxu0 0.0
    %5576 = vmatprep.subr.mxu0 0.0
    %5577 = vmatpush2.msra.mxu0 0.0
    %5578 = vmatprep.mubr.f32.mxu0 0.0
    %5579 = vmatmul.mubr.f32.gmra.mxu0 %v5512
    %v5580 = vpop.f32.mrf.mxu0
    %v5581 = vadd.f32 0.0, %v5580
    %v5582 = vpop.f32.mrf.mxu0
    %5583 = vdwg.mxu0
    %v5592 = vlaneseq
    %v5593 = vshrl.u32 %v5592, 7
    %v5594 = vsub.s32 0, %v5593
    %v5595 = vrot.slane %v5415, %v5594
    %v5596 = vlaneseq
    %v5597 = vshrl.u32 %v5596, 7
    %v5598 = vsub.s32 0, %v5597
    %v5599 = vrot.slane %v5419, %v5598
    %v5600 = vlaneseq
    %v5601 = vshrl.u32 %v5600, 7
    %v5602 = vsub.s32 0, %v5601
    %v5603 = vrot.slane %v5423, %v5602
    %v5604 = vlaneseq
    %v5605 = vshrl.u32 %v5604, 7
    %v5606 = vsub.s32 0, %v5605
    %v5607 = vrot.slane %v5427, %v5606
    %v5608 = vlaneseq
    %v5609 = vshrl.u32 %v5608, 7
    %v5610 = vsub.s32 0, %v5609
    %v5611 = vrot.slane %v5431, %v5610
    %v5612 = vlaneseq
    %v5613 = vshrl.u32 %v5612, 7
    %v5614 = vsub.s32 0, %v5613
    %v5615 = vrot.slane %v5435, %v5614
    %v5616 = vlaneseq
    %v5617 = vshrl.u32 %v5616, 7
    %v5618 = vsub.s32 0, %v5617
    %v5619 = vrot.slane %v5439, %v5618
    %v5620 = vlaneseq
    %v5621 = vshrl.u32 %v5620, 7
    %v5622 = vsub.s32 0, %v5621
    %v5623 = vrot.slane %v5443, %v5622
    %v5624 = vsel %vm3763, %v5599, %v5595
    %v5625 = vsel %vm3765, %v5603, %v5624
    %v5626 = vsel %vm3767, %v5607, %v5625
    %v5627 = vsel %vm3769, %v5611, %v5626
    %v5628 = vsel %vm3771, %v5615, %v5627
    %v5629 = vsel %vm3773, %v5619, %v5628
    %v5630 = vsel %vm3775, %v5623, %v5629
    %v5631 = vsel %vm5511, %v5630, 0
    %5633 = vmatprep.subr.mxu0 0.0
    %5634 = vmatpush1.msra.mxu0 0.0
    %5635 = vmatprep.subr.mxu0 0.0
    %5636 = vmatpush1.msra.mxu0 0.0
    %5637 = vmatprep.subr.mxu0 0.0
    %5638 = vmatpush1.msra.mxu0 0.0
    %5639 = vmatprep.subr.mxu0 0.0
    %5640 = vmatpush1.msra.mxu0 0.0
    %5641 = vmatprep.subr.mxu0 0.0
    %5642 = vmatpush1.msra.mxu0 0.0
    %5643 = vmatprep.subr.mxu0 0.0
    %5644 = vmatpush1.msra.mxu0 0.0
    %5645 = vmatprep.subr.mxu0 0.0
    %5646 = vmatpush1.msra.mxu0 0.0
    %5647 = vmatprep.subr.mxu0 0.0
    %5648 = vmatpush1.msra.mxu0 0.0
    %5649 = vmatprep.subr.mxu0 0.0
    %5650 = vmatpush1.msra.mxu0 %v5454
    %5651 = vmatprep.subr.mxu0 0.0
    %5652 = vmatpush1.msra.mxu0 %v5453
    %5653 = vmatprep.subr.mxu0 0.0
    %5654 = vmatpush1.msra.mxu0 %v5452
    %5655 = vmatprep.subr.mxu0 0.0
    %5656 = vmatpush1.msra.mxu0 %v5451
    %5657 = vmatprep.subr.mxu0 0.0
    %5658 = vmatpush1.msra.mxu0 %v5450
    %5659 = vmatprep.subr.mxu0 0.0
    %5660 = vmatpush1.msra.mxu0 %v5449
    %5661 = vmatprep.subr.mxu0 0.0
    %5662 = vmatpush1.msra.mxu0 %v5448
    %5663 = vmatprep.subr.mxu0 0.0
    %5664 = vmatpush1.msra.mxu0 %v5447
    %5665 = vmatprep.subr.mxu0 0.0
    %5666 = vmatpush2.msra.mxu0 0.0
    %5667 = vmatprep.subr.mxu0 0.0
    %5668 = vmatpush2.msra.mxu0 0.0
    %5669 = vmatprep.subr.mxu0 0.0
    %5670 = vmatpush2.msra.mxu0 0.0
    %5671 = vmatprep.subr.mxu0 0.0
    %5672 = vmatpush2.msra.mxu0 0.0
    %5673 = vmatprep.subr.mxu0 0.0
    %5674 = vmatpush2.msra.mxu0 0.0
    %5675 = vmatprep.subr.mxu0 0.0
    %5676 = vmatpush2.msra.mxu0 0.0
    %5677 = vmatprep.subr.mxu0 0.0
    %5678 = vmatpush2.msra.mxu0 0.0
    %5679 = vmatprep.subr.mxu0 0.0
    %5680 = vmatpush2.msra.mxu0 0.0
    %5681 = vmatprep.subr.mxu0 0.0
    %5682 = vmatpush2.msra.mxu0 0.0
    %5683 = vmatprep.subr.mxu0 0.0
    %5684 = vmatpush2.msra.mxu0 0.0
    %5685 = vmatprep.subr.mxu0 0.0
    %5686 = vmatpush2.msra.mxu0 0.0
    %5687 = vmatprep.subr.mxu0 0.0
    %5688 = vmatpush2.msra.mxu0 0.0
    %5689 = vmatprep.subr.mxu0 0.0
    %5690 = vmatpush2.msra.mxu0 0.0
    %5691 = vmatprep.subr.mxu0 0.0
    %5692 = vmatpush2.msra.mxu0 0.0
    %5693 = vmatprep.subr.mxu0 0.0
    %5694 = vmatpush2.msra.mxu0 0.0
    %5695 = vmatprep.subr.mxu0 0.0
    %5696 = vmatpush2.msra.mxu0 0.0
    %5697 = vmatprep.mubr.f32.mxu0 0.0
    %5698 = vmatmul.mubr.f32.gmra.mxu0 %v5631
    %v5699 = vpop.f32.mrf.mxu0
    %v5700 = vadd.f32 %v5581, %v5699
    %v5701 = vpop.f32.mrf.mxu0
    %5702 = vdwg.mxu0
    %s5703 = scalar_lea.vmem %s9, 128
    %v5704 = vld [vmem:[%s5703] sm:$0xff]
    %v5705 = vld [vmem:[%s5703 + $0x8] sm:$0xff]
    %v5706 = vld [vmem:[%s5703 + $0x10] sm:$0xff]
    %v5707 = vld [vmem:[%s5703 + $0x18] sm:$0xff]
    %v5708 = vld [vmem:[%s5703 + $0x20] sm:$0xff]
    %v5709 = vld [vmem:[%s5703 + $0x28] sm:$0xff]
    %v5710 = vld [vmem:[%s5703 + $0x30] sm:$0xff]
    %v5711 = vld [vmem:[%s5703 + $0x38] sm:$0xff]
    %v5720 = vlaneseq
    %v5721 = vshrl.u32 %v5720, 7
    %v5722 = vsub.s32 0, %v5721
    %v5723 = vrot.slane %v5417, %v5722
    %v5724 = vlaneseq
    %v5725 = vshrl.u32 %v5724, 7
    %v5726 = vsub.s32 0, %v5725
    %v5727 = vrot.slane %v5421, %v5726
    %v5728 = vlaneseq
    %v5729 = vshrl.u32 %v5728, 7
    %v5730 = vsub.s32 0, %v5729
    %v5731 = vrot.slane %v5425, %v5730
    %v5732 = vlaneseq
    %v5733 = vshrl.u32 %v5732, 7
    %v5734 = vsub.s32 0, %v5733
    %v5735 = vrot.slane %v5429, %v5734
    %v5736 = vlaneseq
    %v5737 = vshrl.u32 %v5736, 7
    %v5738 = vsub.s32 0, %v5737
    %v5739 = vrot.slane %v5433, %v5738
    %v5740 = vlaneseq
    %v5741 = vshrl.u32 %v5740, 7
    %v5742 = vsub.s32 0, %v5741
    %v5743 = vrot.slane %v5437, %v5742
    %v5744 = vlaneseq
    %v5745 = vshrl.u32 %v5744, 7
    %v5746 = vsub.s32 0, %v5745
    %v5747 = vrot.slane %v5441, %v5746
    %v5748 = vlaneseq
    %v5749 = vshrl.u32 %v5748, 7
    %v5750 = vsub.s32 0, %v5749
    %v5751 = vrot.slane %v5445, %v5750
    %v5752 = vsel %vm3763, %v5727, %v5723
    %v5753 = vsel %vm3765, %v5731, %v5752
    %v5754 = vsel %vm3767, %v5735, %v5753
    %v5755 = vsel %vm3769, %v5739, %v5754
    %v5756 = vsel %vm3771, %v5743, %v5755
    %v5757 = vsel %vm3773, %v5747, %v5756
    %v5758 = vsel %vm3775, %v5751, %v5757
    %v5759 = vsel %vm5511, %v5758, 0
    %5761 = vmatprep.subr.mxu0 0.0
    %5762 = vmatpush1.msra.mxu0 0.0
    %5763 = vmatprep.subr.mxu0 0.0
    %5764 = vmatpush1.msra.mxu0 0.0
    %5765 = vmatprep.subr.mxu0 0.0
    %5766 = vmatpush1.msra.mxu0 0.0
    %5767 = vmatprep.subr.mxu0 0.0
    %5768 = vmatpush1.msra.mxu0 0.0
    %5769 = vmatprep.subr.mxu0 0.0
    %5770 = vmatpush1.msra.mxu0 0.0
    %5771 = vmatprep.subr.mxu0 0.0
    %5772 = vmatpush1.msra.mxu0 0.0
    %5773 = vmatprep.subr.mxu0 0.0
    %5774 = vmatpush1.msra.mxu0 0.0
    %5775 = vmatprep.subr.mxu0 0.0
    %5776 = vmatpush1.msra.mxu0 0.0
    %5777 = vmatprep.subr.mxu0 0.0
    %5778 = vmatpush1.msra.mxu0 %v5711
    %5779 = vmatprep.subr.mxu0 0.0
    %5780 = vmatpush1.msra.mxu0 %v5710
    %5781 = vmatprep.subr.mxu0 0.0
    %5782 = vmatpush1.msra.mxu0 %v5709
    %5783 = vmatprep.subr.mxu0 0.0
    %5784 = vmatpush1.msra.mxu0 %v5708
    %5785 = vmatprep.subr.mxu0 0.0
    %5786 = vmatpush1.msra.mxu0 %v5707
    %5787 = vmatprep.subr.mxu0 0.0
    %5788 = vmatpush1.msra.mxu0 %v5706
    %5789 = vmatprep.subr.mxu0 0.0
    %5790 = vmatpush1.msra.mxu0 %v5705
    %5791 = vmatprep.subr.mxu0 0.0
    %5792 = vmatpush1.msra.mxu0 %v5704
    %5793 = vmatprep.subr.mxu0 0.0
    %5794 = vmatpush2.msra.mxu0 0.0
    %5795 = vmatprep.subr.mxu0 0.0
    %5796 = vmatpush2.msra.mxu0 0.0
    %5797 = vmatprep.subr.mxu0 0.0
    %5798 = vmatpush2.msra.mxu0 0.0
    %5799 = vmatprep.subr.mxu0 0.0
    %5800 = vmatpush2.msra.mxu0 0.0
    %5801 = vmatprep.subr.mxu0 0.0
    %5802 = vmatpush2.msra.mxu0 0.0
    %5803 = vmatprep.subr.mxu0 0.0
    %5804 = vmatpush2.msra.mxu0 0.0
    %5805 = vmatprep.subr.mxu0 0.0
    %5806 = vmatpush2.msra.mxu0 0.0
    %5807 = vmatprep.subr.mxu0 0.0
    %5808 = vmatpush2.msra.mxu0 0.0
    %5809 = vmatprep.subr.mxu0 0.0
    %5810 = vmatpush2.msra.mxu0 0.0
    %5811 = vmatprep.subr.mxu0 0.0
    %5812 = vmatpush2.msra.mxu0 0.0
    %5813 = vmatprep.subr.mxu0 0.0
    %5814 = vmatpush2.msra.mxu0 0.0
    %5815 = vmatprep.subr.mxu0 0.0
    %5816 = vmatpush2.msra.mxu0 0.0
    %5817 = vmatprep.subr.mxu0 0.0
    %5818 = vmatpush2.msra.mxu0 0.0
    %5819 = vmatprep.subr.mxu0 0.0
    %5820 = vmatpush2.msra.mxu0 0.0
    %5821 = vmatprep.subr.mxu0 0.0
    %5822 = vmatpush2.msra.mxu0 0.0
    %5823 = vmatprep.subr.mxu0 0.0
    %5824 = vmatpush2.msra.mxu0 0.0
    %5825 = vmatprep.mubr.f32.mxu0 0.0
    %5826 = vmatmul.mubr.f32.gmra.mxu0 %v5759
    %v5827 = vpop.f32.mrf.mxu0
    %v5828 = vadd.f32 0.0, %v5827
    %v5829 = vpop.f32.mrf.mxu0
    %5830 = vdwg.mxu0
    %v5831 = vadd.f32 %v5700, %v5828
    %s5832 = scalar_lea.vmem %s9, 192
    %v5833 = vld [vmem:[%s5832] sm:$0xff]
    %v5834 = vld [vmem:[%s5832 + $0x8] sm:$0xff]
    %v5835 = vld [vmem:[%s5832 + $0x10] sm:$0xff]
    %v5836 = vld [vmem:[%s5832 + $0x18] sm:$0xff]
    %v5837 = vld [vmem:[%s5832 + $0x20] sm:$0xff]
    %v5838 = vld [vmem:[%s5832 + $0x28] sm:$0xff]
    %v5839 = vld [vmem:[%s5832 + $0x30] sm:$0xff]
    %v5840 = vld [vmem:[%s5832 + $0x38] sm:$0xff]
    %v5849 = vlaneseq
    %v5850 = vshrl.u32 %v5849, 7
    %v5851 = vsub.s32 0, %v5850
    %v5852 = vrot.slane %v5418, %v5851
    %v5853 = vlaneseq
    %v5854 = vshrl.u32 %v5853, 7
    %v5855 = vsub.s32 0, %v5854
    %v5856 = vrot.slane %v5422, %v5855
    %v5857 = vlaneseq
    %v5858 = vshrl.u32 %v5857, 7
    %v5859 = vsub.s32 0, %v5858
    %v5860 = vrot.slane %v5426, %v5859
    %v5861 = vlaneseq
    %v5862 = vshrl.u32 %v5861, 7
    %v5863 = vsub.s32 0, %v5862
    %v5864 = vrot.slane %v5430, %v5863
    %v5865 = vlaneseq
    %v5866 = vshrl.u32 %v5865, 7
    %v5867 = vsub.s32 0, %v5866
    %v5868 = vrot.slane %v5434, %v5867
    %v5869 = vlaneseq
    %v5870 = vshrl.u32 %v5869, 7
    %v5871 = vsub.s32 0, %v5870
    %v5872 = vrot.slane %v5438, %v5871
    %v5873 = vlaneseq
    %v5874 = vshrl.u32 %v5873, 7
    %v5875 = vsub.s32 0, %v5874
    %v5876 = vrot.slane %v5442, %v5875
    %v5877 = vlaneseq
    %v5878 = vshrl.u32 %v5877, 7
    %v5879 = vsub.s32 0, %v5878
    %v5880 = vrot.slane %v5446, %v5879
    %v5881 = vsel %vm3763, %v5856, %v5852
    %v5882 = vsel %vm3765, %v5860, %v5881
    %v5883 = vsel %vm3767, %v5864, %v5882
    %v5884 = vsel %vm3769, %v5868, %v5883
    %v5885 = vsel %vm3771, %v5872, %v5884
    %v5886 = vsel %vm3773, %v5876, %v5885
    %v5887 = vsel %vm3775, %v5880, %v5886
    %v5888 = vsel %vm5511, %v5887, 0
    %5890 = vmatprep.subr.mxu0 0.0
    %5891 = vmatpush1.msra.mxu0 0.0
    %5892 = vmatprep.subr.mxu0 0.0
    %5893 = vmatpush1.msra.mxu0 0.0
    %5894 = vmatprep.subr.mxu0 0.0
    %5895 = vmatpush1.msra.mxu0 0.0
    %5896 = vmatprep.subr.mxu0 0.0
    %5897 = vmatpush1.msra.mxu0 0.0
    %5898 = vmatprep.subr.mxu0 0.0
    %5899 = vmatpush1.msra.mxu0 0.0
    %5900 = vmatprep.subr.mxu0 0.0
    %5901 = vmatpush1.msra.mxu0 0.0
    %5902 = vmatprep.subr.mxu0 0.0
    %5903 = vmatpush1.msra.mxu0 0.0
    %5904 = vmatprep.subr.mxu0 0.0
    %5905 = vmatpush1.msra.mxu0 0.0
    %5906 = vmatprep.subr.mxu0 0.0
    %5907 = vmatpush1.msra.mxu0 %v5840
    %5908 = vmatprep.subr.mxu0 0.0
    %5909 = vmatpush1.msra.mxu0 %v5839
    %5910 = vmatprep.subr.mxu0 0.0
    %5911 = vmatpush1.msra.mxu0 %v5838
    %5912 = vmatprep.subr.mxu0 0.0
    %5913 = vmatpush1.msra.mxu0 %v5837
    %5914 = vmatprep.subr.mxu0 0.0
    %5915 = vmatpush1.msra.mxu0 %v5836
    %5916 = vmatprep.subr.mxu0 0.0
    %5917 = vmatpush1.msra.mxu0 %v5835
    %5918 = vmatprep.subr.mxu0 0.0
    %5919 = vmatpush1.msra.mxu0 %v5834
    %5920 = vmatprep.subr.mxu0 0.0
    %5921 = vmatpush1.msra.mxu0 %v5833
    %5922 = vmatprep.subr.mxu0 0.0
    %5923 = vmatpush2.msra.mxu0 0.0
    %5924 = vmatprep.subr.mxu0 0.0
    %5925 = vmatpush2.msra.mxu0 0.0
    %5926 = vmatprep.subr.mxu0 0.0
    %5927 = vmatpush2.msra.mxu0 0.0
    %5928 = vmatprep.subr.mxu0 0.0
    %5929 = vmatpush2.msra.mxu0 0.0
    %5930 = vmatprep.subr.mxu0 0.0
    %5931 = vmatpush2.msra.mxu0 0.0
    %5932 = vmatprep.subr.mxu0 0.0
    %5933 = vmatpush2.msra.mxu0 0.0
    %5934 = vmatprep.subr.mxu0 0.0
    %5935 = vmatpush2.msra.mxu0 0.0
    %5936 = vmatprep.subr.mxu0 0.0
    %5937 = vmatpush2.msra.mxu0 0.0
    %5938 = vmatprep.subr.mxu0 0.0
    %5939 = vmatpush2.msra.mxu0 0.0
    %5940 = vmatprep.subr.mxu0 0.0
    %5941 = vmatpush2.msra.mxu0 0.0
    %5942 = vmatprep.subr.mxu0 0.0
    %5943 = vmatpush2.msra.mxu0 0.0
    %5944 = vmatprep.subr.mxu0 0.0
    %5945 = vmatpush2.msra.mxu0 0.0
    %5946 = vmatprep.subr.mxu0 0.0
    %5947 = vmatpush2.msra.mxu0 0.0
    %5948 = vmatprep.subr.mxu0 0.0
    %5949 = vmatpush2.msra.mxu0 0.0
    %5950 = vmatprep.subr.mxu0 0.0
    %5951 = vmatpush2.msra.mxu0 0.0
    %5952 = vmatprep.subr.mxu0 0.0
    %5953 = vmatpush2.msra.mxu0 0.0
    %5954 = vmatprep.mubr.f32.mxu0 0.0
    %5955 = vmatmul.mubr.f32.gmra.mxu0 %v5888
    %v5956 = vpop.f32.mrf.mxu0
    %v5957 = vadd.f32 0.0, %v5956
    %v5958 = vpop.f32.mrf.mxu0
    %5959 = vdwg.mxu0
    %v5960 = vadd.f32 %v5831, %v5957
    %v5961 = vld [vmem:[%s10] sm:$0x1]
    %v5963 = vlaneseq
    %v5964 = vshrl.u32 %v5963, 7
    %v5965 = vsub.s32 0, %v5964
    %v5966 = vrot.slane %v5961, %v5965
    %v5968 = vadd.f32 %v5960, %v5966
    %v5969 = vmax.f32 %v5968, 0.0
    %v5970 = vld [vmem:[#allocation6] sm:$0xff]
    %v5971 = vld [vmem:[#allocation6 + $0x8] sm:$0xff]
    %v5972 = vld [vmem:[#allocation6 + $0x10] sm:$0xff]
    %v5973 = vld [vmem:[#allocation6 + $0x18] sm:$0xff]
    %v5974 = vld [vmem:[#allocation6 + $0x20] sm:$0xff]
    %v5975 = vld [vmem:[#allocation6 + $0x28] sm:$0xff]
    %v5976 = vld [vmem:[#allocation6 + $0x30] sm:$0xff]
    %v5977 = vld [vmem:[#allocation6 + $0x38] sm:$0xff]
    %v5978 = vld [vmem:[#allocation6 + $0x40] sm:$0xff]
    %v5979 = vld [vmem:[#allocation6 + $0x48] sm:$0xff]
    %v5980 = vld [vmem:[#allocation6 + $0x50] sm:$0xff]
    %v5981 = vld [vmem:[#allocation6 + $0x58] sm:$0xff]
    %v5982 = vld [vmem:[#allocation6 + $0x60] sm:$0xff]
    %v5983 = vld [vmem:[#allocation6 + $0x68] sm:$0xff]
    %v5984 = vld [vmem:[#allocation6 + $0x70] sm:$0xff]
    %v5985 = vld [vmem:[#allocation6 + $0x78] sm:$0xff]
    %v5986 = vld [vmem:[%s12] sm:$0x1]
    %v5988 = vlaneseq
    %v5989 = vshrl.u32 %v5988, 7
    %v5990 = vsub.s32 0, %v5989
    %v5991 = vrot.slane %v5986, %v5990
    %5993 = vmatprep.subr.mxu0 0.0
    %5994 = vmatpush1.msra.mxu0 %v5985
    %5995 = vmatprep.subr.mxu0 0.0
    %5996 = vmatpush1.msra.mxu0 %v5984
    %5997 = vmatprep.subr.mxu0 0.0
    %5998 = vmatpush1.msra.mxu0 %v5983
    %5999 = vmatprep.subr.mxu0 0.0
    %6000 = vmatpush1.msra.mxu0 %v5982
    %6001 = vmatprep.subr.mxu0 0.0
    %6002 = vmatpush1.msra.mxu0 %v5981
    %6003 = vmatprep.subr.mxu0 0.0
    %6004 = vmatpush1.msra.mxu0 %v5980
    %6005 = vmatprep.subr.mxu0 0.0
    %6006 = vmatpush1.msra.mxu0 %v5979
    %6007 = vmatprep.subr.mxu0 0.0
    %6008 = vmatpush1.msra.mxu0 %v5978
    %6009 = vmatprep.subr.mxu0 0.0
    %6010 = vmatpush1.msra.mxu0 %v5977
    %6011 = vmatprep.subr.mxu0 0.0
    %6012 = vmatpush1.msra.mxu0 %v5976
    %6013 = vmatprep.subr.mxu0 0.0
    %6014 = vmatpush1.msra.mxu0 %v5975
    %6015 = vmatprep.subr.mxu0 0.0
    %6016 = vmatpush1.msra.mxu0 %v5974
    %6017 = vmatprep.subr.mxu0 0.0
    %6018 = vmatpush1.msra.mxu0 %v5973
    %6019 = vmatprep.subr.mxu0 0.0
    %6020 = vmatpush1.msra.mxu0 %v5972
    %6021 = vmatprep.subr.mxu0 0.0
    %6022 = vmatpush1.msra.mxu0 %v5971
    %6023 = vmatprep.subr.mxu0 0.0
    %6024 = vmatpush1.msra.mxu0 %v5970
    %6025 = vmatprep.subr.mxu0 0.0
    %6026 = vmatpush2.msra.mxu0 0.0
    %6027 = vmatprep.subr.mxu0 0.0
    %6028 = vmatpush2.msra.mxu0 0.0
    %6029 = vmatprep.subr.mxu0 0.0
    %6030 = vmatpush2.msra.mxu0 0.0
    %6031 = vmatprep.subr.mxu0 0.0
    %6032 = vmatpush2.msra.mxu0 0.0
    %6033 = vmatprep.subr.mxu0 0.0
    %6034 = vmatpush2.msra.mxu0 0.0
    %6035 = vmatprep.subr.mxu0 0.0
    %6036 = vmatpush2.msra.mxu0 0.0
    %6037 = vmatprep.subr.mxu0 0.0
    %6038 = vmatpush2.msra.mxu0 0.0
    %6039 = vmatprep.subr.mxu0 0.0
    %6040 = vmatpush2.msra.mxu0 0.0
    %6041 = vmatprep.subr.mxu0 0.0
    %6042 = vmatpush2.msra.mxu0 0.0
    %6043 = vmatprep.subr.mxu0 0.0
    %6044 = vmatpush2.msra.mxu0 0.0
    %6045 = vmatprep.subr.mxu0 0.0
    %6046 = vmatpush2.msra.mxu0 0.0
    %6047 = vmatprep.subr.mxu0 0.0
    %6048 = vmatpush2.msra.mxu0 0.0
    %6049 = vmatprep.subr.mxu0 0.0
    %6050 = vmatpush2.msra.mxu0 0.0
    %6051 = vmatprep.subr.mxu0 0.0
    %6052 = vmatpush2.msra.mxu0 0.0
    %6053 = vmatprep.subr.mxu0 0.0
    %6054 = vmatpush2.msra.mxu0 0.0
    %6055 = vmatprep.subr.mxu0 0.0
    %6056 = vmatpush2.msra.mxu0 0.0
    %6057 = vmatprep.mubr.f32.mxu0 0.0
    %6058 = vmatmul.mubr.f32.gmra.mxu0 %v5969
    %v6059 = vpop.f32.mrf.mxu0
    %v6060 = vadd.f32 %v5991, %v6059
    %v6061 = vpop.f32.mrf.mxu0
    %6062 = vdwg.mxu0
    %v6063 = vmax.f32 %v6060, 0.0
    %v6064 = vld [vmem:[#allocation7] sm:$0xff]
    %v6065 = vld [vmem:[#allocation7 + $0x8] sm:$0xff]
    %v6066 = vld [vmem:[#allocation7 + $0x10] sm:$0xff]
    %v6067 = vld [vmem:[#allocation7 + $0x18] sm:$0xff]
    %v6068 = vld [vmem:[#allocation7 + $0x20] sm:$0xff]
    %v6069 = vld [vmem:[#allocation7 + $0x28] sm:$0xff]
    %v6070 = vld [vmem:[#allocation7 + $0x30] sm:$0xff]
    %v6071 = vld [vmem:[#allocation7 + $0x38] sm:$0xff]
    %v6072 = vld [vmem:[#allocation7 + $0x40] sm:$0xff]
    %v6073 = vld [vmem:[#allocation7 + $0x48] sm:$0xff]
    %v6074 = vld [vmem:[#allocation7 + $0x50] sm:$0xff]
    %v6075 = vld [vmem:[#allocation7 + $0x58] sm:$0xff]
    %v6076 = vld [vmem:[#allocation7 + $0x60] sm:$0xff]
    %v6077 = vld [vmem:[#allocation7 + $0x68] sm:$0xff]
    %v6078 = vld [vmem:[#allocation7 + $0x70] sm:$0xff]
    %v6079 = vld [vmem:[#allocation7 + $0x78] sm:$0xff]
    %v6080 = vld [vmem:[%s14] sm:$0x1]
    %v6082 = vlaneseq
    %v6083 = vshrl.u32 %v6082, 7
    %v6084 = vsub.s32 0, %v6083
    %v6085 = vrot.slane %v6080, %v6084
    %6087 = vmatprep.subr.mxu0 0.0
    %6088 = vmatpush1.msra.mxu0 %v6079
    %6089 = vmatprep.subr.mxu0 0.0
    %6090 = vmatpush1.msra.mxu0 %v6078
    %6091 = vmatprep.subr.mxu0 0.0
    %6092 = vmatpush1.msra.mxu0 %v6077
    %6093 = vmatprep.subr.mxu0 0.0
    %6094 = vmatpush1.msra.mxu0 %v6076
    %6095 = vmatprep.subr.mxu0 0.0
    %6096 = vmatpush1.msra.mxu0 %v6075
    %6097 = vmatprep.subr.mxu0 0.0
    %6098 = vmatpush1.msra.mxu0 %v6074
    %6099 = vmatprep.subr.mxu0 0.0
    %6100 = vmatpush1.msra.mxu0 %v6073
    %6101 = vmatprep.subr.mxu0 0.0
    %6102 = vmatpush1.msra.mxu0 %v6072
    %6103 = vmatprep.subr.mxu0 0.0
    %6104 = vmatpush1.msra.mxu0 %v6071
    %6105 = vmatprep.subr.mxu0 0.0
    %6106 = vmatpush1.msra.mxu0 %v6070
    %6107 = vmatprep.subr.mxu0 0.0
    %6108 = vmatpush1.msra.mxu0 %v6069
    %6109 = vmatprep.subr.mxu0 0.0
    %6110 = vmatpush1.msra.mxu0 %v6068
    %6111 = vmatprep.subr.mxu0 0.0
    %6112 = vmatpush1.msra.mxu0 %v6067
    %6113 = vmatprep.subr.mxu0 0.0
    %6114 = vmatpush1.msra.mxu0 %v6066
    %6115 = vmatprep.subr.mxu0 0.0
    %6116 = vmatpush1.msra.mxu0 %v6065
    %6117 = vmatprep.subr.mxu0 0.0
    %6118 = vmatpush1.msra.mxu0 %v6064
    %6119 = vmatprep.subr.mxu0 0.0
    %6120 = vmatpush2.msra.mxu0 0.0
    %6121 = vmatprep.subr.mxu0 0.0
    %6122 = vmatpush2.msra.mxu0 0.0
    %6123 = vmatprep.subr.mxu0 0.0
    %6124 = vmatpush2.msra.mxu0 0.0
    %6125 = vmatprep.subr.mxu0 0.0
    %6126 = vmatpush2.msra.mxu0 0.0
    %6127 = vmatprep.subr.mxu0 0.0
    %6128 = vmatpush2.msra.mxu0 0.0
    %6129 = vmatprep.subr.mxu0 0.0
    %6130 = vmatpush2.msra.mxu0 0.0
    %6131 = vmatprep.subr.mxu0 0.0
    %6132 = vmatpush2.msra.mxu0 0.0
    %6133 = vmatprep.subr.mxu0 0.0
    %6134 = vmatpush2.msra.mxu0 0.0
    %6135 = vmatprep.subr.mxu0 0.0
    %6136 = vmatpush2.msra.mxu0 0.0
    %6137 = vmatprep.subr.mxu0 0.0
    %6138 = vmatpush2.msra.mxu0 0.0
    %6139 = vmatprep.subr.mxu0 0.0
    %6140 = vmatpush2.msra.mxu0 0.0
    %6141 = vmatprep.subr.mxu0 0.0
    %6142 = vmatpush2.msra.mxu0 0.0
    %6143 = vmatprep.subr.mxu0 0.0
    %6144 = vmatpush2.msra.mxu0 0.0
    %6145 = vmatprep.subr.mxu0 0.0
    %6146 = vmatpush2.msra.mxu0 0.0
    %6147 = vmatprep.subr.mxu0 0.0
    %6148 = vmatpush2.msra.mxu0 0.0
    %6149 = vmatprep.subr.mxu0 0.0
    %6150 = vmatpush2.msra.mxu0 0.0
    %6151 = vmatprep.mubr.f32.mxu0 0.0
    %6152 = vmatmul.mubr.f32.gmra.mxu0 %v6063
    %v6153 = vpop.f32.mrf.mxu0
    %v6154 = vadd.f32 %v6085, %v6153
    %v6155 = vpop.f32.mrf.mxu0
    %6156 = vdwg.mxu0
    %6157 = vst [vmem:[%s15] sm:$0xff] %v6154
    // Predicated region
    $region78: #{net_forward.1} parent=1 // pred_check
      _
    $region79: #{net_forward.1} parent=1 // pred_check_branch
      %6159 = sbr.rel (0) target = $region81
    $region80: #{net_forward.1} parent=1 // pred_region
      _
    $region81: #{net_forward.1} parent=1 // pred_fallthru
      _
    // Predicated region
    $region82: #{net_forward.1} parent=1 // pred_check
      _
    $region83: #{net_forward.1} parent=1 // pred_check_branch
      %6161 = sbr.rel (0) target = $region85
    $region84: #{net_forward.1} parent=1 // pred_region
      _
    $region85: #{net_forward.1} parent=1 // pred_fallthru
      _
    %6162 = vsyncpa [#allocation3], 1
    %6163 = vsyncpa [#allocation5], 1
    %6164 = vsyncpa [#allocation8], 1

</llo_original>
